<compile_context>
chip_gen: v6e
topology: v6e:2x2x1
jax: 0.10.0
libtpu: 0.0.40
codegen_flags: <defaults>
</compile_context>

<pallas_src>
import functools

import jax
import jax.numpy as jnp
from jax.experimental import pallas as pl
from jax.experimental.pallas import tpu as pltpu


def _round_up(n, m):
    return ((n + m - 1) // m) * m


# -----------------------------------------------------------------------------
# One-time parameter prep: Conv2d weight (E, C, ph, pw) -> matmul weight (K, E).
# -----------------------------------------------------------------------------
def prepare_patch_embed_params(weight, bias, param_dtype=None):
    """Flatten the Conv2d projection to a (K, E) matmul weight + (1, E) f32 bias.

    K = C*ph*pw flattened in (c, p, q) order -- the same order the kernel uses
    to flatten each patch.  `param_dtype` (e.g. jnp.bfloat16) selects the MXU
    operand dtype; the kernel casts the patch operand to match.
    """
    E, C, ph, pw = weight.shape
    K = C * ph * pw
    w2d = weight.reshape(E, K).T                       # (K, E)
    if param_dtype is not None:
        w2d = w2d.astype(param_dtype)
    b2d = bias.reshape(1, E).astype(jnp.float32)
    return w2d, b2d


# -----------------------------------------------------------------------------
# Fused kernel: patch rearrangement in VMEM + MXU matmul, resident weight.
# -----------------------------------------------------------------------------
def _fused_kernel(x_ref, w_ref, b_ref, o_ref, *, nb, c, gh, gw, ph, pw, k):
    # x_ref: (NB, C, H, gw, pw)   w_ref: (K, E)   b_ref: (1, E) f32
    # o_ref: (NB, NP, E)          NP = gh * gw
    w = w_ref[...]                       # resident (K, E) tile (constant index)
    bias = b_ref[...]                    # (1, E) float32
    for n in range(nb):
        for i in range(gh):
            # Patch-row i of image n: (C, ph, gw, pw) slab.
            blk = x_ref[n, :, i * ph:(i + 1) * ph]
            blk = blk.reshape(c * ph, gw, pw)      # merge leading dims (free)
            blk = jnp.swapaxes(blk, 1, 2)          # (C*ph, pw, gw) -- XLU work
            patches_t = blk.reshape(k, gw)         # row = (c, p, q), col = j
            if patches_t.dtype != w.dtype:
                patches_t = patches_t.astype(w.dtype)
            acc = jax.lax.dot_general(             # (gw, E), f32 accumulation
                patches_t, w,
                dimension_numbers=(((0,), (0,)), ((), ())),
                preferred_element_type=jnp.float32)
            o_ref[n, i * gw:(i + 1) * gw, :] = (acc + bias).astype(o_ref.dtype)


def _fused_plan(B, C, H, W, ph, pw, E, x_itemsize, w_itemsize, o_itemsize):
    """Pick images-per-grid-step (NB) under a v7x-safe VMEM budget.

    Returns (NB, vmem_estimate_bytes) or None if even a single image per step
    does not fit (then the tiled unfused fallback is used).
    """
    gh, gw = H // ph, W // pw
    NP, K = gh * gw, C * ph * pw
    budget = 40 << 20                               # headroom on v7x's 64 MiB
    fixed = 2 * (K * E * w_itemsize + E * 4) + (2 << 20)

    def est(nb):                                    # double-buffered in/out blocks
        return fixed + 2 * nb * (C * H * W * x_itemsize + NP * E * o_itemsize)

    for nb in range(min(B, 8), 0, -1):
        if B % nb:
            continue
        # Keep >= 2 grid steps (feeds both v7x TensorCores) and cap the unroll.
        if nb > 1 and (B // nb < 2 or nb * gh > 32):
            continue
        if est(nb) <= budget:
            return nb, est(nb)
    return None


@functools.partial(jax.jit, static_argnames=("patch_size", "out_dtype_name", "nb"))
def _patch_embed_fused(x, w2d, b2d, *, patch_size, out_dtype_name, nb):
    B, C, H, W = x.shape
    ph, pw = patch_size
    gh, gw = H // ph, W // pw
    NP, K = gh * gw, C * ph * pw
    E = w2d.shape[1]
    out_dtype = jnp.dtype(out_dtype_name)

    # Free, metadata-only reshape: x stays where it is in HBM.
    x5 = x.reshape(B, C, H, gw, pw)

    kernel = functools.partial(_fused_kernel, nb=nb, c=C, gh=gh, gw=gw,
                               ph=ph, pw=pw, k=K)

    vmem_est = (2 * (K * E * w2d.dtype.itemsize + E * 4) + (2 << 20)
                + 2 * nb * (C * H * W * x.dtype.itemsize
                            + NP * E * out_dtype.itemsize))
    vmem_limit = int(min(max(vmem_est + (4 << 20), 32 << 20), 48 << 20))

    nbytes = lambda a: a.size * jnp.dtype(a.dtype).itemsize
    cost = pl.CostEstimate(
        flops=2 * B * NP * K * E,
        transcendentals=0,
        bytes_accessed=nbytes(x) + nbytes(w2d) + nbytes(b2d)
        + B * NP * E * out_dtype.itemsize)

    return pl.pallas_call(
        kernel,
        out_shape=jax.ShapeDtypeStruct((B, NP, E), out_dtype),
        grid_spec=pltpu.PrefetchScalarGridSpec(
            num_scalar_prefetch=0,
            grid=(B // nb,),
            in_specs=[
                pl.BlockSpec((nb, C, H, gw, pw), lambda b: (b, 0, 0, 0, 0)),
                pl.BlockSpec((K, E), lambda b: (0, 0)),      # resident weight
                pl.BlockSpec((1, E), lambda b: (0, 0)),      # resident bias
            ],
            out_specs=pl.BlockSpec((nb, NP, E), lambda b: (b, 0, 0)),
        ),
        compiler_params=pltpu.CompilerParams(
            dimension_semantics=("parallel",),
            vmem_limit_bytes=vmem_limit),
        cost_estimate=cost,
    )(x5, w2d, b2d)


# -----------------------------------------------------------------------------
# Unfused fallback: rearrange in XLA + tiled matmul (weight resident).
# -----------------------------------------------------------------------------
def _matmul_kernel(p_ref, w_ref, b_ref, o_ref):
    acc = jnp.dot(p_ref[...], w_ref[...], preferred_element_type=jnp.float32)
    o_ref[...] = (acc + b_ref[...]).astype(o_ref.dtype)


@functools.partial(jax.jit, static_argnames=("patch_size", "out_dtype_name"))
def _patch_embed_unfused(x, w2d, b2d, *, patch_size, out_dtype_name):
    B, C, H, W = x.shape
    ph, pw = patch_size
    gh, gw = H // ph, W // pw
    NP, K = gh * gw, C * ph * pw
    E = w2d.shape[1]
    M = B * NP
    out_dtype = jnp.dtype(out_dtype_name)

    # Conv-as-matmul rearrange in XLA (one extra HBM round trip; fallback only).
    patches = x.reshape(B, C, gh, ph, gw, pw).transpose(0, 2, 4, 1, 3, 5)
    patches = patches.reshape(M, K)
    if patches.dtype != w2d.dtype:
        patches = patches.astype(w2d.dtype)

    TM = min(512, _round_up(M, 8))
    M_pad = _round_up(M, TM)
    if M_pad != M:
        patches = jnp.pad(patches, ((0, M_pad - M), (0, 0)))

    out = pl.pallas_call(
        _matmul_kernel,
        out_shape=jax.ShapeDtypeStruct((M_pad, E), out_dtype),
        grid_spec=pltpu.PrefetchScalarGridSpec(
            num_scalar_prefetch=0,
            grid=(M_pad // TM,),
            in_specs=[
                pl.BlockSpec((TM, K), lambda i: (i, 0)),
                pl.BlockSpec((K, E), lambda i: (0, 0)),      # resident weight
                pl.BlockSpec((1, E), lambda i: (0, 0)),
            ],
            out_specs=pl.BlockSpec((TM, E), lambda i: (i, 0)),
        ),
        compiler_params=pltpu.CompilerParams(
            dimension_semantics=("parallel",),
            vmem_limit_bytes=48 << 20),
    )(patches, w2d, b2d)
    return out[:M].reshape(B, NP, E)


# -----------------------------------------------------------------------------
# Public entry point.
# -----------------------------------------------------------------------------
_FUSED_STATE = {"failed": False, "validated": False}


def patch_embed(x, w2d, b2d, patch_size, out_dtype=None):
    """PatchEmbed forward: x (B, C, H, W) -> (B, num_patches, embed_dim)."""
    B, C, H, W = x.shape
    ph, pw = patch_size
    assert H % ph == 0 and W % pw == 0, "H/W must be divisible by patch_size"
    E = w2d.shape[1]
    assert w2d.shape[0] == C * ph * pw, "w2d does not match x / patch_size"
    out_dtype = jnp.dtype(x.dtype if out_dtype is None else out_dtype)

    plan = None
    if not _FUSED_STATE["failed"]:
        plan = _fused_plan(B, C, H, W, ph, pw, E,
                           x.dtype.itemsize, w2d.dtype.itemsize,
                           out_dtype.itemsize)
    if plan is not None:
        nb, _ = plan
        try:
            out = _patch_embed_fused(x, w2d, b2d, patch_size=(ph, pw),
                                     out_dtype_name=out_dtype.name, nb=nb)
            if not _FUSED_STATE["validated"]:
                jax.block_until_ready(out)   # surface lowering errors once
                _FUSED_STATE["validated"] = True
            return out
        except Exception:
            _FUSED_STATE["failed"] = True    # e.g. in-kernel transpose unsupported
    return _patch_embed_unfused(x, w2d, b2d, patch_size=(ph, pw),
                                out_dtype_name=out_dtype.name)


if __name__ == "__main__":
    # Small AST-flavoured shapes: 32-bin x 128-frame "spectrogram", 3 input
    # channels (module default in_chans), 16x16 patches, embed_dim = 128.
    B, C, H, W = 2, 3, 32, 128
    ph, pw = 16, 16
    E = 128

    key = jax.random.PRNGKey(0)
    kx, kw, kb = jax.random.split(key, 3)
    x = jax.random.normal(kx, (B, C, H, W), dtype=jnp.float32)
    fan_in = C * ph * pw
    weight = jax.random.normal(kw, (E, C, ph, pw), dtype=jnp.float32) / jnp.sqrt(fan_in)
    bias = jax.random.normal(kb, (E,), dtype=jnp.float32) * 0.01

    # Reference: the exact op the PyTorch module computes
    # (Conv2d with stride == kernel, then flatten(2).transpose(1, 2)).
    ref = jax.lax.conv_general_dilated(
        x, weight, window_strides=(ph, pw), padding="VALID",
        dimension_numbers=("NCHW", "OIHW", "NCHW"),
        precision=jax.lax.Precision.HIGHEST)
    ref = (ref + bias[None, :, None, None]).reshape(B, E, -1).transpose(0, 2, 1)

    NP = (H // ph) * (W // pw)

    # f32 path (tolerance covers the MXU's f32-via-bf16-pass decomposition).
    w2d, b2d = prepare_patch_embed_params(weight, bias)
    out = jax.block_until_ready(patch_embed(x, w2d, b2d, (ph, pw)))
    assert out.shape == (B, NP, E)
    assert jnp.allclose(out, ref, atol=2e-2, rtol=2e-2)

    # bf16 operands + bf16 output (valid on v5e as well as v6e/v7x).
    w2d_bf, b2d_bf = prepare_patch_embed_params(weight, bias, param_dtype=jnp.bfloat16)
    out_bf = jax.block_until_ready(
        patch_embed(x.astype(jnp.bfloat16), w2d_bf, b2d_bf, (ph, pw),
                    out_dtype=jnp.bfloat16))
    assert out_bf.shape == (B, NP, E)
    assert out_bf.dtype == jnp.bfloat16
    assert jnp.allclose(out_bf.astype(jnp.float32), ref, atol=1e-1, rtol=1e-1)

    print("KERNEL_OK")
</pallas_src>

<mosaic_0001>
module attributes {stable_mosaic.version = 11 : i64} {
  func.func @_fused_kernel(%arg0: i32, %arg1: memref<1x3x32x8x16xf32, #tpu.memory_space<vmem>>, %arg2: memref<768x128xf32, #tpu.memory_space<vmem>>, %arg3: memref<1x128xf32, #tpu.memory_space<vmem>>, %arg4: memref<1x16x128xf32, #tpu.memory_space<vmem>>) attributes {dimension_semantics = [#tpu.dimension_semantics<parallel>], iteration_bounds = array<i64: 2>, scalar_prefetch = 0 : i64, scratch_operands = 0 : i64, tpu.core_type = #tpu.core_type<tc>, window_params = [{transform_indices = @transform_0, window_bounds = array<i64: 1, 3, 32, 8, 16>}, {pipeline_mode = #tpu.pipeline_mode<synchronous>, transform_indices = @transform_1, window_bounds = array<i64: 768, 128>}, {pipeline_mode = #tpu.pipeline_mode<synchronous>, transform_indices = @transform_2, window_bounds = array<i64: 1, 128>}, {transform_indices = @transform_3, window_bounds = array<i64: 1, 16, 128>}]} {
    %c0 = arith.constant 0 : index
    %c0_0 = arith.constant 0 : index
    %0 = vector.load %arg2[%c0, %c0_0] : memref<768x128xf32, #tpu.memory_space<vmem>>, vector<768x128xf32>
    %c0_1 = arith.constant 0 : index
    %c0_2 = arith.constant 0 : index
    %1 = vector.load %arg3[%c0_1, %c0_2] : memref<1x128xf32, #tpu.memory_space<vmem>>, vector<1x128xf32>
    %c0_3 = arith.constant 0 : index
    %c0_4 = arith.constant 0 : index
    %c0_5 = arith.constant 0 : index
    %c0_6 = arith.constant 0 : index
    %c0_7 = arith.constant 0 : index
    %2 = vector.load %arg1[%c0_3, %c0_4, %c0_5, %c0_6, %c0_7] : memref<1x3x32x8x16xf32, #tpu.memory_space<vmem>>, vector<1x3x16x8x16xf32>
    %3 = vector.shape_cast %2 : vector<1x3x16x8x16xf32> to vector<3x16x8x16xf32>
    %4 = vector.shape_cast %3 : vector<3x16x8x16xf32> to vector<48x8x16xf32>
    %5 = tpu.transpose %4, [0, 2, 1] : vector<48x8x16xf32> -> vector<48x16x8xf32>
    %6 = vector.shape_cast %5 : vector<48x16x8xf32> to vector<768x8xf32>
    %cst = arith.constant dense<0.000000e+00> : vector<8x128xf32>
    %7 = tpu.matmul %6, %0, %cst {dimension_numbers = #tpu.dot_dimension_numbers<[0], [0], [1], [1], [0, 1, 1, 1], [], []>} : vector<768x8xf32>, vector<768x128xf32>, vector<8x128xf32> -> vector<8x128xf32>
    %8 = vector.broadcast %1 : vector<1x128xf32> to vector<8x128xf32>
    %9 = arith.addf %7, %8 : vector<8x128xf32>
    %c0_8 = arith.constant 0 : index
    %c0_9 = arith.constant 0 : index
    %c0_10 = arith.constant 0 : index
    %10 = vector.load %arg4[%c0_8, %c0_9, %c0_10] : memref<1x16x128xf32, #tpu.memory_space<vmem>>, vector<1x8x128xf32>
    %11 = vector.shape_cast %10 : vector<1x8x128xf32> to vector<8x128xf32>
    %12 = vector.shape_cast %9 : vector<8x128xf32> to vector<1x8x128xf32>
    tpu.vector_store %arg4[%c0_8, %c0_9, %c0_10], %12 {strides = array<i32>} : memref<1x16x128xf32, #tpu.memory_space<vmem>>, vector<1x8x128xf32>,
    %c0_11 = arith.constant 0 : index
    %c0_12 = arith.constant 0 : index
    %c16 = arith.constant 16 : index
    %c0_13 = arith.constant 0 : index
    %c0_14 = arith.constant 0 : index
    %13 = vector.load %arg1[%c0_11, %c0_12, %c16, %c0_13, %c0_14] : memref<1x3x32x8x16xf32, #tpu.memory_space<vmem>>, vector<1x3x16x8x16xf32>
    %14 = vector.shape_cast %13 : vector<1x3x16x8x16xf32> to vector<3x16x8x16xf32>
    %15 = vector.shape_cast %14 : vector<3x16x8x16xf32> to vector<48x8x16xf32>
    %16 = tpu.transpose %15, [0, 2, 1] : vector<48x8x16xf32> -> vector<48x16x8xf32>
    %17 = vector.shape_cast %16 : vector<48x16x8xf32> to vector<768x8xf32>
    %cst_15 = arith.constant dense<0.000000e+00> : vector<8x128xf32>
    %18 = tpu.matmul %17, %0, %cst_15 {dimension_numbers = #tpu.dot_dimension_numbers<[0], [0], [1], [1], [0, 1, 1, 1], [], []>} : vector<768x8xf32>, vector<768x128xf32>, vector<8x128xf32> -> vector<8x128xf32>
    %19 = vector.broadcast %1 : vector<1x128xf32> to vector<8x128xf32>
    %20 = arith.addf %18, %19 : vector<8x128xf32>
    %c0_16 = arith.constant 0 : index
    %c8 = arith.constant 8 : index
    %c0_17 = arith.constant 0 : index
    %21 = vector.load %arg4[%c0_16, %c8, %c0_17] : memref<1x16x128xf32, #tpu.memory_space<vmem>>, vector<1x8x128xf32>
    %22 = vector.shape_cast %21 : vector<1x8x128xf32> to vector<8x128xf32>
    %23 = vector.shape_cast %20 : vector<8x128xf32> to vector<1x8x128xf32>
    tpu.vector_store %arg4[%c0_16, %c8, %c0_17], %23 {strides = array<i32>} : memref<1x16x128xf32, #tpu.memory_space<vmem>>, vector<1x8x128xf32>,
    return
  }
  func.func @transform_0(%arg0: i32) -> (i32, i32, i32, i32, i32) {
    %c0_i32 = arith.constant 0 : i32
    %c0_i32_0 = arith.constant 0 : i32
    %c0_i32_1 = arith.constant 0 : i32
    %c0_i32_2 = arith.constant 0 : i32
    %c0_i32_3 = arith.constant 0 : i32
    return %arg0, %c0_i32, %c0_i32_0, %c0_i32_1, %c0_i32_2 : i32, i32, i32, i32, i32
  }
  func.func @transform_1(%arg0: i32) -> (i32, i32) {
    %c0_i32 = arith.constant 0 : i32
    %c0_i32_0 = arith.constant 0 : i32
    %c0_i32_1 = arith.constant 0 : i32
    return %c0_i32, %c0_i32_0 : i32, i32
  }
  func.func @transform_2(%arg0: i32) -> (i32, i32) {
    %c0_i32 = arith.constant 0 : i32
    %c0_i32_0 = arith.constant 0 : i32
    %c0_i32_1 = arith.constant 0 : i32
    return %c0_i32, %c0_i32_0 : i32, i32
  }
  func.func @transform_3(%arg0: i32) -> (i32, i32, i32) {
    %c0_i32 = arith.constant 0 : i32
    %c0_i32_0 = arith.constant 0 : i32
    %c0_i32_1 = arith.constant 0 : i32
    return %arg0, %c0_i32, %c0_i32_0 : i32, i32, i32
  }
}

module attributes {stable_mosaic.version = 11 : i64} {
  func.func @_matmul_kernel(%arg0: i32, %arg1: memref<32x768xf32, #tpu.memory_space<vmem>>, %arg2: memref<768x128xf32, #tpu.memory_space<vmem>>, %arg3: memref<1x128xf32, #tpu.memory_space<vmem>>, %arg4: memref<32x128xf32, #tpu.memory_space<vmem>>) attributes {dimension_semantics = [#tpu.dimension_semantics<parallel>], iteration_bounds = array<i64: 1>, scalar_prefetch = 0 : i64, scratch_operands = 0 : i64, tpu.core_type = #tpu.core_type<tc>, window_params = [{transform_indices = @transform_0, window_bounds = array<i64: 32, 768>}, {pipeline_mode = #tpu.pipeline_mode<synchronous>, transform_indices = @transform_1, window_bounds = array<i64: 768, 128>}, {pipeline_mode = #tpu.pipeline_mode<synchronous>, transform_indices = @transform_2, window_bounds = array<i64: 1, 128>}, {transform_indices = @transform_3, window_bounds = array<i64: 32, 128>}]} {
    %c0 = arith.constant 0 : index
    %c0_0 = arith.constant 0 : index
    %0 = vector.load %arg1[%c0, %c0_0] : memref<32x768xf32, #tpu.memory_space<vmem>>, vector<32x768xf32>
    %c0_1 = arith.constant 0 : index
    %c0_2 = arith.constant 0 : index
    %1 = vector.load %arg2[%c0_1, %c0_2] : memref<768x128xf32, #tpu.memory_space<vmem>>, vector<768x128xf32>
    %cst = arith.constant dense<0.000000e+00> : vector<32x128xf32>
    %2 = tpu.matmul %0, %1, %cst {dimension_numbers = #tpu.dot_dimension_numbers<[1], [0], [0], [1], [0, 0, 1, 1], [], []>} : vector<32x768xf32>, vector<768x128xf32>, vector<32x128xf32> -> vector<32x128xf32>
    %c0_3 = arith.constant 0 : index
    %c0_4 = arith.constant 0 : index
    %3 = vector.load %arg3[%c0_3, %c0_4] : memref<1x128xf32, #tpu.memory_space<vmem>>, vector<1x128xf32>
    %4 = vector.broadcast %3 : vector<1x128xf32> to vector<32x128xf32>
    %5 = arith.addf %2, %4 : vector<32x128xf32>
    %c0_5 = arith.constant 0 : index
    %c0_6 = arith.constant 0 : index
    %6 = vector.load %arg4[%c0_5, %c0_6] : memref<32x128xf32, #tpu.memory_space<vmem>>, vector<32x128xf32>
    tpu.vector_store %arg4[%c0_5, %c0_6], %5 {strides = array<i32>} : memref<32x128xf32, #tpu.memory_space<vmem>>, vector<32x128xf32>,
    return
  }
  func.func @transform_0(%arg0: i32) -> (i32, i32) {
    %c0_i32 = arith.constant 0 : i32
    %c0_i32_0 = arith.constant 0 : i32
    return %arg0, %c0_i32 : i32, i32
  }
  func.func @transform_1(%arg0: i32) -> (i32, i32) {
    %c0_i32 = arith.constant 0 : i32
    %c0_i32_0 = arith.constant 0 : i32
    %c0_i32_1 = arith.constant 0 : i32
    return %c0_i32, %c0_i32_0 : i32, i32
  }
  func.func @transform_2(%arg0: i32) -> (i32, i32) {
    %c0_i32 = arith.constant 0 : i32
    %c0_i32_0 = arith.constant 0 : i32
    %c0_i32_1 = arith.constant 0 : i32
    return %c0_i32, %c0_i32_0 : i32, i32
  }
  func.func @transform_3(%arg0: i32) -> (i32, i32) {
    %c0_i32 = arith.constant 0 : i32
    %c0_i32_0 = arith.constant 0 : i32
    return %arg0, %c0_i32 : i32, i32
  }
}

</mosaic_0001>

<llo_original>
// kernel: _patch_embed_fused.1
$region0: #{_patch_embed_fused.1}
  #allocation0 [shape = 'u32[]', space=smem, size = 0x4, offset = 0x4, fixed_abs, tag = 'smem constant byte address 0x4 - core index']
  #allocation1 [shape = 'u32[144,128]{1,0:T(1,128)}', space=vmem, size = 0x12000, scoped, tag = 'internal scratch']
  %s0 = inlined_call_operand.vmem [shape: f32[2,3,32,8,16], index: 0, kind: input, shape index: {}]
  %s1 = inlined_call_operand.vmem [shape: f32[768,128], index: 1, kind: input, shape index: {}]
  %s2 = inlined_call_operand.vmem [shape: f32[1,128], index: 2, kind: input, shape index: {}]
  %s3 = inlined_call_operand.hbm [shape: f32[2,16,128], index: 3, kind: output, shape index: {}]
  %s4 = sld [smem:[#allocation0]]
  $region45: #{_patch_embed_fused.1} parent=0
    _
  %s6 = ssub.s32 1, %s4
  %s7 = scalar_select 0, %s6, %s4
  $region1: #{_patch_embed_fused.1} parent=0
    #allocation2 [shape = 'u8[16384]{0}', space=vmem, size = 0x4000, scoped, tag = 'output window, operand 0']
    #allocation3 [shape = 's32[2]{0}', space=sflag, size = 0x8, scoped, tag = 'scoped memory for _patch_embed_fused.1']
    %8 = vsyncpa [#allocation3], 0
    %s9 = scalar_lea.sflag [#allocation3], 1
    %10 = vsyncpa %s9, 0
    loop: start=0, step=1, limit=4
    $region2: #{_patch_embed_fused.1} parent=1 // loop_pre_header
      _
    $region3: #{_patch_embed_fused.1} parent=1 // loop_header
      %s12 = sphi 0, %s16
      %p13 = scmp.ge.s32.totalorder %s12, 4
      %s22 = sphi 0, %s24
      %s25 = sphi 0, %s22
      %s26 = sphi 0, %s25
      %s42 = sphi 0, %s26
      %s46 = sphi 0, %s46
      %s48 = sphi 0, %s46
      %s49 = sphi 0, %s48
      %s63 = sphi 0, %s49
      %s67 = sphi 0, %s67
      %s69 = sphi 0, %s67
      %s70 = sphi 0, %s69
      %s84 = sphi 0, %s70
      %s90 = sphi 0, %s92
      %s93 = sphi 0, %s90
      %s94 = sphi 0, %s93
      %s110 = sphi 0, %s94
    $region4: #{_patch_embed_fused.1} parent=1 // loop_header_branch
      %15 = sbr.rel (%p13) target = $region8
    $region5: #{_patch_embed_fused.1} parent=1 // loop_body
      %s17 = ssub.s32 %s12, 1
      %s18 = ssub.s32 %s12, 2
      %s19 = sadd.s32 %s12, 1
      %s20 = ssub.s32 %s12, %s19
      %p21 = scmp.eq.s32.totalorder %s20, 0
      %s23 = sadd.s32 %s22, 1
      %s24 = scalar_select %p21, %s22, %s23
      %p27 = pneg %p21
      %p28 = scmp.eq.s32.totalorder %s12, 1
      %p29 = por %p27, %p28
      %p30 = scmp.ne.s32.totalorder %s22, %s25
      %p31 = scmp.eq.s32.totalorder %s12, 0
      %p32 = por %p30, %p31
      %p33 = scmp.ne.s32.totalorder %s22, %s25
      %p34 = scmp.eq.s32.totalorder %s17, 1
      %p35 = por %p33, %p34
      %p36 = scmp.ne.s32.totalorder %s25, %s26
      %p37 = scmp.eq.s32.totalorder %s17, 0
      %p38 = por %p36, %p37
      %p39 = scmp.ne.s32.totalorder %s25, %s26
      %p40 = scmp.eq.s32.totalorder %s18, 1
      %p41 = por %p39, %p40
      %p43 = scmp.ne.s32.totalorder %s26, %s42
      %p44 = scmp.eq.s32.totalorder %s18, 0
      %p45 = por %p43, %p44
      %s47 = sadd.s32 %s46, 1
      %p50 = scmp.eq.s32.totalorder %s12, 1
      %p51 = scmp.ne.s32.totalorder %s46, %s48
      %p52 = scmp.eq.s32.totalorder %s12, 0
      %p53 = por %p51, %p52
      %p54 = scmp.ne.s32.totalorder %s46, %s48
      %p55 = scmp.eq.s32.totalorder %s17, 1
      %p56 = por %p54, %p55
      %p57 = scmp.ne.s32.totalorder %s48, %s49
      %p58 = scmp.eq.s32.totalorder %s17, 0
      %p59 = por %p57, %p58
      %p60 = scmp.ne.s32.totalorder %s48, %s49
      %p61 = scmp.eq.s32.totalorder %s18, 1
      %p62 = por %p60, %p61
      %p64 = scmp.ne.s32.totalorder %s49, %s63
      %p65 = scmp.eq.s32.totalorder %s18, 0
      %p66 = por %p64, %p65
      %s68 = sadd.s32 %s67, 1
      %p71 = scmp.eq.s32.totalorder %s12, 1
      %p72 = scmp.ne.s32.totalorder %s67, %s69
      %p73 = scmp.eq.s32.totalorder %s12, 0
      %p74 = por %p72, %p73
      %p75 = scmp.ne.s32.totalorder %s67, %s69
      %p76 = scmp.eq.s32.totalorder %s17, 1
      %p77 = por %p75, %p76
      %p78 = scmp.ne.s32.totalorder %s69, %s70
      %p79 = scmp.eq.s32.totalorder %s17, 0
      %p80 = por %p78, %p79
      %p81 = scmp.ne.s32.totalorder %s69, %s70
      %p82 = scmp.eq.s32.totalorder %s18, 1
      %p83 = por %p81, %p82
      %p85 = scmp.ne.s32.totalorder %s70, %s84
      %p86 = scmp.eq.s32.totalorder %s18, 0
      %p87 = por %p85, %p86
      %s88 = ssub.s32 %s12, %s19
      %p89 = scmp.eq.s32.totalorder %s88, 0
      %s91 = sadd.s32 %s90, 1
      %s92 = scalar_select %p89, %s90, %s91
      %p95 = pneg %p89
      %p96 = scmp.eq.s32.totalorder %s12, 1
      %p97 = por %p95, %p96
      %p98 = scmp.ne.s32.totalorder %s90, %s93
      %p99 = scmp.eq.s32.totalorder %s12, 0
      %p100 = por %p98, %p99
      %p101 = scmp.ne.s32.totalorder %s90, %s93
      %p102 = scmp.eq.s32.totalorder %s17, 1
      %p103 = por %p101, %p102
      %p104 = scmp.ne.s32.totalorder %s93, %s94
      %p105 = scmp.eq.s32.totalorder %s17, 0
      %p106 = por %p104, %p105
      %p107 = scmp.ne.s32.totalorder %s93, %s94
      %p108 = scmp.eq.s32.totalorder %s18, 1
      %p109 = por %p107, %p108
      %p111 = scmp.ne.s32.totalorder %s94, %s110
      %p112 = scmp.eq.s32.totalorder %s18, 0
      %p113 = por %p111, %p112
      %p114 = scmp.le.s32.totalorder 1, %s12
      %p115 = scmp.lt.s32.totalorder %s12, 3
      %p116 = pnand %p114, %p115
      %p117 = pneg %p116
      // Predicated region
      $region9: #{_patch_embed_fused.1} parent=5 // pred_check
        _
      $region10: #{_patch_embed_fused.1} parent=5 // pred_check_branch
        %119 = sbr.rel (%p116) target = $region12
      $region11: #{_patch_embed_fused.1} parent=5 // pred_region
        %s120 = ssub.s32 %s12, 1
        // Predicated region
        $region13: #{_patch_embed_fused.1} parent=11 // pred_check
          %p121 = pneg %p59
        $region14: #{_patch_embed_fused.1} parent=11 // pred_check_branch
          %123 = sbr.rel (%p121) target = $region16
        $region15: #{_patch_embed_fused.1} parent=11 // pred_region
          _
        $region16: #{_patch_embed_fused.1} parent=11 // pred_fallthru
          _
        // Predicated region
        $region17: #{_patch_embed_fused.1} parent=11 // pred_check
          %p124 = pneg %p80
        $region18: #{_patch_embed_fused.1} parent=11 // pred_check_branch
          %126 = sbr.rel (%p124) target = $region20
        $region19: #{_patch_embed_fused.1} parent=11 // pred_region
          _
        $region20: #{_patch_embed_fused.1} parent=11 // pred_fallthru
          _
      $region12: #{_patch_embed_fused.1} parent=5 // pred_fallthru
        _
      %p127 = scmp.lt.s32.totalorder %s12, 2
      // Predicated region
      $region21: #{_patch_embed_fused.1} parent=5 // pred_check
        %p128 = pneg %p127
      $region22: #{_patch_embed_fused.1} parent=5 // pred_check_branch
        %130 = sbr.rel (%p128) target = $region24
      $region23: #{_patch_embed_fused.1} parent=5 // pred_region
        // Predicated region
        $region25: #{_patch_embed_fused.1} parent=23 // pred_check
          %p131 = pneg %p32
        $region26: #{_patch_embed_fused.1} parent=23 // pred_check_branch
          %133 = sbr.rel (%p131) target = $region28
        $region27: #{_patch_embed_fused.1} parent=23 // pred_region
          %p134 = scmp.lt.s32.totalorder %s12, 1
          %s135 = scalar_select %p134, %s12, 1
          %s136 = smul.addr %s135, 96
          %s137 = smul.addr %s136, 8
          %s138 = scalar_lea.vmem %s0, %s137
        $region28: #{_patch_embed_fused.1} parent=23 // pred_fallthru
          _
      $region24: #{_patch_embed_fused.1} parent=5 // pred_fallthru
        _
      %p139 = scmp.le.s32.totalorder 1, %s12
      %p140 = scmp.lt.s32.totalorder %s12, 3
      %p141 = pnand %p139, %p140
      %p142 = pneg %p141
      // Predicated region
      $region29: #{_patch_embed_fused.1} parent=5 // pred_check
        _
      $region30: #{_patch_embed_fused.1} parent=5 // pred_check_branch
        %144 = sbr.rel (%p141) target = $region32
      $region31: #{_patch_embed_fused.1} parent=5 // pred_region
        %s145 = ssub.s32 %s12, 1
        %p146 = scmp.lt.s32.totalorder %s17, 1
        %s147 = scalar_select %p146, %s17, 1
        %s148 = smul.addr %s147, 96
        %s149 = smul.addr %s148, 8
        %s150 = scalar_lea.vmem %s0, %s149
        %p151 = pneg %p38
        %p152 = pneg %p35
        %p153 = pneg %p59
        %p154 = pneg %p56
        %p155 = pneg %p80
        %p156 = pneg %p77
        %p157 = pneg %p106
        %p158 = pneg %p103
        %s159 = sand.u32 %s93, 1
        %s160 = scalar_lea.sflag [#allocation3], %s159
        %s161 = sand.u32 %s93, 1
        %s162 = smul.addr %s161, 16
        %s163 = scalar_lea.vmem [#allocation2], %s162
        %p164 = scmp.lt.s32.totalorder %s17, 1
        %s165 = scalar_select %p164, %s17, 1
        %s166 = smul.addr %s165, 96
        %s167 = smul.addr %s166, 8
        %s168 = scalar_lea.vmem %s0, %s167
        %v169 = vld [vmem:[%s1] sm:$0xff]
        %v170 = vld [vmem:[%s1 + $0x8] sm:$0xff]
        %v171 = vld [vmem:[%s1 + $0x10] sm:$0xff]
        %v172 = vld [vmem:[%s1 + $0x18] sm:$0xff]
        %v173 = vld [vmem:[%s1 + $0x20] sm:$0xff]
        %v174 = vld [vmem:[%s1 + $0x28] sm:$0xff]
        %v175 = vld [vmem:[%s1 + $0x30] sm:$0xff]
        %v176 = vld [vmem:[%s1 + $0x38] sm:$0xff]
        %v177 = vld [vmem:[%s1 + $0x40] sm:$0xff]
        %v178 = vld [vmem:[%s1 + $0x48] sm:$0xff]
        %v179 = vld [vmem:[%s1 + $0x50] sm:$0xff]
        %v180 = vld [vmem:[%s1 + $0x58] sm:$0xff]
        %v181 = vld [vmem:[%s1 + $0x60] sm:$0xff]
        %v182 = vld [vmem:[%s1 + $0x68] sm:$0xff]
        %v183 = vld [vmem:[%s1 + $0x70] sm:$0xff]
        %v184 = vld [vmem:[%s1 + $0x78] sm:$0xff]
        %v185 = vld [vmem:[%s1 + $0x80] sm:$0xff]
        %v186 = vld [vmem:[%s1 + $0x88] sm:$0xff]
        %v187 = vld [vmem:[%s1 + $0x90] sm:$0xff]
        %v188 = vld [vmem:[%s1 + $0x98] sm:$0xff]
        %v189 = vld [vmem:[%s1 + $0xa0] sm:$0xff]
        %v190 = vld [vmem:[%s1 + $0xa8] sm:$0xff]
        %v191 = vld [vmem:[%s1 + $0xb0] sm:$0xff]
        %v192 = vld [vmem:[%s1 + $0xb8] sm:$0xff]
        %v193 = vld [vmem:[%s1 + $0xc0] sm:$0xff]
        %v194 = vld [vmem:[%s1 + $0xc8] sm:$0xff]
        %v195 = vld [vmem:[%s1 + $0xd0] sm:$0xff]
        %v196 = vld [vmem:[%s1 + $0xd8] sm:$0xff]
        %v197 = vld [vmem:[%s1 + $0xe0] sm:$0xff]
        %v198 = vld [vmem:[%s1 + $0xe8] sm:$0xff]
        %v199 = vld [vmem:[%s1 + $0xf0] sm:$0xff]
        %v200 = vld [vmem:[%s1 + $0xf8] sm:$0xff]
        %v201 = vld [vmem:[%s1 + $0x100] sm:$0xff]
        %v202 = vld [vmem:[%s1 + $0x108] sm:$0xff]
        %v203 = vld [vmem:[%s1 + $0x110] sm:$0xff]
        %v204 = vld [vmem:[%s1 + $0x118] sm:$0xff]
        %v205 = vld [vmem:[%s1 + $0x120] sm:$0xff]
        %v206 = vld [vmem:[%s1 + $0x128] sm:$0xff]
        %v207 = vld [vmem:[%s1 + $0x130] sm:$0xff]
        %v208 = vld [vmem:[%s1 + $0x138] sm:$0xff]
        %v209 = vld [vmem:[%s1 + $0x140] sm:$0xff]
        %v210 = vld [vmem:[%s1 + $0x148] sm:$0xff]
        %v211 = vld [vmem:[%s1 + $0x150] sm:$0xff]
        %v212 = vld [vmem:[%s1 + $0x158] sm:$0xff]
        %v213 = vld [vmem:[%s1 + $0x160] sm:$0xff]
        %v214 = vld [vmem:[%s1 + $0x168] sm:$0xff]
        %v215 = vld [vmem:[%s1 + $0x170] sm:$0xff]
        %v216 = vld [vmem:[%s1 + $0x178] sm:$0xff]
        %v217 = vld [vmem:[%s1 + $0x180] sm:$0xff]
        %v218 = vld [vmem:[%s1 + $0x188] sm:$0xff]
        %v219 = vld [vmem:[%s1 + $0x190] sm:$0xff]
        %v220 = vld [vmem:[%s1 + $0x198] sm:$0xff]
        %v221 = vld [vmem:[%s1 + $0x1a0] sm:$0xff]
        %v222 = vld [vmem:[%s1 + $0x1a8] sm:$0xff]
        %v223 = vld [vmem:[%s1 + $0x1b0] sm:$0xff]
        %v224 = vld [vmem:[%s1 + $0x1b8] sm:$0xff]
        %v225 = vld [vmem:[%s1 + $0x1c0] sm:$0xff]
        %v226 = vld [vmem:[%s1 + $0x1c8] sm:$0xff]
        %v227 = vld [vmem:[%s1 + $0x1d0] sm:$0xff]
        %v228 = vld [vmem:[%s1 + $0x1d8] sm:$0xff]
        %v229 = vld [vmem:[%s1 + $0x1e0] sm:$0xff]
        %v230 = vld [vmem:[%s1 + $0x1e8] sm:$0xff]
        %v231 = vld [vmem:[%s1 + $0x1f0] sm:$0xff]
        %v232 = vld [vmem:[%s1 + $0x1f8] sm:$0xff]
        %v233 = vld [vmem:[%s1 + $0x200] sm:$0xff]
        %v234 = vld [vmem:[%s1 + $0x208] sm:$0xff]
        %v235 = vld [vmem:[%s1 + $0x210] sm:$0xff]
        %v236 = vld [vmem:[%s1 + $0x218] sm:$0xff]
        %v237 = vld [vmem:[%s1 + $0x220] sm:$0xff]
        %v238 = vld [vmem:[%s1 + $0x228] sm:$0xff]
        %v239 = vld [vmem:[%s1 + $0x230] sm:$0xff]
        %v240 = vld [vmem:[%s1 + $0x238] sm:$0xff]
        %v241 = vld [vmem:[%s1 + $0x240] sm:$0xff]
        %v242 = vld [vmem:[%s1 + $0x248] sm:$0xff]
        %v243 = vld [vmem:[%s1 + $0x250] sm:$0xff]
        %v244 = vld [vmem:[%s1 + $0x258] sm:$0xff]
        %v245 = vld [vmem:[%s1 + $0x260] sm:$0xff]
        %v246 = vld [vmem:[%s1 + $0x268] sm:$0xff]
        %v247 = vld [vmem:[%s1 + $0x270] sm:$0xff]
        %v248 = vld [vmem:[%s1 + $0x278] sm:$0xff]
        %v249 = vld [vmem:[%s1 + $0x280] sm:$0xff]
        %v250 = vld [vmem:[%s1 + $0x288] sm:$0xff]
        %v251 = vld [vmem:[%s1 + $0x290] sm:$0xff]
        %v252 = vld [vmem:[%s1 + $0x298] sm:$0xff]
        %v253 = vld [vmem:[%s1 + $0x2a0] sm:$0xff]
        %v254 = vld [vmem:[%s1 + $0x2a8] sm:$0xff]
        %v255 = vld [vmem:[%s1 + $0x2b0] sm:$0xff]
        %v256 = vld [vmem:[%s1 + $0x2b8] sm:$0xff]
        %v257 = vld [vmem:[%s1 + $0x2c0] sm:$0xff]
        %v258 = vld [vmem:[%s1 + $0x2c8] sm:$0xff]
        %v259 = vld [vmem:[%s1 + $0x2d0] sm:$0xff]
        %v260 = vld [vmem:[%s1 + $0x2d8] sm:$0xff]
        %v261 = vld [vmem:[%s1 + $0x2e0] sm:$0xff]
        %v262 = vld [vmem:[%s1 + $0x2e8] sm:$0xff]
        %v263 = vld [vmem:[%s1 + $0x2f0] sm:$0xff]
        %v264 = vld [vmem:[%s1 + $0x2f8] sm:$0xff]
        %v265 = vld [vmem:[%s2] sm:$0x1]
        %v266 = vld [vmem:[%s168] sm:$0xff]
        %v267 = vld [vmem:[%s168 + $0x8] sm:$0xff]
        %v268 = vld [vmem:[%s168 + $0x10] sm:$0xff]
        %v269 = vld [vmem:[%s168 + $0x18] sm:$0xff]
        %v270 = vld [vmem:[%s168 + $0x20] sm:$0xff]
        %v271 = vld [vmem:[%s168 + $0x28] sm:$0xff]
        %v272 = vld [vmem:[%s168 + $0x30] sm:$0xff]
        %v273 = vld [vmem:[%s168 + $0x38] sm:$0xff]
        %v274 = vld [vmem:[%s168 + $0x40] sm:$0xff]
        %v275 = vld [vmem:[%s168 + $0x48] sm:$0xff]
        %v276 = vld [vmem:[%s168 + $0x50] sm:$0xff]
        %v277 = vld [vmem:[%s168 + $0x58] sm:$0xff]
        %v278 = vld [vmem:[%s168 + $0x60] sm:$0xff]
        %v279 = vld [vmem:[%s168 + $0x68] sm:$0xff]
        %v280 = vld [vmem:[%s168 + $0x70] sm:$0xff]
        %v281 = vld [vmem:[%s168 + $0x78] sm:$0xff]
        %v282 = vld [vmem:[%s168 + $0x100] sm:$0xff]
        %v283 = vld [vmem:[%s168 + $0x108] sm:$0xff]
        %v284 = vld [vmem:[%s168 + $0x110] sm:$0xff]
        %v285 = vld [vmem:[%s168 + $0x118] sm:$0xff]
        %v286 = vld [vmem:[%s168 + $0x120] sm:$0xff]
        %v287 = vld [vmem:[%s168 + $0x128] sm:$0xff]
        %v288 = vld [vmem:[%s168 + $0x130] sm:$0xff]
        %v289 = vld [vmem:[%s168 + $0x138] sm:$0xff]
        %v290 = vld [vmem:[%s168 + $0x140] sm:$0xff]
        %v291 = vld [vmem:[%s168 + $0x148] sm:$0xff]
        %v292 = vld [vmem:[%s168 + $0x150] sm:$0xff]
        %v293 = vld [vmem:[%s168 + $0x158] sm:$0xff]
        %v294 = vld [vmem:[%s168 + $0x160] sm:$0xff]
        %v295 = vld [vmem:[%s168 + $0x168] sm:$0xff]
        %v296 = vld [vmem:[%s168 + $0x170] sm:$0xff]
        %v297 = vld [vmem:[%s168 + $0x178] sm:$0xff]
        %v298 = vld [vmem:[%s168 + $0x200] sm:$0xff]
        %v299 = vld [vmem:[%s168 + $0x208] sm:$0xff]
        %v300 = vld [vmem:[%s168 + $0x210] sm:$0xff]
        %v301 = vld [vmem:[%s168 + $0x218] sm:$0xff]
        %v302 = vld [vmem:[%s168 + $0x220] sm:$0xff]
        %v303 = vld [vmem:[%s168 + $0x228] sm:$0xff]
        %v304 = vld [vmem:[%s168 + $0x230] sm:$0xff]
        %v305 = vld [vmem:[%s168 + $0x238] sm:$0xff]
        %v306 = vld [vmem:[%s168 + $0x240] sm:$0xff]
        %v307 = vld [vmem:[%s168 + $0x248] sm:$0xff]
        %v308 = vld [vmem:[%s168 + $0x250] sm:$0xff]
        %v309 = vld [vmem:[%s168 + $0x258] sm:$0xff]
        %v310 = vld [vmem:[%s168 + $0x260] sm:$0xff]
        %v311 = vld [vmem:[%s168 + $0x268] sm:$0xff]
        %v312 = vld [vmem:[%s168 + $0x270] sm:$0xff]
        %v313 = vld [vmem:[%s168 + $0x278] sm:$0xff]
        %314 = vxpose.xlu0.b32.start [1/16] %v266, 128
        %315 = vxpose.xlu0.b32.cont [2/16] 0.0, 128
        %316 = vxpose.xlu0.b32.cont [3/16] 0.0, 128
        %317 = vxpose.xlu0.b32.cont [4/16] 0.0, 128
        %318 = vxpose.xlu0.b32.cont [5/16] 0.0, 128
        %319 = vxpose.xlu0.b32.cont [6/16] 0.0, 128
        %320 = vxpose.xlu0.b32.cont [7/16] 0.0, 128
        %321 = vxpose.xlu0.b32.cont [8/16] 0.0, 128
        %322 = vxpose.xlu0.b32.cont [9/16] 0.0, 128
        %323 = vxpose.xlu0.b32.cont [10/16] 0.0, 128
        %324 = vxpose.xlu0.b32.cont [11/16] 0.0, 128
        %325 = vxpose.xlu0.b32.cont [12/16] 0.0, 128
        %326 = vxpose.xlu0.b32.cont [13/16] 0.0, 128
        %327 = vxpose.xlu0.b32.cont [14/16] 0.0, 128
        %328 = vxpose.xlu0.b32.cont [15/16] 0.0, 128
        %329 = vxpose.xlu0.b32.end [16/16] 0.0, 128
        %v330 = vpop.trf.xlu0
        %v331 = vpop.trf.xlu0
        %v332 = vpop.trf.xlu0
        %v333 = vpop.trf.xlu0
        %v334 = vpop.trf.xlu0
        %v335 = vpop.trf.xlu0
        %v336 = vpop.trf.xlu0
        %v337 = vpop.trf.xlu0
        %v338 = vpop.trf.xlu0
        %v339 = vpop.trf.xlu0
        %v340 = vpop.trf.xlu0
        %v341 = vpop.trf.xlu0
        %v342 = vpop.trf.xlu0
        %v343 = vpop.trf.xlu0
        %v344 = vpop.trf.xlu0
        %v345 = vpop.trf.xlu0
        %346 = vxpose.xlu0.b32.start [1/16] %v267, 128
        %347 = vxpose.xlu0.b32.cont [2/16] 0.0, 128
        %348 = vxpose.xlu0.b32.cont [3/16] 0.0, 128
        %349 = vxpose.xlu0.b32.cont [4/16] 0.0, 128
        %350 = vxpose.xlu0.b32.cont [5/16] 0.0, 128
        %351 = vxpose.xlu0.b32.cont [6/16] 0.0, 128
        %352 = vxpose.xlu0.b32.cont [7/16] 0.0, 128
        %353 = vxpose.xlu0.b32.cont [8/16] 0.0, 128
        %354 = vxpose.xlu0.b32.cont [9/16] 0.0, 128
        %355 = vxpose.xlu0.b32.cont [10/16] 0.0, 128
        %356 = vxpose.xlu0.b32.cont [11/16] 0.0, 128
        %357 = vxpose.xlu0.b32.cont [12/16] 0.0, 128
        %358 = vxpose.xlu0.b32.cont [13/16] 0.0, 128
        %359 = vxpose.xlu0.b32.cont [14/16] 0.0, 128
        %360 = vxpose.xlu0.b32.cont [15/16] 0.0, 128
        %361 = vxpose.xlu0.b32.end [16/16] 0.0, 128
        %v362 = vpop.trf.xlu0
        %v363 = vpop.trf.xlu0
        %v364 = vpop.trf.xlu0
        %v365 = vpop.trf.xlu0
        %v366 = vpop.trf.xlu0
        %v367 = vpop.trf.xlu0
        %v368 = vpop.trf.xlu0
        %v369 = vpop.trf.xlu0
        %v370 = vpop.trf.xlu0
        %v371 = vpop.trf.xlu0
        %v372 = vpop.trf.xlu0
        %v373 = vpop.trf.xlu0
        %v374 = vpop.trf.xlu0
        %v375 = vpop.trf.xlu0
        %v376 = vpop.trf.xlu0
        %v377 = vpop.trf.xlu0
        %378 = vxpose.xlu0.b32.start [1/16] %v268, 128
        %379 = vxpose.xlu0.b32.cont [2/16] 0.0, 128
        %380 = vxpose.xlu0.b32.cont [3/16] 0.0, 128
        %381 = vxpose.xlu0.b32.cont [4/16] 0.0, 128
        %382 = vxpose.xlu0.b32.cont [5/16] 0.0, 128
        %383 = vxpose.xlu0.b32.cont [6/16] 0.0, 128
        %384 = vxpose.xlu0.b32.cont [7/16] 0.0, 128
        %385 = vxpose.xlu0.b32.cont [8/16] 0.0, 128
        %386 = vxpose.xlu0.b32.cont [9/16] 0.0, 128
        %387 = vxpose.xlu0.b32.cont [10/16] 0.0, 128
        %388 = vxpose.xlu0.b32.cont [11/16] 0.0, 128
        %389 = vxpose.xlu0.b32.cont [12/16] 0.0, 128
        %390 = vxpose.xlu0.b32.cont [13/16] 0.0, 128
        %391 = vxpose.xlu0.b32.cont [14/16] 0.0, 128
        %392 = vxpose.xlu0.b32.cont [15/16] 0.0, 128
        %393 = vxpose.xlu0.b32.end [16/16] 0.0, 128
        %v394 = vpop.trf.xlu0
        %v395 = vpop.trf.xlu0
        %v396 = vpop.trf.xlu0
        %v397 = vpop.trf.xlu0
        %v398 = vpop.trf.xlu0
        %v399 = vpop.trf.xlu0
        %v400 = vpop.trf.xlu0
        %v401 = vpop.trf.xlu0
        %v402 = vpop.trf.xlu0
        %v403 = vpop.trf.xlu0
        %v404 = vpop.trf.xlu0
        %v405 = vpop.trf.xlu0
        %v406 = vpop.trf.xlu0
        %v407 = vpop.trf.xlu0
        %v408 = vpop.trf.xlu0
        %v409 = vpop.trf.xlu0
        %410 = vxpose.xlu0.b32.start [1/16] %v269, 128
        %411 = vxpose.xlu0.b32.cont [2/16] 0.0, 128
        %412 = vxpose.xlu0.b32.cont [3/16] 0.0, 128
        %413 = vxpose.xlu0.b32.cont [4/16] 0.0, 128
        %414 = vxpose.xlu0.b32.cont [5/16] 0.0, 128
        %415 = vxpose.xlu0.b32.cont [6/16] 0.0, 128
        %416 = vxpose.xlu0.b32.cont [7/16] 0.0, 128
        %417 = vxpose.xlu0.b32.cont [8/16] 0.0, 128
        %418 = vxpose.xlu0.b32.cont [9/16] 0.0, 128
        %419 = vxpose.xlu0.b32.cont [10/16] 0.0, 128
        %420 = vxpose.xlu0.b32.cont [11/16] 0.0, 128
        %421 = vxpose.xlu0.b32.cont [12/16] 0.0, 128
        %422 = vxpose.xlu0.b32.cont [13/16] 0.0, 128
        %423 = vxpose.xlu0.b32.cont [14/16] 0.0, 128
        %424 = vxpose.xlu0.b32.cont [15/16] 0.0, 128
        %425 = vxpose.xlu0.b32.end [16/16] 0.0, 128
        %v426 = vpop.trf.xlu0
        %v427 = vpop.trf.xlu0
        %v428 = vpop.trf.xlu0
        %v429 = vpop.trf.xlu0
        %v430 = vpop.trf.xlu0
        %v431 = vpop.trf.xlu0
        %v432 = vpop.trf.xlu0
        %v433 = vpop.trf.xlu0
        %v434 = vpop.trf.xlu0
        %v435 = vpop.trf.xlu0
        %v436 = vpop.trf.xlu0
        %v437 = vpop.trf.xlu0
        %v438 = vpop.trf.xlu0
        %v439 = vpop.trf.xlu0
        %v440 = vpop.trf.xlu0
        %v441 = vpop.trf.xlu0
        %442 = vxpose.xlu0.b32.start [1/16] %v270, 128
        %443 = vxpose.xlu0.b32.cont [2/16] 0.0, 128
        %444 = vxpose.xlu0.b32.cont [3/16] 0.0, 128
        %445 = vxpose.xlu0.b32.cont [4/16] 0.0, 128
        %446 = vxpose.xlu0.b32.cont [5/16] 0.0, 128
        %447 = vxpose.xlu0.b32.cont [6/16] 0.0, 128
        %448 = vxpose.xlu0.b32.cont [7/16] 0.0, 128
        %449 = vxpose.xlu0.b32.cont [8/16] 0.0, 128
        %450 = vxpose.xlu0.b32.cont [9/16] 0.0, 128
        %451 = vxpose.xlu0.b32.cont [10/16] 0.0, 128
        %452 = vxpose.xlu0.b32.cont [11/16] 0.0, 128
        %453 = vxpose.xlu0.b32.cont [12/16] 0.0, 128
        %454 = vxpose.xlu0.b32.cont [13/16] 0.0, 128
        %455 = vxpose.xlu0.b32.cont [14/16] 0.0, 128
        %456 = vxpose.xlu0.b32.cont [15/16] 0.0, 128
        %457 = vxpose.xlu0.b32.end [16/16] 0.0, 128
        %v458 = vpop.trf.xlu0
        %v459 = vpop.trf.xlu0
        %v460 = vpop.trf.xlu0
        %v461 = vpop.trf.xlu0
        %v462 = vpop.trf.xlu0
        %v463 = vpop.trf.xlu0
        %v464 = vpop.trf.xlu0
        %v465 = vpop.trf.xlu0
        %v466 = vpop.trf.xlu0
        %v467 = vpop.trf.xlu0
        %v468 = vpop.trf.xlu0
        %v469 = vpop.trf.xlu0
        %v470 = vpop.trf.xlu0
        %v471 = vpop.trf.xlu0
        %v472 = vpop.trf.xlu0
        %v473 = vpop.trf.xlu0
        %474 = vxpose.xlu0.b32.start [1/16] %v271, 128
        %475 = vxpose.xlu0.b32.cont [2/16] 0.0, 128
        %476 = vxpose.xlu0.b32.cont [3/16] 0.0, 128
        %477 = vxpose.xlu0.b32.cont [4/16] 0.0, 128
        %478 = vxpose.xlu0.b32.cont [5/16] 0.0, 128
        %479 = vxpose.xlu0.b32.cont [6/16] 0.0, 128
        %480 = vxpose.xlu0.b32.cont [7/16] 0.0, 128
        %481 = vxpose.xlu0.b32.cont [8/16] 0.0, 128
        %482 = vxpose.xlu0.b32.cont [9/16] 0.0, 128
        %483 = vxpose.xlu0.b32.cont [10/16] 0.0, 128
        %484 = vxpose.xlu0.b32.cont [11/16] 0.0, 128
        %485 = vxpose.xlu0.b32.cont [12/16] 0.0, 128
        %486 = vxpose.xlu0.b32.cont [13/16] 0.0, 128
        %487 = vxpose.xlu0.b32.cont [14/16] 0.0, 128
        %488 = vxpose.xlu0.b32.cont [15/16] 0.0, 128
        %489 = vxpose.xlu0.b32.end [16/16] 0.0, 128
        %v490 = vpop.trf.xlu0
        %v491 = vpop.trf.xlu0
        %v492 = vpop.trf.xlu0
        %v493 = vpop.trf.xlu0
        %v494 = vpop.trf.xlu0
        %v495 = vpop.trf.xlu0
        %v496 = vpop.trf.xlu0
        %v497 = vpop.trf.xlu0
        %v498 = vpop.trf.xlu0
        %v499 = vpop.trf.xlu0
        %v500 = vpop.trf.xlu0
        %v501 = vpop.trf.xlu0
        %v502 = vpop.trf.xlu0
        %v503 = vpop.trf.xlu0
        %v504 = vpop.trf.xlu0
        %v505 = vpop.trf.xlu0
        %506 = vxpose.xlu0.b32.start [1/16] %v272, 128
        %507 = vxpose.xlu0.b32.cont [2/16] 0.0, 128
        %508 = vxpose.xlu0.b32.cont [3/16] 0.0, 128
        %509 = vxpose.xlu0.b32.cont [4/16] 0.0, 128
        %510 = vxpose.xlu0.b32.cont [5/16] 0.0, 128
        %511 = vxpose.xlu0.b32.cont [6/16] 0.0, 128
        %512 = vxpose.xlu0.b32.cont [7/16] 0.0, 128
        %513 = vxpose.xlu0.b32.cont [8/16] 0.0, 128
        %514 = vxpose.xlu0.b32.cont [9/16] 0.0, 128
        %515 = vxpose.xlu0.b32.cont [10/16] 0.0, 128
        %516 = vxpose.xlu0.b32.cont [11/16] 0.0, 128
        %517 = vxpose.xlu0.b32.cont [12/16] 0.0, 128
        %518 = vxpose.xlu0.b32.cont [13/16] 0.0, 128
        %519 = vxpose.xlu0.b32.cont [14/16] 0.0, 128
        %520 = vxpose.xlu0.b32.cont [15/16] 0.0, 128
        %521 = vxpose.xlu0.b32.end [16/16] 0.0, 128
        %v522 = vpop.trf.xlu0
        %v523 = vpop.trf.xlu0
        %v524 = vpop.trf.xlu0
        %v525 = vpop.trf.xlu0
        %v526 = vpop.trf.xlu0
        %v527 = vpop.trf.xlu0
        %v528 = vpop.trf.xlu0
        %v529 = vpop.trf.xlu0
        %v530 = vpop.trf.xlu0
        %v531 = vpop.trf.xlu0
        %v532 = vpop.trf.xlu0
        %v533 = vpop.trf.xlu0
        %v534 = vpop.trf.xlu0
        %v535 = vpop.trf.xlu0
        %v536 = vpop.trf.xlu0
        %v537 = vpop.trf.xlu0
        %538 = vxpose.xlu0.b32.start [1/16] %v273, 128
        %539 = vxpose.xlu0.b32.cont [2/16] 0.0, 128
        %540 = vxpose.xlu0.b32.cont [3/16] 0.0, 128
        %541 = vxpose.xlu0.b32.cont [4/16] 0.0, 128
        %542 = vxpose.xlu0.b32.cont [5/16] 0.0, 128
        %543 = vxpose.xlu0.b32.cont [6/16] 0.0, 128
        %544 = vxpose.xlu0.b32.cont [7/16] 0.0, 128
        %545 = vxpose.xlu0.b32.cont [8/16] 0.0, 128
        %546 = vxpose.xlu0.b32.cont [9/16] 0.0, 128
        %547 = vxpose.xlu0.b32.cont [10/16] 0.0, 128
        %548 = vxpose.xlu0.b32.cont [11/16] 0.0, 128
        %549 = vxpose.xlu0.b32.cont [12/16] 0.0, 128
        %550 = vxpose.xlu0.b32.cont [13/16] 0.0, 128
        %551 = vxpose.xlu0.b32.cont [14/16] 0.0, 128
        %552 = vxpose.xlu0.b32.cont [15/16] 0.0, 128
        %553 = vxpose.xlu0.b32.end [16/16] 0.0, 128
        %v554 = vpop.trf.xlu0
        %v555 = vpop.trf.xlu0
        %v556 = vpop.trf.xlu0
        %v557 = vpop.trf.xlu0
        %v558 = vpop.trf.xlu0
        %v559 = vpop.trf.xlu0
        %v560 = vpop.trf.xlu0
        %v561 = vpop.trf.xlu0
        %v562 = vpop.trf.xlu0
        %v563 = vpop.trf.xlu0
        %v564 = vpop.trf.xlu0
        %v565 = vpop.trf.xlu0
        %v566 = vpop.trf.xlu0
        %v567 = vpop.trf.xlu0
        %v568 = vpop.trf.xlu0
        %v569 = vpop.trf.xlu0
        %570 = vxpose.xlu0.b32.start [1/16] %v274, 128
        %571 = vxpose.xlu0.b32.cont [2/16] 0.0, 128
        %572 = vxpose.xlu0.b32.cont [3/16] 0.0, 128
        %573 = vxpose.xlu0.b32.cont [4/16] 0.0, 128
        %574 = vxpose.xlu0.b32.cont [5/16] 0.0, 128
        %575 = vxpose.xlu0.b32.cont [6/16] 0.0, 128
        %576 = vxpose.xlu0.b32.cont [7/16] 0.0, 128
        %577 = vxpose.xlu0.b32.cont [8/16] 0.0, 128
        %578 = vxpose.xlu0.b32.cont [9/16] 0.0, 128
        %579 = vxpose.xlu0.b32.cont [10/16] 0.0, 128
        %580 = vxpose.xlu0.b32.cont [11/16] 0.0, 128
        %581 = vxpose.xlu0.b32.cont [12/16] 0.0, 128
        %582 = vxpose.xlu0.b32.cont [13/16] 0.0, 128
        %583 = vxpose.xlu0.b32.cont [14/16] 0.0, 128
        %584 = vxpose.xlu0.b32.cont [15/16] 0.0, 128
        %585 = vxpose.xlu0.b32.end [16/16] 0.0, 128
        %v586 = vpop.trf.xlu0
        %v587 = vpop.trf.xlu0
        %v588 = vpop.trf.xlu0
        %v589 = vpop.trf.xlu0
        %v590 = vpop.trf.xlu0
        %v591 = vpop.trf.xlu0
        %v592 = vpop.trf.xlu0
        %v593 = vpop.trf.xlu0
        %v594 = vpop.trf.xlu0
        %v595 = vpop.trf.xlu0
        %v596 = vpop.trf.xlu0
        %v597 = vpop.trf.xlu0
        %v598 = vpop.trf.xlu0
        %v599 = vpop.trf.xlu0
        %v600 = vpop.trf.xlu0
        %v601 = vpop.trf.xlu0
        %602 = vxpose.xlu0.b32.start [1/16] %v275, 128
        %603 = vxpose.xlu0.b32.cont [2/16] 0.0, 128
        %604 = vxpose.xlu0.b32.cont [3/16] 0.0, 128
        %605 = vxpose.xlu0.b32.cont [4/16] 0.0, 128
        %606 = vxpose.xlu0.b32.cont [5/16] 0.0, 128
        %607 = vxpose.xlu0.b32.cont [6/16] 0.0, 128
        %608 = vxpose.xlu0.b32.cont [7/16] 0.0, 128
        %609 = vxpose.xlu0.b32.cont [8/16] 0.0, 128
        %610 = vxpose.xlu0.b32.cont [9/16] 0.0, 128
        %611 = vxpose.xlu0.b32.cont [10/16] 0.0, 128
        %612 = vxpose.xlu0.b32.cont [11/16] 0.0, 128
        %613 = vxpose.xlu0.b32.cont [12/16] 0.0, 128
        %614 = vxpose.xlu0.b32.cont [13/16] 0.0, 128
        %615 = vxpose.xlu0.b32.cont [14/16] 0.0, 128
        %616 = vxpose.xlu0.b32.cont [15/16] 0.0, 128
        %617 = vxpose.xlu0.b32.end [16/16] 0.0, 128
        %v618 = vpop.trf.xlu0
        %v619 = vpop.trf.xlu0
        %v620 = vpop.trf.xlu0
        %v621 = vpop.trf.xlu0
        %v622 = vpop.trf.xlu0
        %v623 = vpop.trf.xlu0
        %v624 = vpop.trf.xlu0
        %v625 = vpop.trf.xlu0
        %v626 = vpop.trf.xlu0
        %v627 = vpop.trf.xlu0
        %v628 = vpop.trf.xlu0
        %v629 = vpop.trf.xlu0
        %v630 = vpop.trf.xlu0
        %v631 = vpop.trf.xlu0
        %v632 = vpop.trf.xlu0
        %v633 = vpop.trf.xlu0
        %634 = vxpose.xlu0.b32.start [1/16] %v276, 128
        %635 = vxpose.xlu0.b32.cont [2/16] 0.0, 128
        %636 = vxpose.xlu0.b32.cont [3/16] 0.0, 128
        %637 = vxpose.xlu0.b32.cont [4/16] 0.0, 128
        %638 = vxpose.xlu0.b32.cont [5/16] 0.0, 128
        %639 = vxpose.xlu0.b32.cont [6/16] 0.0, 128
        %640 = vxpose.xlu0.b32.cont [7/16] 0.0, 128
        %641 = vxpose.xlu0.b32.cont [8/16] 0.0, 128
        %642 = vxpose.xlu0.b32.cont [9/16] 0.0, 128
        %643 = vxpose.xlu0.b32.cont [10/16] 0.0, 128
        %644 = vxpose.xlu0.b32.cont [11/16] 0.0, 128
        %645 = vxpose.xlu0.b32.cont [12/16] 0.0, 128
        %646 = vxpose.xlu0.b32.cont [13/16] 0.0, 128
        %647 = vxpose.xlu0.b32.cont [14/16] 0.0, 128
        %648 = vxpose.xlu0.b32.cont [15/16] 0.0, 128
        %649 = vxpose.xlu0.b32.end [16/16] 0.0, 128
        %v650 = vpop.trf.xlu0
        %v651 = vpop.trf.xlu0
        %v652 = vpop.trf.xlu0
        %v653 = vpop.trf.xlu0
        %v654 = vpop.trf.xlu0
        %v655 = vpop.trf.xlu0
        %v656 = vpop.trf.xlu0
        %v657 = vpop.trf.xlu0
        %v658 = vpop.trf.xlu0
        %v659 = vpop.trf.xlu0
        %v660 = vpop.trf.xlu0
        %v661 = vpop.trf.xlu0
        %v662 = vpop.trf.xlu0
        %v663 = vpop.trf.xlu0
        %v664 = vpop.trf.xlu0
        %v665 = vpop.trf.xlu0
        %666 = vxpose.xlu0.b32.start [1/16] %v277, 128
        %667 = vxpose.xlu0.b32.cont [2/16] 0.0, 128
        %668 = vxpose.xlu0.b32.cont [3/16] 0.0, 128
        %669 = vxpose.xlu0.b32.cont [4/16] 0.0, 128
        %670 = vxpose.xlu0.b32.cont [5/16] 0.0, 128
        %671 = vxpose.xlu0.b32.cont [6/16] 0.0, 128
        %672 = vxpose.xlu0.b32.cont [7/16] 0.0, 128
        %673 = vxpose.xlu0.b32.cont [8/16] 0.0, 128
        %674 = vxpose.xlu0.b32.cont [9/16] 0.0, 128
        %675 = vxpose.xlu0.b32.cont [10/16] 0.0, 128
        %676 = vxpose.xlu0.b32.cont [11/16] 0.0, 128
        %677 = vxpose.xlu0.b32.cont [12/16] 0.0, 128
        %678 = vxpose.xlu0.b32.cont [13/16] 0.0, 128
        %679 = vxpose.xlu0.b32.cont [14/16] 0.0, 128
        %680 = vxpose.xlu0.b32.cont [15/16] 0.0, 128
        %681 = vxpose.xlu0.b32.end [16/16] 0.0, 128
        %v682 = vpop.trf.xlu0
        %v683 = vpop.trf.xlu0
        %v684 = vpop.trf.xlu0
        %v685 = vpop.trf.xlu0
        %v686 = vpop.trf.xlu0
        %v687 = vpop.trf.xlu0
        %v688 = vpop.trf.xlu0
        %v689 = vpop.trf.xlu0
        %v690 = vpop.trf.xlu0
        %v691 = vpop.trf.xlu0
        %v692 = vpop.trf.xlu0
        %v693 = vpop.trf.xlu0
        %v694 = vpop.trf.xlu0
        %v695 = vpop.trf.xlu0
        %v696 = vpop.trf.xlu0
        %v697 = vpop.trf.xlu0
        %698 = vxpose.xlu0.b32.start [1/16] %v278, 128
        %699 = vxpose.xlu0.b32.cont [2/16] 0.0, 128
        %700 = vxpose.xlu0.b32.cont [3/16] 0.0, 128
        %701 = vxpose.xlu0.b32.cont [4/16] 0.0, 128
        %702 = vxpose.xlu0.b32.cont [5/16] 0.0, 128
        %703 = vxpose.xlu0.b32.cont [6/16] 0.0, 128
        %704 = vxpose.xlu0.b32.cont [7/16] 0.0, 128
        %705 = vxpose.xlu0.b32.cont [8/16] 0.0, 128
        %706 = vxpose.xlu0.b32.cont [9/16] 0.0, 128
        %707 = vxpose.xlu0.b32.cont [10/16] 0.0, 128
        %708 = vxpose.xlu0.b32.cont [11/16] 0.0, 128
        %709 = vxpose.xlu0.b32.cont [12/16] 0.0, 128
        %710 = vxpose.xlu0.b32.cont [13/16] 0.0, 128
        %711 = vxpose.xlu0.b32.cont [14/16] 0.0, 128
        %712 = vxpose.xlu0.b32.cont [15/16] 0.0, 128
        %713 = vxpose.xlu0.b32.end [16/16] 0.0, 128
        %v714 = vpop.trf.xlu0
        %v715 = vpop.trf.xlu0
        %v716 = vpop.trf.xlu0
        %v717 = vpop.trf.xlu0
        %v718 = vpop.trf.xlu0
        %v719 = vpop.trf.xlu0
        %v720 = vpop.trf.xlu0
        %v721 = vpop.trf.xlu0
        %v722 = vpop.trf.xlu0
        %v723 = vpop.trf.xlu0
        %v724 = vpop.trf.xlu0
        %v725 = vpop.trf.xlu0
        %v726 = vpop.trf.xlu0
        %v727 = vpop.trf.xlu0
        %v728 = vpop.trf.xlu0
        %v729 = vpop.trf.xlu0
        %730 = vxpose.xlu0.b32.start [1/16] %v279, 128
        %731 = vxpose.xlu0.b32.cont [2/16] 0.0, 128
        %732 = vxpose.xlu0.b32.cont [3/16] 0.0, 128
        %733 = vxpose.xlu0.b32.cont [4/16] 0.0, 128
        %734 = vxpose.xlu0.b32.cont [5/16] 0.0, 128
        %735 = vxpose.xlu0.b32.cont [6/16] 0.0, 128
        %736 = vxpose.xlu0.b32.cont [7/16] 0.0, 128
        %737 = vxpose.xlu0.b32.cont [8/16] 0.0, 128
        %738 = vxpose.xlu0.b32.cont [9/16] 0.0, 128
        %739 = vxpose.xlu0.b32.cont [10/16] 0.0, 128
        %740 = vxpose.xlu0.b32.cont [11/16] 0.0, 128
        %741 = vxpose.xlu0.b32.cont [12/16] 0.0, 128
        %742 = vxpose.xlu0.b32.cont [13/16] 0.0, 128
        %743 = vxpose.xlu0.b32.cont [14/16] 0.0, 128
        %744 = vxpose.xlu0.b32.cont [15/16] 0.0, 128
        %745 = vxpose.xlu0.b32.end [16/16] 0.0, 128
        %v746 = vpop.trf.xlu0
        %v747 = vpop.trf.xlu0
        %v748 = vpop.trf.xlu0
        %v749 = vpop.trf.xlu0
        %v750 = vpop.trf.xlu0
        %v751 = vpop.trf.xlu0
        %v752 = vpop.trf.xlu0
        %v753 = vpop.trf.xlu0
        %v754 = vpop.trf.xlu0
        %v755 = vpop.trf.xlu0
        %v756 = vpop.trf.xlu0
        %v757 = vpop.trf.xlu0
        %v758 = vpop.trf.xlu0
        %v759 = vpop.trf.xlu0
        %v760 = vpop.trf.xlu0
        %v761 = vpop.trf.xlu0
        %762 = vxpose.xlu0.b32.start [1/16] %v280, 128
        %763 = vxpose.xlu0.b32.cont [2/16] 0.0, 128
        %764 = vxpose.xlu0.b32.cont [3/16] 0.0, 128
        %765 = vxpose.xlu0.b32.cont [4/16] 0.0, 128
        %766 = vxpose.xlu0.b32.cont [5/16] 0.0, 128
        %767 = vxpose.xlu0.b32.cont [6/16] 0.0, 128
        %768 = vxpose.xlu0.b32.cont [7/16] 0.0, 128
        %769 = vxpose.xlu0.b32.cont [8/16] 0.0, 128
        %770 = vxpose.xlu0.b32.cont [9/16] 0.0, 128
        %771 = vxpose.xlu0.b32.cont [10/16] 0.0, 128
        %772 = vxpose.xlu0.b32.cont [11/16] 0.0, 128
        %773 = vxpose.xlu0.b32.cont [12/16] 0.0, 128
        %774 = vxpose.xlu0.b32.cont [13/16] 0.0, 128
        %775 = vxpose.xlu0.b32.cont [14/16] 0.0, 128
        %776 = vxpose.xlu0.b32.cont [15/16] 0.0, 128
        %777 = vxpose.xlu0.b32.end [16/16] 0.0, 128
        %v778 = vpop.trf.xlu0
        %v779 = vpop.trf.xlu0
        %v780 = vpop.trf.xlu0
        %v781 = vpop.trf.xlu0
        %v782 = vpop.trf.xlu0
        %v783 = vpop.trf.xlu0
        %v784 = vpop.trf.xlu0
        %v785 = vpop.trf.xlu0
        %v786 = vpop.trf.xlu0
        %v787 = vpop.trf.xlu0
        %v788 = vpop.trf.xlu0
        %v789 = vpop.trf.xlu0
        %v790 = vpop.trf.xlu0
        %v791 = vpop.trf.xlu0
        %v792 = vpop.trf.xlu0
        %v793 = vpop.trf.xlu0
        %794 = vxpose.xlu0.b32.start [1/16] %v281, 128
        %795 = vxpose.xlu0.b32.cont [2/16] 0.0, 128
        %796 = vxpose.xlu0.b32.cont [3/16] 0.0, 128
        %797 = vxpose.xlu0.b32.cont [4/16] 0.0, 128
        %798 = vxpose.xlu0.b32.cont [5/16] 0.0, 128
        %799 = vxpose.xlu0.b32.cont [6/16] 0.0, 128
        %800 = vxpose.xlu0.b32.cont [7/16] 0.0, 128
        %801 = vxpose.xlu0.b32.cont [8/16] 0.0, 128
        %802 = vxpose.xlu0.b32.cont [9/16] 0.0, 128
        %803 = vxpose.xlu0.b32.cont [10/16] 0.0, 128
        %804 = vxpose.xlu0.b32.cont [11/16] 0.0, 128
        %805 = vxpose.xlu0.b32.cont [12/16] 0.0, 128
        %806 = vxpose.xlu0.b32.cont [13/16] 0.0, 128
        %807 = vxpose.xlu0.b32.cont [14/16] 0.0, 128
        %808 = vxpose.xlu0.b32.cont [15/16] 0.0, 128
        %809 = vxpose.xlu0.b32.end [16/16] 0.0, 128
        %v810 = vpop.trf.xlu0
        %v811 = vpop.trf.xlu0
        %v812 = vpop.trf.xlu0
        %v813 = vpop.trf.xlu0
        %v814 = vpop.trf.xlu0
        %v815 = vpop.trf.xlu0
        %v816 = vpop.trf.xlu0
        %v817 = vpop.trf.xlu0
        %v818 = vpop.trf.xlu0
        %v819 = vpop.trf.xlu0
        %v820 = vpop.trf.xlu0
        %v821 = vpop.trf.xlu0
        %v822 = vpop.trf.xlu0
        %v823 = vpop.trf.xlu0
        %v824 = vpop.trf.xlu0
        %v825 = vpop.trf.xlu0
        %826 = vxpose.xlu0.b32.start [1/16] %v282, 128
        %827 = vxpose.xlu0.b32.cont [2/16] 0.0, 128
        %828 = vxpose.xlu0.b32.cont [3/16] 0.0, 128
        %829 = vxpose.xlu0.b32.cont [4/16] 0.0, 128
        %830 = vxpose.xlu0.b32.cont [5/16] 0.0, 128
        %831 = vxpose.xlu0.b32.cont [6/16] 0.0, 128
        %832 = vxpose.xlu0.b32.cont [7/16] 0.0, 128
        %833 = vxpose.xlu0.b32.cont [8/16] 0.0, 128
        %834 = vxpose.xlu0.b32.cont [9/16] 0.0, 128
        %835 = vxpose.xlu0.b32.cont [10/16] 0.0, 128
        %836 = vxpose.xlu0.b32.cont [11/16] 0.0, 128
        %837 = vxpose.xlu0.b32.cont [12/16] 0.0, 128
        %838 = vxpose.xlu0.b32.cont [13/16] 0.0, 128
        %839 = vxpose.xlu0.b32.cont [14/16] 0.0, 128
        %840 = vxpose.xlu0.b32.cont [15/16] 0.0, 128
        %841 = vxpose.xlu0.b32.end [16/16] 0.0, 128
        %v842 = vpop.trf.xlu0
        %v843 = vpop.trf.xlu0
        %v844 = vpop.trf.xlu0
        %v845 = vpop.trf.xlu0
        %v846 = vpop.trf.xlu0
        %v847 = vpop.trf.xlu0
        %v848 = vpop.trf.xlu0
        %v849 = vpop.trf.xlu0
        %v850 = vpop.trf.xlu0
        %v851 = vpop.trf.xlu0
        %v852 = vpop.trf.xlu0
        %v853 = vpop.trf.xlu0
        %v854 = vpop.trf.xlu0
        %v855 = vpop.trf.xlu0
        %v856 = vpop.trf.xlu0
        %v857 = vpop.trf.xlu0
        %858 = vxpose.xlu0.b32.start [1/16] %v283, 128
        %859 = vxpose.xlu0.b32.cont [2/16] 0.0, 128
        %860 = vxpose.xlu0.b32.cont [3/16] 0.0, 128
        %861 = vxpose.xlu0.b32.cont [4/16] 0.0, 128
        %862 = vxpose.xlu0.b32.cont [5/16] 0.0, 128
        %863 = vxpose.xlu0.b32.cont [6/16] 0.0, 128
        %864 = vxpose.xlu0.b32.cont [7/16] 0.0, 128
        %865 = vxpose.xlu0.b32.cont [8/16] 0.0, 128
        %866 = vxpose.xlu0.b32.cont [9/16] 0.0, 128
        %867 = vxpose.xlu0.b32.cont [10/16] 0.0, 128
        %868 = vxpose.xlu0.b32.cont [11/16] 0.0, 128
        %869 = vxpose.xlu0.b32.cont [12/16] 0.0, 128
        %870 = vxpose.xlu0.b32.cont [13/16] 0.0, 128
        %871 = vxpose.xlu0.b32.cont [14/16] 0.0, 128
        %872 = vxpose.xlu0.b32.cont [15/16] 0.0, 128
        %873 = vxpose.xlu0.b32.end [16/16] 0.0, 128
        %v874 = vpop.trf.xlu0
        %v875 = vpop.trf.xlu0
        %v876 = vpop.trf.xlu0
        %v877 = vpop.trf.xlu0
        %v878 = vpop.trf.xlu0
        %v879 = vpop.trf.xlu0
        %v880 = vpop.trf.xlu0
        %v881 = vpop.trf.xlu0
        %v882 = vpop.trf.xlu0
        %v883 = vpop.trf.xlu0
        %v884 = vpop.trf.xlu0
        %v885 = vpop.trf.xlu0
        %v886 = vpop.trf.xlu0
        %v887 = vpop.trf.xlu0
        %v888 = vpop.trf.xlu0
        %v889 = vpop.trf.xlu0
        %890 = vxpose.xlu0.b32.start [1/16] %v284, 128
        %891 = vxpose.xlu0.b32.cont [2/16] 0.0, 128
        %892 = vxpose.xlu0.b32.cont [3/16] 0.0, 128
        %893 = vxpose.xlu0.b32.cont [4/16] 0.0, 128
        %894 = vxpose.xlu0.b32.cont [5/16] 0.0, 128
        %895 = vxpose.xlu0.b32.cont [6/16] 0.0, 128
        %896 = vxpose.xlu0.b32.cont [7/16] 0.0, 128
        %897 = vxpose.xlu0.b32.cont [8/16] 0.0, 128
        %898 = vxpose.xlu0.b32.cont [9/16] 0.0, 128
        %899 = vxpose.xlu0.b32.cont [10/16] 0.0, 128
        %900 = vxpose.xlu0.b32.cont [11/16] 0.0, 128
        %901 = vxpose.xlu0.b32.cont [12/16] 0.0, 128
        %902 = vxpose.xlu0.b32.cont [13/16] 0.0, 128
        %903 = vxpose.xlu0.b32.cont [14/16] 0.0, 128
        %904 = vxpose.xlu0.b32.cont [15/16] 0.0, 128
        %905 = vxpose.xlu0.b32.end [16/16] 0.0, 128
        %v906 = vpop.trf.xlu0
        %v907 = vpop.trf.xlu0
        %v908 = vpop.trf.xlu0
        %v909 = vpop.trf.xlu0
        %v910 = vpop.trf.xlu0
        %v911 = vpop.trf.xlu0
        %v912 = vpop.trf.xlu0
        %v913 = vpop.trf.xlu0
        %v914 = vpop.trf.xlu0
        %v915 = vpop.trf.xlu0
        %v916 = vpop.trf.xlu0
        %v917 = vpop.trf.xlu0
        %v918 = vpop.trf.xlu0
        %v919 = vpop.trf.xlu0
        %v920 = vpop.trf.xlu0
        %v921 = vpop.trf.xlu0
        %922 = vxpose.xlu0.b32.start [1/16] %v285, 128
        %923 = vxpose.xlu0.b32.cont [2/16] 0.0, 128
        %924 = vxpose.xlu0.b32.cont [3/16] 0.0, 128
        %925 = vxpose.xlu0.b32.cont [4/16] 0.0, 128
        %926 = vxpose.xlu0.b32.cont [5/16] 0.0, 128
        %927 = vxpose.xlu0.b32.cont [6/16] 0.0, 128
        %928 = vxpose.xlu0.b32.cont [7/16] 0.0, 128
        %929 = vxpose.xlu0.b32.cont [8/16] 0.0, 128
        %930 = vxpose.xlu0.b32.cont [9/16] 0.0, 128
        %931 = vxpose.xlu0.b32.cont [10/16] 0.0, 128
        %932 = vxpose.xlu0.b32.cont [11/16] 0.0, 128
        %933 = vxpose.xlu0.b32.cont [12/16] 0.0, 128
        %934 = vxpose.xlu0.b32.cont [13/16] 0.0, 128
        %935 = vxpose.xlu0.b32.cont [14/16] 0.0, 128
        %936 = vxpose.xlu0.b32.cont [15/16] 0.0, 128
        %937 = vxpose.xlu0.b32.end [16/16] 0.0, 128
        %v938 = vpop.trf.xlu0
        %v939 = vpop.trf.xlu0
        %v940 = vpop.trf.xlu0
        %v941 = vpop.trf.xlu0
        %v942 = vpop.trf.xlu0
        %v943 = vpop.trf.xlu0
        %v944 = vpop.trf.xlu0
        %v945 = vpop.trf.xlu0
        %v946 = vpop.trf.xlu0
        %v947 = vpop.trf.xlu0
        %v948 = vpop.trf.xlu0
        %v949 = vpop.trf.xlu0
        %v950 = vpop.trf.xlu0
        %v951 = vpop.trf.xlu0
        %v952 = vpop.trf.xlu0
        %v953 = vpop.trf.xlu0
        %954 = vxpose.xlu0.b32.start [1/16] %v286, 128
        %955 = vxpose.xlu0.b32.cont [2/16] 0.0, 128
        %956 = vxpose.xlu0.b32.cont [3/16] 0.0, 128
        %957 = vxpose.xlu0.b32.cont [4/16] 0.0, 128
        %958 = vxpose.xlu0.b32.cont [5/16] 0.0, 128
        %959 = vxpose.xlu0.b32.cont [6/16] 0.0, 128
        %960 = vxpose.xlu0.b32.cont [7/16] 0.0, 128
        %961 = vxpose.xlu0.b32.cont [8/16] 0.0, 128
        %962 = vxpose.xlu0.b32.cont [9/16] 0.0, 128
        %963 = vxpose.xlu0.b32.cont [10/16] 0.0, 128
        %964 = vxpose.xlu0.b32.cont [11/16] 0.0, 128
        %965 = vxpose.xlu0.b32.cont [12/16] 0.0, 128
        %966 = vxpose.xlu0.b32.cont [13/16] 0.0, 128
        %967 = vxpose.xlu0.b32.cont [14/16] 0.0, 128
        %968 = vxpose.xlu0.b32.cont [15/16] 0.0, 128
        %969 = vxpose.xlu0.b32.end [16/16] 0.0, 128
        %v970 = vpop.trf.xlu0
        %v971 = vpop.trf.xlu0
        %v972 = vpop.trf.xlu0
        %v973 = vpop.trf.xlu0
        %v974 = vpop.trf.xlu0
        %v975 = vpop.trf.xlu0
        %v976 = vpop.trf.xlu0
        %v977 = vpop.trf.xlu0
        %v978 = vpop.trf.xlu0
        %v979 = vpop.trf.xlu0
        %v980 = vpop.trf.xlu0
        %v981 = vpop.trf.xlu0
        %v982 = vpop.trf.xlu0
        %v983 = vpop.trf.xlu0
        %v984 = vpop.trf.xlu0
        %v985 = vpop.trf.xlu0
        %986 = vxpose.xlu0.b32.start [1/16] %v287, 128
        %987 = vxpose.xlu0.b32.cont [2/16] 0.0, 128
        %988 = vxpose.xlu0.b32.cont [3/16] 0.0, 128
        %989 = vxpose.xlu0.b32.cont [4/16] 0.0, 128
        %990 = vxpose.xlu0.b32.cont [5/16] 0.0, 128
        %991 = vxpose.xlu0.b32.cont [6/16] 0.0, 128
        %992 = vxpose.xlu0.b32.cont [7/16] 0.0, 128
        %993 = vxpose.xlu0.b32.cont [8/16] 0.0, 128
        %994 = vxpose.xlu0.b32.cont [9/16] 0.0, 128
        %995 = vxpose.xlu0.b32.cont [10/16] 0.0, 128
        %996 = vxpose.xlu0.b32.cont [11/16] 0.0, 128
        %997 = vxpose.xlu0.b32.cont [12/16] 0.0, 128
        %998 = vxpose.xlu0.b32.cont [13/16] 0.0, 128
        %999 = vxpose.xlu0.b32.cont [14/16] 0.0, 128
        %1000 = vxpose.xlu0.b32.cont [15/16] 0.0, 128
        %1001 = vxpose.xlu0.b32.end [16/16] 0.0, 128
        %v1002 = vpop.trf.xlu0
        %v1003 = vpop.trf.xlu0
        %v1004 = vpop.trf.xlu0
        %v1005 = vpop.trf.xlu0
        %v1006 = vpop.trf.xlu0
        %v1007 = vpop.trf.xlu0
        %v1008 = vpop.trf.xlu0
        %v1009 = vpop.trf.xlu0
        %v1010 = vpop.trf.xlu0
        %v1011 = vpop.trf.xlu0
        %v1012 = vpop.trf.xlu0
        %v1013 = vpop.trf.xlu0
        %v1014 = vpop.trf.xlu0
        %v1015 = vpop.trf.xlu0
        %v1016 = vpop.trf.xlu0
        %v1017 = vpop.trf.xlu0
        %1018 = vxpose.xlu0.b32.start [1/16] %v288, 128
        %1019 = vxpose.xlu0.b32.cont [2/16] 0.0, 128
        %1020 = vxpose.xlu0.b32.cont [3/16] 0.0, 128
        %1021 = vxpose.xlu0.b32.cont [4/16] 0.0, 128
        %1022 = vxpose.xlu0.b32.cont [5/16] 0.0, 128
        %1023 = vxpose.xlu0.b32.cont [6/16] 0.0, 128
        %1024 = vxpose.xlu0.b32.cont [7/16] 0.0, 128
        %1025 = vxpose.xlu0.b32.cont [8/16] 0.0, 128
        %1026 = vxpose.xlu0.b32.cont [9/16] 0.0, 128
        %1027 = vxpose.xlu0.b32.cont [10/16] 0.0, 128
        %1028 = vxpose.xlu0.b32.cont [11/16] 0.0, 128
        %1029 = vxpose.xlu0.b32.cont [12/16] 0.0, 128
        %1030 = vxpose.xlu0.b32.cont [13/16] 0.0, 128
        %1031 = vxpose.xlu0.b32.cont [14/16] 0.0, 128
        %1032 = vxpose.xlu0.b32.cont [15/16] 0.0, 128
        %1033 = vxpose.xlu0.b32.end [16/16] 0.0, 128
        %v1034 = vpop.trf.xlu0
        %v1035 = vpop.trf.xlu0
        %v1036 = vpop.trf.xlu0
        %v1037 = vpop.trf.xlu0
        %v1038 = vpop.trf.xlu0
        %v1039 = vpop.trf.xlu0
        %v1040 = vpop.trf.xlu0
        %v1041 = vpop.trf.xlu0
        %v1042 = vpop.trf.xlu0
        %v1043 = vpop.trf.xlu0
        %v1044 = vpop.trf.xlu0
        %v1045 = vpop.trf.xlu0
        %v1046 = vpop.trf.xlu0
        %v1047 = vpop.trf.xlu0
        %v1048 = vpop.trf.xlu0
        %v1049 = vpop.trf.xlu0
        %1050 = vxpose.xlu0.b32.start [1/16] %v289, 128
        %1051 = vxpose.xlu0.b32.cont [2/16] 0.0, 128
        %1052 = vxpose.xlu0.b32.cont [3/16] 0.0, 128
        %1053 = vxpose.xlu0.b32.cont [4/16] 0.0, 128
        %1054 = vxpose.xlu0.b32.cont [5/16] 0.0, 128
        %1055 = vxpose.xlu0.b32.cont [6/16] 0.0, 128
        %1056 = vxpose.xlu0.b32.cont [7/16] 0.0, 128
        %1057 = vxpose.xlu0.b32.cont [8/16] 0.0, 128
        %1058 = vxpose.xlu0.b32.cont [9/16] 0.0, 128
        %1059 = vxpose.xlu0.b32.cont [10/16] 0.0, 128
        %1060 = vxpose.xlu0.b32.cont [11/16] 0.0, 128
        %1061 = vxpose.xlu0.b32.cont [12/16] 0.0, 128
        %1062 = vxpose.xlu0.b32.cont [13/16] 0.0, 128
        %1063 = vxpose.xlu0.b32.cont [14/16] 0.0, 128
        %1064 = vxpose.xlu0.b32.cont [15/16] 0.0, 128
        %1065 = vxpose.xlu0.b32.end [16/16] 0.0, 128
        %v1066 = vpop.trf.xlu0
        %v1067 = vpop.trf.xlu0
        %v1068 = vpop.trf.xlu0
        %v1069 = vpop.trf.xlu0
        %v1070 = vpop.trf.xlu0
        %v1071 = vpop.trf.xlu0
        %v1072 = vpop.trf.xlu0
        %v1073 = vpop.trf.xlu0
        %v1074 = vpop.trf.xlu0
        %v1075 = vpop.trf.xlu0
        %v1076 = vpop.trf.xlu0
        %v1077 = vpop.trf.xlu0
        %v1078 = vpop.trf.xlu0
        %v1079 = vpop.trf.xlu0
        %v1080 = vpop.trf.xlu0
        %v1081 = vpop.trf.xlu0
        %1082 = vxpose.xlu0.b32.start [1/16] %v290, 128
        %1083 = vxpose.xlu0.b32.cont [2/16] 0.0, 128
        %1084 = vxpose.xlu0.b32.cont [3/16] 0.0, 128
        %1085 = vxpose.xlu0.b32.cont [4/16] 0.0, 128
        %1086 = vxpose.xlu0.b32.cont [5/16] 0.0, 128
        %1087 = vxpose.xlu0.b32.cont [6/16] 0.0, 128
        %1088 = vxpose.xlu0.b32.cont [7/16] 0.0, 128
        %1089 = vxpose.xlu0.b32.cont [8/16] 0.0, 128
        %1090 = vxpose.xlu0.b32.cont [9/16] 0.0, 128
        %1091 = vxpose.xlu0.b32.cont [10/16] 0.0, 128
        %1092 = vxpose.xlu0.b32.cont [11/16] 0.0, 128
        %1093 = vxpose.xlu0.b32.cont [12/16] 0.0, 128
        %1094 = vxpose.xlu0.b32.cont [13/16] 0.0, 128
        %1095 = vxpose.xlu0.b32.cont [14/16] 0.0, 128
        %1096 = vxpose.xlu0.b32.cont [15/16] 0.0, 128
        %1097 = vxpose.xlu0.b32.end [16/16] 0.0, 128
        %v1098 = vpop.trf.xlu0
        %v1099 = vpop.trf.xlu0
        %v1100 = vpop.trf.xlu0
        %v1101 = vpop.trf.xlu0
        %v1102 = vpop.trf.xlu0
        %v1103 = vpop.trf.xlu0
        %v1104 = vpop.trf.xlu0
        %v1105 = vpop.trf.xlu0
        %v1106 = vpop.trf.xlu0
        %v1107 = vpop.trf.xlu0
        %v1108 = vpop.trf.xlu0
        %v1109 = vpop.trf.xlu0
        %v1110 = vpop.trf.xlu0
        %v1111 = vpop.trf.xlu0
        %v1112 = vpop.trf.xlu0
        %v1113 = vpop.trf.xlu0
        %1114 = vxpose.xlu0.b32.start [1/16] %v291, 128
        %1115 = vxpose.xlu0.b32.cont [2/16] 0.0, 128
        %1116 = vxpose.xlu0.b32.cont [3/16] 0.0, 128
        %1117 = vxpose.xlu0.b32.cont [4/16] 0.0, 128
        %1118 = vxpose.xlu0.b32.cont [5/16] 0.0, 128
        %1119 = vxpose.xlu0.b32.cont [6/16] 0.0, 128
        %1120 = vxpose.xlu0.b32.cont [7/16] 0.0, 128
        %1121 = vxpose.xlu0.b32.cont [8/16] 0.0, 128
        %1122 = vxpose.xlu0.b32.cont [9/16] 0.0, 128
        %1123 = vxpose.xlu0.b32.cont [10/16] 0.0, 128
        %1124 = vxpose.xlu0.b32.cont [11/16] 0.0, 128
        %1125 = vxpose.xlu0.b32.cont [12/16] 0.0, 128
        %1126 = vxpose.xlu0.b32.cont [13/16] 0.0, 128
        %1127 = vxpose.xlu0.b32.cont [14/16] 0.0, 128
        %1128 = vxpose.xlu0.b32.cont [15/16] 0.0, 128
        %1129 = vxpose.xlu0.b32.end [16/16] 0.0, 128
        %v1130 = vpop.trf.xlu0
        %v1131 = vpop.trf.xlu0
        %v1132 = vpop.trf.xlu0
        %v1133 = vpop.trf.xlu0
        %v1134 = vpop.trf.xlu0
        %v1135 = vpop.trf.xlu0
        %v1136 = vpop.trf.xlu0
        %v1137 = vpop.trf.xlu0
        %v1138 = vpop.trf.xlu0
        %v1139 = vpop.trf.xlu0
        %v1140 = vpop.trf.xlu0
        %v1141 = vpop.trf.xlu0
        %v1142 = vpop.trf.xlu0
        %v1143 = vpop.trf.xlu0
        %v1144 = vpop.trf.xlu0
        %v1145 = vpop.trf.xlu0
        %1146 = vxpose.xlu0.b32.start [1/16] %v292, 128
        %1147 = vxpose.xlu0.b32.cont [2/16] 0.0, 128
        %1148 = vxpose.xlu0.b32.cont [3/16] 0.0, 128
        %1149 = vxpose.xlu0.b32.cont [4/16] 0.0, 128
        %1150 = vxpose.xlu0.b32.cont [5/16] 0.0, 128
        %1151 = vxpose.xlu0.b32.cont [6/16] 0.0, 128
        %1152 = vxpose.xlu0.b32.cont [7/16] 0.0, 128
        %1153 = vxpose.xlu0.b32.cont [8/16] 0.0, 128
        %1154 = vxpose.xlu0.b32.cont [9/16] 0.0, 128
        %1155 = vxpose.xlu0.b32.cont [10/16] 0.0, 128
        %1156 = vxpose.xlu0.b32.cont [11/16] 0.0, 128
        %1157 = vxpose.xlu0.b32.cont [12/16] 0.0, 128
        %1158 = vxpose.xlu0.b32.cont [13/16] 0.0, 128
        %1159 = vxpose.xlu0.b32.cont [14/16] 0.0, 128
        %1160 = vxpose.xlu0.b32.cont [15/16] 0.0, 128
        %1161 = vxpose.xlu0.b32.end [16/16] 0.0, 128
        %v1162 = vpop.trf.xlu0
        %v1163 = vpop.trf.xlu0
        %v1164 = vpop.trf.xlu0
        %v1165 = vpop.trf.xlu0
        %v1166 = vpop.trf.xlu0
        %v1167 = vpop.trf.xlu0
        %v1168 = vpop.trf.xlu0
        %v1169 = vpop.trf.xlu0
        %v1170 = vpop.trf.xlu0
        %v1171 = vpop.trf.xlu0
        %v1172 = vpop.trf.xlu0
        %v1173 = vpop.trf.xlu0
        %v1174 = vpop.trf.xlu0
        %v1175 = vpop.trf.xlu0
        %v1176 = vpop.trf.xlu0
        %v1177 = vpop.trf.xlu0
        %1178 = vxpose.xlu0.b32.start [1/16] %v293, 128
        %1179 = vxpose.xlu0.b32.cont [2/16] 0.0, 128
        %1180 = vxpose.xlu0.b32.cont [3/16] 0.0, 128
        %1181 = vxpose.xlu0.b32.cont [4/16] 0.0, 128
        %1182 = vxpose.xlu0.b32.cont [5/16] 0.0, 128
        %1183 = vxpose.xlu0.b32.cont [6/16] 0.0, 128
        %1184 = vxpose.xlu0.b32.cont [7/16] 0.0, 128
        %1185 = vxpose.xlu0.b32.cont [8/16] 0.0, 128
        %1186 = vxpose.xlu0.b32.cont [9/16] 0.0, 128
        %1187 = vxpose.xlu0.b32.cont [10/16] 0.0, 128
        %1188 = vxpose.xlu0.b32.cont [11/16] 0.0, 128
        %1189 = vxpose.xlu0.b32.cont [12/16] 0.0, 128
        %1190 = vxpose.xlu0.b32.cont [13/16] 0.0, 128
        %1191 = vxpose.xlu0.b32.cont [14/16] 0.0, 128
        %1192 = vxpose.xlu0.b32.cont [15/16] 0.0, 128
        %1193 = vxpose.xlu0.b32.end [16/16] 0.0, 128
        %v1194 = vpop.trf.xlu0
        %v1195 = vpop.trf.xlu0
        %v1196 = vpop.trf.xlu0
        %v1197 = vpop.trf.xlu0
        %v1198 = vpop.trf.xlu0
        %v1199 = vpop.trf.xlu0
        %v1200 = vpop.trf.xlu0
        %v1201 = vpop.trf.xlu0
        %v1202 = vpop.trf.xlu0
        %v1203 = vpop.trf.xlu0
        %v1204 = vpop.trf.xlu0
        %v1205 = vpop.trf.xlu0
        %v1206 = vpop.trf.xlu0
        %v1207 = vpop.trf.xlu0
        %v1208 = vpop.trf.xlu0
        %v1209 = vpop.trf.xlu0
        %1210 = vxpose.xlu0.b32.start [1/16] %v294, 128
        %1211 = vxpose.xlu0.b32.cont [2/16] 0.0, 128
        %1212 = vxpose.xlu0.b32.cont [3/16] 0.0, 128
        %1213 = vxpose.xlu0.b32.cont [4/16] 0.0, 128
        %1214 = vxpose.xlu0.b32.cont [5/16] 0.0, 128
        %1215 = vxpose.xlu0.b32.cont [6/16] 0.0, 128
        %1216 = vxpose.xlu0.b32.cont [7/16] 0.0, 128
        %1217 = vxpose.xlu0.b32.cont [8/16] 0.0, 128
        %1218 = vxpose.xlu0.b32.cont [9/16] 0.0, 128
        %1219 = vxpose.xlu0.b32.cont [10/16] 0.0, 128
        %1220 = vxpose.xlu0.b32.cont [11/16] 0.0, 128
        %1221 = vxpose.xlu0.b32.cont [12/16] 0.0, 128
        %1222 = vxpose.xlu0.b32.cont [13/16] 0.0, 128
        %1223 = vxpose.xlu0.b32.cont [14/16] 0.0, 128
        %1224 = vxpose.xlu0.b32.cont [15/16] 0.0, 128
        %1225 = vxpose.xlu0.b32.end [16/16] 0.0, 128
        %v1226 = vpop.trf.xlu0
        %v1227 = vpop.trf.xlu0
        %v1228 = vpop.trf.xlu0
        %v1229 = vpop.trf.xlu0
        %v1230 = vpop.trf.xlu0
        %v1231 = vpop.trf.xlu0
        %v1232 = vpop.trf.xlu0
        %v1233 = vpop.trf.xlu0
        %v1234 = vpop.trf.xlu0
        %v1235 = vpop.trf.xlu0
        %v1236 = vpop.trf.xlu0
        %v1237 = vpop.trf.xlu0
        %v1238 = vpop.trf.xlu0
        %v1239 = vpop.trf.xlu0
        %v1240 = vpop.trf.xlu0
        %v1241 = vpop.trf.xlu0
        %1242 = vxpose.xlu0.b32.start [1/16] %v295, 128
        %1243 = vxpose.xlu0.b32.cont [2/16] 0.0, 128
        %1244 = vxpose.xlu0.b32.cont [3/16] 0.0, 128
        %1245 = vxpose.xlu0.b32.cont [4/16] 0.0, 128
        %1246 = vxpose.xlu0.b32.cont [5/16] 0.0, 128
        %1247 = vxpose.xlu0.b32.cont [6/16] 0.0, 128
        %1248 = vxpose.xlu0.b32.cont [7/16] 0.0, 128
        %1249 = vxpose.xlu0.b32.cont [8/16] 0.0, 128
        %1250 = vxpose.xlu0.b32.cont [9/16] 0.0, 128
        %1251 = vxpose.xlu0.b32.cont [10/16] 0.0, 128
        %1252 = vxpose.xlu0.b32.cont [11/16] 0.0, 128
        %1253 = vxpose.xlu0.b32.cont [12/16] 0.0, 128
        %1254 = vxpose.xlu0.b32.cont [13/16] 0.0, 128
        %1255 = vxpose.xlu0.b32.cont [14/16] 0.0, 128
        %1256 = vxpose.xlu0.b32.cont [15/16] 0.0, 128
        %1257 = vxpose.xlu0.b32.end [16/16] 0.0, 128
        %v1258 = vpop.trf.xlu0
        %v1259 = vpop.trf.xlu0
        %v1260 = vpop.trf.xlu0
        %v1261 = vpop.trf.xlu0
        %v1262 = vpop.trf.xlu0
        %v1263 = vpop.trf.xlu0
        %v1264 = vpop.trf.xlu0
        %v1265 = vpop.trf.xlu0
        %v1266 = vpop.trf.xlu0
        %v1267 = vpop.trf.xlu0
        %v1268 = vpop.trf.xlu0
        %v1269 = vpop.trf.xlu0
        %v1270 = vpop.trf.xlu0
        %v1271 = vpop.trf.xlu0
        %v1272 = vpop.trf.xlu0
        %v1273 = vpop.trf.xlu0
        %1274 = vxpose.xlu0.b32.start [1/16] %v296, 128
        %1275 = vxpose.xlu0.b32.cont [2/16] 0.0, 128
        %1276 = vxpose.xlu0.b32.cont [3/16] 0.0, 128
        %1277 = vxpose.xlu0.b32.cont [4/16] 0.0, 128
        %1278 = vxpose.xlu0.b32.cont [5/16] 0.0, 128
        %1279 = vxpose.xlu0.b32.cont [6/16] 0.0, 128
        %1280 = vxpose.xlu0.b32.cont [7/16] 0.0, 128
        %1281 = vxpose.xlu0.b32.cont [8/16] 0.0, 128
        %1282 = vxpose.xlu0.b32.cont [9/16] 0.0, 128
        %1283 = vxpose.xlu0.b32.cont [10/16] 0.0, 128
        %1284 = vxpose.xlu0.b32.cont [11/16] 0.0, 128
        %1285 = vxpose.xlu0.b32.cont [12/16] 0.0, 128
        %1286 = vxpose.xlu0.b32.cont [13/16] 0.0, 128
        %1287 = vxpose.xlu0.b32.cont [14/16] 0.0, 128
        %1288 = vxpose.xlu0.b32.cont [15/16] 0.0, 128
        %1289 = vxpose.xlu0.b32.end [16/16] 0.0, 128
        %v1290 = vpop.trf.xlu0
        %v1291 = vpop.trf.xlu0
        %v1292 = vpop.trf.xlu0
        %v1293 = vpop.trf.xlu0
        %v1294 = vpop.trf.xlu0
        %v1295 = vpop.trf.xlu0
        %v1296 = vpop.trf.xlu0
        %v1297 = vpop.trf.xlu0
        %v1298 = vpop.trf.xlu0
        %v1299 = vpop.trf.xlu0
        %v1300 = vpop.trf.xlu0
        %v1301 = vpop.trf.xlu0
        %v1302 = vpop.trf.xlu0
        %v1303 = vpop.trf.xlu0
        %v1304 = vpop.trf.xlu0
        %v1305 = vpop.trf.xlu0
        %1306 = vxpose.xlu0.b32.start [1/16] %v297, 128
        %1307 = vxpose.xlu0.b32.cont [2/16] 0.0, 128
        %1308 = vxpose.xlu0.b32.cont [3/16] 0.0, 128
        %1309 = vxpose.xlu0.b32.cont [4/16] 0.0, 128
        %1310 = vxpose.xlu0.b32.cont [5/16] 0.0, 128
        %1311 = vxpose.xlu0.b32.cont [6/16] 0.0, 128
        %1312 = vxpose.xlu0.b32.cont [7/16] 0.0, 128
        %1313 = vxpose.xlu0.b32.cont [8/16] 0.0, 128
        %1314 = vxpose.xlu0.b32.cont [9/16] 0.0, 128
        %1315 = vxpose.xlu0.b32.cont [10/16] 0.0, 128
        %1316 = vxpose.xlu0.b32.cont [11/16] 0.0, 128
        %1317 = vxpose.xlu0.b32.cont [12/16] 0.0, 128
        %1318 = vxpose.xlu0.b32.cont [13/16] 0.0, 128
        %1319 = vxpose.xlu0.b32.cont [14/16] 0.0, 128
        %1320 = vxpose.xlu0.b32.cont [15/16] 0.0, 128
        %1321 = vxpose.xlu0.b32.end [16/16] 0.0, 128
        %v1322 = vpop.trf.xlu0
        %v1323 = vpop.trf.xlu0
        %v1324 = vpop.trf.xlu0
        %v1325 = vpop.trf.xlu0
        %v1326 = vpop.trf.xlu0
        %v1327 = vpop.trf.xlu0
        %v1328 = vpop.trf.xlu0
        %v1329 = vpop.trf.xlu0
        %v1330 = vpop.trf.xlu0
        %v1331 = vpop.trf.xlu0
        %v1332 = vpop.trf.xlu0
        %v1333 = vpop.trf.xlu0
        %v1334 = vpop.trf.xlu0
        %v1335 = vpop.trf.xlu0
        %v1336 = vpop.trf.xlu0
        %v1337 = vpop.trf.xlu0
        %1338 = vxpose.xlu0.b32.start [1/16] %v298, 128
        %1339 = vxpose.xlu0.b32.cont [2/16] 0.0, 128
        %1340 = vxpose.xlu0.b32.cont [3/16] 0.0, 128
        %1341 = vxpose.xlu0.b32.cont [4/16] 0.0, 128
        %1342 = vxpose.xlu0.b32.cont [5/16] 0.0, 128
        %1343 = vxpose.xlu0.b32.cont [6/16] 0.0, 128
        %1344 = vxpose.xlu0.b32.cont [7/16] 0.0, 128
        %1345 = vxpose.xlu0.b32.cont [8/16] 0.0, 128
        %1346 = vxpose.xlu0.b32.cont [9/16] 0.0, 128
        %1347 = vxpose.xlu0.b32.cont [10/16] 0.0, 128
        %1348 = vxpose.xlu0.b32.cont [11/16] 0.0, 128
        %1349 = vxpose.xlu0.b32.cont [12/16] 0.0, 128
        %1350 = vxpose.xlu0.b32.cont [13/16] 0.0, 128
        %1351 = vxpose.xlu0.b32.cont [14/16] 0.0, 128
        %1352 = vxpose.xlu0.b32.cont [15/16] 0.0, 128
        %1353 = vxpose.xlu0.b32.end [16/16] 0.0, 128
        %v1354 = vpop.trf.xlu0
        %v1355 = vpop.trf.xlu0
        %v1356 = vpop.trf.xlu0
        %v1357 = vpop.trf.xlu0
        %v1358 = vpop.trf.xlu0
        %v1359 = vpop.trf.xlu0
        %v1360 = vpop.trf.xlu0
        %v1361 = vpop.trf.xlu0
        %v1362 = vpop.trf.xlu0
        %v1363 = vpop.trf.xlu0
        %v1364 = vpop.trf.xlu0
        %v1365 = vpop.trf.xlu0
        %v1366 = vpop.trf.xlu0
        %v1367 = vpop.trf.xlu0
        %v1368 = vpop.trf.xlu0
        %v1369 = vpop.trf.xlu0
        %1370 = vxpose.xlu0.b32.start [1/16] %v299, 128
        %1371 = vxpose.xlu0.b32.cont [2/16] 0.0, 128
        %1372 = vxpose.xlu0.b32.cont [3/16] 0.0, 128
        %1373 = vxpose.xlu0.b32.cont [4/16] 0.0, 128
        %1374 = vxpose.xlu0.b32.cont [5/16] 0.0, 128
        %1375 = vxpose.xlu0.b32.cont [6/16] 0.0, 128
        %1376 = vxpose.xlu0.b32.cont [7/16] 0.0, 128
        %1377 = vxpose.xlu0.b32.cont [8/16] 0.0, 128
        %1378 = vxpose.xlu0.b32.cont [9/16] 0.0, 128
        %1379 = vxpose.xlu0.b32.cont [10/16] 0.0, 128
        %1380 = vxpose.xlu0.b32.cont [11/16] 0.0, 128
        %1381 = vxpose.xlu0.b32.cont [12/16] 0.0, 128
        %1382 = vxpose.xlu0.b32.cont [13/16] 0.0, 128
        %1383 = vxpose.xlu0.b32.cont [14/16] 0.0, 128
        %1384 = vxpose.xlu0.b32.cont [15/16] 0.0, 128
        %1385 = vxpose.xlu0.b32.end [16/16] 0.0, 128
        %v1386 = vpop.trf.xlu0
        %v1387 = vpop.trf.xlu0
        %v1388 = vpop.trf.xlu0
        %v1389 = vpop.trf.xlu0
        %v1390 = vpop.trf.xlu0
        %v1391 = vpop.trf.xlu0
        %v1392 = vpop.trf.xlu0
        %v1393 = vpop.trf.xlu0
        %v1394 = vpop.trf.xlu0
        %v1395 = vpop.trf.xlu0
        %v1396 = vpop.trf.xlu0
        %v1397 = vpop.trf.xlu0
        %v1398 = vpop.trf.xlu0
        %v1399 = vpop.trf.xlu0
        %v1400 = vpop.trf.xlu0
        %v1401 = vpop.trf.xlu0
        %1402 = vxpose.xlu0.b32.start [1/16] %v300, 128
        %1403 = vxpose.xlu0.b32.cont [2/16] 0.0, 128
        %1404 = vxpose.xlu0.b32.cont [3/16] 0.0, 128
        %1405 = vxpose.xlu0.b32.cont [4/16] 0.0, 128
        %1406 = vxpose.xlu0.b32.cont [5/16] 0.0, 128
        %1407 = vxpose.xlu0.b32.cont [6/16] 0.0, 128
        %1408 = vxpose.xlu0.b32.cont [7/16] 0.0, 128
        %1409 = vxpose.xlu0.b32.cont [8/16] 0.0, 128
        %1410 = vxpose.xlu0.b32.cont [9/16] 0.0, 128
        %1411 = vxpose.xlu0.b32.cont [10/16] 0.0, 128
        %1412 = vxpose.xlu0.b32.cont [11/16] 0.0, 128
        %1413 = vxpose.xlu0.b32.cont [12/16] 0.0, 128
        %1414 = vxpose.xlu0.b32.cont [13/16] 0.0, 128
        %1415 = vxpose.xlu0.b32.cont [14/16] 0.0, 128
        %1416 = vxpose.xlu0.b32.cont [15/16] 0.0, 128
        %1417 = vxpose.xlu0.b32.end [16/16] 0.0, 128
        %v1418 = vpop.trf.xlu0
        %v1419 = vpop.trf.xlu0
        %v1420 = vpop.trf.xlu0
        %v1421 = vpop.trf.xlu0
        %v1422 = vpop.trf.xlu0
        %v1423 = vpop.trf.xlu0
        %v1424 = vpop.trf.xlu0
        %v1425 = vpop.trf.xlu0
        %v1426 = vpop.trf.xlu0
        %v1427 = vpop.trf.xlu0
        %v1428 = vpop.trf.xlu0
        %v1429 = vpop.trf.xlu0
        %v1430 = vpop.trf.xlu0
        %v1431 = vpop.trf.xlu0
        %v1432 = vpop.trf.xlu0
        %v1433 = vpop.trf.xlu0
        %1434 = vxpose.xlu0.b32.start [1/16] %v301, 128
        %1435 = vxpose.xlu0.b32.cont [2/16] 0.0, 128
        %1436 = vxpose.xlu0.b32.cont [3/16] 0.0, 128
        %1437 = vxpose.xlu0.b32.cont [4/16] 0.0, 128
        %1438 = vxpose.xlu0.b32.cont [5/16] 0.0, 128
        %1439 = vxpose.xlu0.b32.cont [6/16] 0.0, 128
        %1440 = vxpose.xlu0.b32.cont [7/16] 0.0, 128
        %1441 = vxpose.xlu0.b32.cont [8/16] 0.0, 128
        %1442 = vxpose.xlu0.b32.cont [9/16] 0.0, 128
        %1443 = vxpose.xlu0.b32.cont [10/16] 0.0, 128
        %1444 = vxpose.xlu0.b32.cont [11/16] 0.0, 128
        %1445 = vxpose.xlu0.b32.cont [12/16] 0.0, 128
        %1446 = vxpose.xlu0.b32.cont [13/16] 0.0, 128
        %1447 = vxpose.xlu0.b32.cont [14/16] 0.0, 128
        %1448 = vxpose.xlu0.b32.cont [15/16] 0.0, 128
        %1449 = vxpose.xlu0.b32.end [16/16] 0.0, 128
        %v1450 = vpop.trf.xlu0
        %v1451 = vpop.trf.xlu0
        %v1452 = vpop.trf.xlu0
        %v1453 = vpop.trf.xlu0
        %v1454 = vpop.trf.xlu0
        %v1455 = vpop.trf.xlu0
        %v1456 = vpop.trf.xlu0
        %v1457 = vpop.trf.xlu0
        %v1458 = vpop.trf.xlu0
        %v1459 = vpop.trf.xlu0
        %v1460 = vpop.trf.xlu0
        %v1461 = vpop.trf.xlu0
        %v1462 = vpop.trf.xlu0
        %v1463 = vpop.trf.xlu0
        %v1464 = vpop.trf.xlu0
        %v1465 = vpop.trf.xlu0
        %1466 = vxpose.xlu0.b32.start [1/16] %v302, 128
        %1467 = vxpose.xlu0.b32.cont [2/16] 0.0, 128
        %1468 = vxpose.xlu0.b32.cont [3/16] 0.0, 128
        %1469 = vxpose.xlu0.b32.cont [4/16] 0.0, 128
        %1470 = vxpose.xlu0.b32.cont [5/16] 0.0, 128
        %1471 = vxpose.xlu0.b32.cont [6/16] 0.0, 128
        %1472 = vxpose.xlu0.b32.cont [7/16] 0.0, 128
        %1473 = vxpose.xlu0.b32.cont [8/16] 0.0, 128
        %1474 = vxpose.xlu0.b32.cont [9/16] 0.0, 128
        %1475 = vxpose.xlu0.b32.cont [10/16] 0.0, 128
        %1476 = vxpose.xlu0.b32.cont [11/16] 0.0, 128
        %1477 = vxpose.xlu0.b32.cont [12/16] 0.0, 128
        %1478 = vxpose.xlu0.b32.cont [13/16] 0.0, 128
        %1479 = vxpose.xlu0.b32.cont [14/16] 0.0, 128
        %1480 = vxpose.xlu0.b32.cont [15/16] 0.0, 128
        %1481 = vxpose.xlu0.b32.end [16/16] 0.0, 128
        %v1482 = vpop.trf.xlu0
        %v1483 = vpop.trf.xlu0
        %v1484 = vpop.trf.xlu0
        %v1485 = vpop.trf.xlu0
        %v1486 = vpop.trf.xlu0
        %v1487 = vpop.trf.xlu0
        %v1488 = vpop.trf.xlu0
        %v1489 = vpop.trf.xlu0
        %v1490 = vpop.trf.xlu0
        %v1491 = vpop.trf.xlu0
        %v1492 = vpop.trf.xlu0
        %v1493 = vpop.trf.xlu0
        %v1494 = vpop.trf.xlu0
        %v1495 = vpop.trf.xlu0
        %v1496 = vpop.trf.xlu0
        %v1497 = vpop.trf.xlu0
        %1498 = vxpose.xlu0.b32.start [1/16] %v303, 128
        %1499 = vxpose.xlu0.b32.cont [2/16] 0.0, 128
        %1500 = vxpose.xlu0.b32.cont [3/16] 0.0, 128
        %1501 = vxpose.xlu0.b32.cont [4/16] 0.0, 128
        %1502 = vxpose.xlu0.b32.cont [5/16] 0.0, 128
        %1503 = vxpose.xlu0.b32.cont [6/16] 0.0, 128
        %1504 = vxpose.xlu0.b32.cont [7/16] 0.0, 128
        %1505 = vxpose.xlu0.b32.cont [8/16] 0.0, 128
        %1506 = vxpose.xlu0.b32.cont [9/16] 0.0, 128
        %1507 = vxpose.xlu0.b32.cont [10/16] 0.0, 128
        %1508 = vxpose.xlu0.b32.cont [11/16] 0.0, 128
        %1509 = vxpose.xlu0.b32.cont [12/16] 0.0, 128
        %1510 = vxpose.xlu0.b32.cont [13/16] 0.0, 128
        %1511 = vxpose.xlu0.b32.cont [14/16] 0.0, 128
        %1512 = vxpose.xlu0.b32.cont [15/16] 0.0, 128
        %1513 = vxpose.xlu0.b32.end [16/16] 0.0, 128
        %v1514 = vpop.trf.xlu0
        %v1515 = vpop.trf.xlu0
        %v1516 = vpop.trf.xlu0
        %v1517 = vpop.trf.xlu0
        %v1518 = vpop.trf.xlu0
        %v1519 = vpop.trf.xlu0
        %v1520 = vpop.trf.xlu0
        %v1521 = vpop.trf.xlu0
        %v1522 = vpop.trf.xlu0
        %v1523 = vpop.trf.xlu0
        %v1524 = vpop.trf.xlu0
        %v1525 = vpop.trf.xlu0
        %v1526 = vpop.trf.xlu0
        %v1527 = vpop.trf.xlu0
        %v1528 = vpop.trf.xlu0
        %v1529 = vpop.trf.xlu0
        %1530 = vxpose.xlu0.b32.start [1/16] %v304, 128
        %1531 = vxpose.xlu0.b32.cont [2/16] 0.0, 128
        %1532 = vxpose.xlu0.b32.cont [3/16] 0.0, 128
        %1533 = vxpose.xlu0.b32.cont [4/16] 0.0, 128
        %1534 = vxpose.xlu0.b32.cont [5/16] 0.0, 128
        %1535 = vxpose.xlu0.b32.cont [6/16] 0.0, 128
        %1536 = vxpose.xlu0.b32.cont [7/16] 0.0, 128
        %1537 = vxpose.xlu0.b32.cont [8/16] 0.0, 128
        %1538 = vxpose.xlu0.b32.cont [9/16] 0.0, 128
        %1539 = vxpose.xlu0.b32.cont [10/16] 0.0, 128
        %1540 = vxpose.xlu0.b32.cont [11/16] 0.0, 128
        %1541 = vxpose.xlu0.b32.cont [12/16] 0.0, 128
        %1542 = vxpose.xlu0.b32.cont [13/16] 0.0, 128
        %1543 = vxpose.xlu0.b32.cont [14/16] 0.0, 128
        %1544 = vxpose.xlu0.b32.cont [15/16] 0.0, 128
        %1545 = vxpose.xlu0.b32.end [16/16] 0.0, 128
        %v1546 = vpop.trf.xlu0
        %v1547 = vpop.trf.xlu0
        %v1548 = vpop.trf.xlu0
        %v1549 = vpop.trf.xlu0
        %v1550 = vpop.trf.xlu0
        %v1551 = vpop.trf.xlu0
        %v1552 = vpop.trf.xlu0
        %v1553 = vpop.trf.xlu0
        %v1554 = vpop.trf.xlu0
        %v1555 = vpop.trf.xlu0
        %v1556 = vpop.trf.xlu0
        %v1557 = vpop.trf.xlu0
        %v1558 = vpop.trf.xlu0
        %v1559 = vpop.trf.xlu0
        %v1560 = vpop.trf.xlu0
        %v1561 = vpop.trf.xlu0
        %1562 = vxpose.xlu0.b32.start [1/16] %v305, 128
        %1563 = vxpose.xlu0.b32.cont [2/16] 0.0, 128
        %1564 = vxpose.xlu0.b32.cont [3/16] 0.0, 128
        %1565 = vxpose.xlu0.b32.cont [4/16] 0.0, 128
        %1566 = vxpose.xlu0.b32.cont [5/16] 0.0, 128
        %1567 = vxpose.xlu0.b32.cont [6/16] 0.0, 128
        %1568 = vxpose.xlu0.b32.cont [7/16] 0.0, 128
        %1569 = vxpose.xlu0.b32.cont [8/16] 0.0, 128
        %1570 = vxpose.xlu0.b32.cont [9/16] 0.0, 128
        %1571 = vxpose.xlu0.b32.cont [10/16] 0.0, 128
        %1572 = vxpose.xlu0.b32.cont [11/16] 0.0, 128
        %1573 = vxpose.xlu0.b32.cont [12/16] 0.0, 128
        %1574 = vxpose.xlu0.b32.cont [13/16] 0.0, 128
        %1575 = vxpose.xlu0.b32.cont [14/16] 0.0, 128
        %1576 = vxpose.xlu0.b32.cont [15/16] 0.0, 128
        %1577 = vxpose.xlu0.b32.end [16/16] 0.0, 128
        %v1578 = vpop.trf.xlu0
        %v1579 = vpop.trf.xlu0
        %v1580 = vpop.trf.xlu0
        %v1581 = vpop.trf.xlu0
        %v1582 = vpop.trf.xlu0
        %v1583 = vpop.trf.xlu0
        %v1584 = vpop.trf.xlu0
        %v1585 = vpop.trf.xlu0
        %v1586 = vpop.trf.xlu0
        %v1587 = vpop.trf.xlu0
        %v1588 = vpop.trf.xlu0
        %v1589 = vpop.trf.xlu0
        %v1590 = vpop.trf.xlu0
        %v1591 = vpop.trf.xlu0
        %v1592 = vpop.trf.xlu0
        %v1593 = vpop.trf.xlu0
        %1594 = vxpose.xlu0.b32.start [1/16] %v306, 128
        %1595 = vxpose.xlu0.b32.cont [2/16] 0.0, 128
        %1596 = vxpose.xlu0.b32.cont [3/16] 0.0, 128
        %1597 = vxpose.xlu0.b32.cont [4/16] 0.0, 128
        %1598 = vxpose.xlu0.b32.cont [5/16] 0.0, 128
        %1599 = vxpose.xlu0.b32.cont [6/16] 0.0, 128
        %1600 = vxpose.xlu0.b32.cont [7/16] 0.0, 128
        %1601 = vxpose.xlu0.b32.cont [8/16] 0.0, 128
        %1602 = vxpose.xlu0.b32.cont [9/16] 0.0, 128
        %1603 = vxpose.xlu0.b32.cont [10/16] 0.0, 128
        %1604 = vxpose.xlu0.b32.cont [11/16] 0.0, 128
        %1605 = vxpose.xlu0.b32.cont [12/16] 0.0, 128
        %1606 = vxpose.xlu0.b32.cont [13/16] 0.0, 128
        %1607 = vxpose.xlu0.b32.cont [14/16] 0.0, 128
        %1608 = vxpose.xlu0.b32.cont [15/16] 0.0, 128
        %1609 = vxpose.xlu0.b32.end [16/16] 0.0, 128
        %v1610 = vpop.trf.xlu0
        %v1611 = vpop.trf.xlu0
        %v1612 = vpop.trf.xlu0
        %v1613 = vpop.trf.xlu0
        %v1614 = vpop.trf.xlu0
        %v1615 = vpop.trf.xlu0
        %v1616 = vpop.trf.xlu0
        %v1617 = vpop.trf.xlu0
        %v1618 = vpop.trf.xlu0
        %v1619 = vpop.trf.xlu0
        %v1620 = vpop.trf.xlu0
        %v1621 = vpop.trf.xlu0
        %v1622 = vpop.trf.xlu0
        %v1623 = vpop.trf.xlu0
        %v1624 = vpop.trf.xlu0
        %v1625 = vpop.trf.xlu0
        %1626 = vxpose.xlu0.b32.start [1/16] %v307, 128
        %1627 = vxpose.xlu0.b32.cont [2/16] 0.0, 128
        %1628 = vxpose.xlu0.b32.cont [3/16] 0.0, 128
        %1629 = vxpose.xlu0.b32.cont [4/16] 0.0, 128
        %1630 = vxpose.xlu0.b32.cont [5/16] 0.0, 128
        %1631 = vxpose.xlu0.b32.cont [6/16] 0.0, 128
        %1632 = vxpose.xlu0.b32.cont [7/16] 0.0, 128
        %1633 = vxpose.xlu0.b32.cont [8/16] 0.0, 128
        %1634 = vxpose.xlu0.b32.cont [9/16] 0.0, 128
        %1635 = vxpose.xlu0.b32.cont [10/16] 0.0, 128
        %1636 = vxpose.xlu0.b32.cont [11/16] 0.0, 128
        %1637 = vxpose.xlu0.b32.cont [12/16] 0.0, 128
        %1638 = vxpose.xlu0.b32.cont [13/16] 0.0, 128
        %1639 = vxpose.xlu0.b32.cont [14/16] 0.0, 128
        %1640 = vxpose.xlu0.b32.cont [15/16] 0.0, 128
        %1641 = vxpose.xlu0.b32.end [16/16] 0.0, 128
        %v1642 = vpop.trf.xlu0
        %v1643 = vpop.trf.xlu0
        %v1644 = vpop.trf.xlu0
        %v1645 = vpop.trf.xlu0
        %v1646 = vpop.trf.xlu0
        %v1647 = vpop.trf.xlu0
        %v1648 = vpop.trf.xlu0
        %v1649 = vpop.trf.xlu0
        %v1650 = vpop.trf.xlu0
        %v1651 = vpop.trf.xlu0
        %v1652 = vpop.trf.xlu0
        %v1653 = vpop.trf.xlu0
        %v1654 = vpop.trf.xlu0
        %v1655 = vpop.trf.xlu0
        %v1656 = vpop.trf.xlu0
        %v1657 = vpop.trf.xlu0
        %1658 = vxpose.xlu0.b32.start [1/16] %v308, 128
        %1659 = vxpose.xlu0.b32.cont [2/16] 0.0, 128
        %1660 = vxpose.xlu0.b32.cont [3/16] 0.0, 128
        %1661 = vxpose.xlu0.b32.cont [4/16] 0.0, 128
        %1662 = vxpose.xlu0.b32.cont [5/16] 0.0, 128
        %1663 = vxpose.xlu0.b32.cont [6/16] 0.0, 128
        %1664 = vxpose.xlu0.b32.cont [7/16] 0.0, 128
        %1665 = vxpose.xlu0.b32.cont [8/16] 0.0, 128
        %1666 = vxpose.xlu0.b32.cont [9/16] 0.0, 128
        %1667 = vxpose.xlu0.b32.cont [10/16] 0.0, 128
        %1668 = vxpose.xlu0.b32.cont [11/16] 0.0, 128
        %1669 = vxpose.xlu0.b32.cont [12/16] 0.0, 128
        %1670 = vxpose.xlu0.b32.cont [13/16] 0.0, 128
        %1671 = vxpose.xlu0.b32.cont [14/16] 0.0, 128
        %1672 = vxpose.xlu0.b32.cont [15/16] 0.0, 128
        %1673 = vxpose.xlu0.b32.end [16/16] 0.0, 128
        %v1674 = vpop.trf.xlu0
        %v1675 = vpop.trf.xlu0
        %v1676 = vpop.trf.xlu0
        %v1677 = vpop.trf.xlu0
        %v1678 = vpop.trf.xlu0
        %v1679 = vpop.trf.xlu0
        %v1680 = vpop.trf.xlu0
        %v1681 = vpop.trf.xlu0
        %v1682 = vpop.trf.xlu0
        %v1683 = vpop.trf.xlu0
        %v1684 = vpop.trf.xlu0
        %v1685 = vpop.trf.xlu0
        %v1686 = vpop.trf.xlu0
        %v1687 = vpop.trf.xlu0
        %v1688 = vpop.trf.xlu0
        %v1689 = vpop.trf.xlu0
        %1690 = vxpose.xlu0.b32.start [1/16] %v309, 128
        %1691 = vxpose.xlu0.b32.cont [2/16] 0.0, 128
        %1692 = vxpose.xlu0.b32.cont [3/16] 0.0, 128
        %1693 = vxpose.xlu0.b32.cont [4/16] 0.0, 128
        %1694 = vxpose.xlu0.b32.cont [5/16] 0.0, 128
        %1695 = vxpose.xlu0.b32.cont [6/16] 0.0, 128
        %1696 = vxpose.xlu0.b32.cont [7/16] 0.0, 128
        %1697 = vxpose.xlu0.b32.cont [8/16] 0.0, 128
        %1698 = vxpose.xlu0.b32.cont [9/16] 0.0, 128
        %1699 = vxpose.xlu0.b32.cont [10/16] 0.0, 128
        %1700 = vxpose.xlu0.b32.cont [11/16] 0.0, 128
        %1701 = vxpose.xlu0.b32.cont [12/16] 0.0, 128
        %1702 = vxpose.xlu0.b32.cont [13/16] 0.0, 128
        %1703 = vxpose.xlu0.b32.cont [14/16] 0.0, 128
        %1704 = vxpose.xlu0.b32.cont [15/16] 0.0, 128
        %1705 = vxpose.xlu0.b32.end [16/16] 0.0, 128
        %v1706 = vpop.trf.xlu0
        %v1707 = vpop.trf.xlu0
        %v1708 = vpop.trf.xlu0
        %v1709 = vpop.trf.xlu0
        %v1710 = vpop.trf.xlu0
        %v1711 = vpop.trf.xlu0
        %v1712 = vpop.trf.xlu0
        %v1713 = vpop.trf.xlu0
        %v1714 = vpop.trf.xlu0
        %v1715 = vpop.trf.xlu0
        %v1716 = vpop.trf.xlu0
        %v1717 = vpop.trf.xlu0
        %v1718 = vpop.trf.xlu0
        %v1719 = vpop.trf.xlu0
        %v1720 = vpop.trf.xlu0
        %v1721 = vpop.trf.xlu0
        %1722 = vxpose.xlu0.b32.start [1/16] %v310, 128
        %1723 = vxpose.xlu0.b32.cont [2/16] 0.0, 128
        %1724 = vxpose.xlu0.b32.cont [3/16] 0.0, 128
        %1725 = vxpose.xlu0.b32.cont [4/16] 0.0, 128
        %1726 = vxpose.xlu0.b32.cont [5/16] 0.0, 128
        %1727 = vxpose.xlu0.b32.cont [6/16] 0.0, 128
        %1728 = vxpose.xlu0.b32.cont [7/16] 0.0, 128
        %1729 = vxpose.xlu0.b32.cont [8/16] 0.0, 128
        %1730 = vxpose.xlu0.b32.cont [9/16] 0.0, 128
        %1731 = vxpose.xlu0.b32.cont [10/16] 0.0, 128
        %1732 = vxpose.xlu0.b32.cont [11/16] 0.0, 128
        %1733 = vxpose.xlu0.b32.cont [12/16] 0.0, 128
        %1734 = vxpose.xlu0.b32.cont [13/16] 0.0, 128
        %1735 = vxpose.xlu0.b32.cont [14/16] 0.0, 128
        %1736 = vxpose.xlu0.b32.cont [15/16] 0.0, 128
        %1737 = vxpose.xlu0.b32.end [16/16] 0.0, 128
        %v1738 = vpop.trf.xlu0
        %v1739 = vpop.trf.xlu0
        %v1740 = vpop.trf.xlu0
        %v1741 = vpop.trf.xlu0
        %v1742 = vpop.trf.xlu0
        %v1743 = vpop.trf.xlu0
        %v1744 = vpop.trf.xlu0
        %v1745 = vpop.trf.xlu0
        %v1746 = vpop.trf.xlu0
        %v1747 = vpop.trf.xlu0
        %v1748 = vpop.trf.xlu0
        %v1749 = vpop.trf.xlu0
        %v1750 = vpop.trf.xlu0
        %v1751 = vpop.trf.xlu0
        %v1752 = vpop.trf.xlu0
        %v1753 = vpop.trf.xlu0
        %1754 = vxpose.xlu0.b32.start [1/16] %v311, 128
        %1755 = vxpose.xlu0.b32.cont [2/16] 0.0, 128
        %1756 = vxpose.xlu0.b32.cont [3/16] 0.0, 128
        %1757 = vxpose.xlu0.b32.cont [4/16] 0.0, 128
        %1758 = vxpose.xlu0.b32.cont [5/16] 0.0, 128
        %1759 = vxpose.xlu0.b32.cont [6/16] 0.0, 128
        %1760 = vxpose.xlu0.b32.cont [7/16] 0.0, 128
        %1761 = vxpose.xlu0.b32.cont [8/16] 0.0, 128
        %1762 = vxpose.xlu0.b32.cont [9/16] 0.0, 128
        %1763 = vxpose.xlu0.b32.cont [10/16] 0.0, 128
        %1764 = vxpose.xlu0.b32.cont [11/16] 0.0, 128
        %1765 = vxpose.xlu0.b32.cont [12/16] 0.0, 128
        %1766 = vxpose.xlu0.b32.cont [13/16] 0.0, 128
        %1767 = vxpose.xlu0.b32.cont [14/16] 0.0, 128
        %1768 = vxpose.xlu0.b32.cont [15/16] 0.0, 128
        %1769 = vxpose.xlu0.b32.end [16/16] 0.0, 128
        %v1770 = vpop.trf.xlu0
        %v1771 = vpop.trf.xlu0
        %v1772 = vpop.trf.xlu0
        %v1773 = vpop.trf.xlu0
        %v1774 = vpop.trf.xlu0
        %v1775 = vpop.trf.xlu0
        %v1776 = vpop.trf.xlu0
        %v1777 = vpop.trf.xlu0
        %v1778 = vpop.trf.xlu0
        %v1779 = vpop.trf.xlu0
        %v1780 = vpop.trf.xlu0
        %v1781 = vpop.trf.xlu0
        %v1782 = vpop.trf.xlu0
        %v1783 = vpop.trf.xlu0
        %v1784 = vpop.trf.xlu0
        %v1785 = vpop.trf.xlu0
        %1786 = vxpose.xlu0.b32.start [1/16] %v312, 128
        %1787 = vxpose.xlu0.b32.cont [2/16] 0.0, 128
        %1788 = vxpose.xlu0.b32.cont [3/16] 0.0, 128
        %1789 = vxpose.xlu0.b32.cont [4/16] 0.0, 128
        %1790 = vxpose.xlu0.b32.cont [5/16] 0.0, 128
        %1791 = vxpose.xlu0.b32.cont [6/16] 0.0, 128
        %1792 = vxpose.xlu0.b32.cont [7/16] 0.0, 128
        %1793 = vxpose.xlu0.b32.cont [8/16] 0.0, 128
        %1794 = vxpose.xlu0.b32.cont [9/16] 0.0, 128
        %1795 = vxpose.xlu0.b32.cont [10/16] 0.0, 128
        %1796 = vxpose.xlu0.b32.cont [11/16] 0.0, 128
        %1797 = vxpose.xlu0.b32.cont [12/16] 0.0, 128
        %1798 = vxpose.xlu0.b32.cont [13/16] 0.0, 128
        %1799 = vxpose.xlu0.b32.cont [14/16] 0.0, 128
        %1800 = vxpose.xlu0.b32.cont [15/16] 0.0, 128
        %1801 = vxpose.xlu0.b32.end [16/16] 0.0, 128
        %v1802 = vpop.trf.xlu0
        %v1803 = vpop.trf.xlu0
        %v1804 = vpop.trf.xlu0
        %v1805 = vpop.trf.xlu0
        %v1806 = vpop.trf.xlu0
        %v1807 = vpop.trf.xlu0
        %v1808 = vpop.trf.xlu0
        %v1809 = vpop.trf.xlu0
        %v1810 = vpop.trf.xlu0
        %v1811 = vpop.trf.xlu0
        %v1812 = vpop.trf.xlu0
        %v1813 = vpop.trf.xlu0
        %v1814 = vpop.trf.xlu0
        %v1815 = vpop.trf.xlu0
        %v1816 = vpop.trf.xlu0
        %v1817 = vpop.trf.xlu0
        %1818 = vxpose.xlu0.b32.start [1/16] %v313, 128
        %1819 = vxpose.xlu0.b32.cont [2/16] 0.0, 128
        %1820 = vxpose.xlu0.b32.cont [3/16] 0.0, 128
        %1821 = vxpose.xlu0.b32.cont [4/16] 0.0, 128
        %1822 = vxpose.xlu0.b32.cont [5/16] 0.0, 128
        %1823 = vxpose.xlu0.b32.cont [6/16] 0.0, 128
        %1824 = vxpose.xlu0.b32.cont [7/16] 0.0, 128
        %1825 = vxpose.xlu0.b32.cont [8/16] 0.0, 128
        %1826 = vxpose.xlu0.b32.cont [9/16] 0.0, 128
        %1827 = vxpose.xlu0.b32.cont [10/16] 0.0, 128
        %1828 = vxpose.xlu0.b32.cont [11/16] 0.0, 128
        %1829 = vxpose.xlu0.b32.cont [12/16] 0.0, 128
        %1830 = vxpose.xlu0.b32.cont [13/16] 0.0, 128
        %1831 = vxpose.xlu0.b32.cont [14/16] 0.0, 128
        %1832 = vxpose.xlu0.b32.cont [15/16] 0.0, 128
        %1833 = vxpose.xlu0.b32.end [16/16] 0.0, 128
        %v1834 = vpop.trf.xlu0
        %v1835 = vpop.trf.xlu0
        %v1836 = vpop.trf.xlu0
        %v1837 = vpop.trf.xlu0
        %v1838 = vpop.trf.xlu0
        %v1839 = vpop.trf.xlu0
        %v1840 = vpop.trf.xlu0
        %v1841 = vpop.trf.xlu0
        %v1842 = vpop.trf.xlu0
        %v1843 = vpop.trf.xlu0
        %v1844 = vpop.trf.xlu0
        %v1845 = vpop.trf.xlu0
        %v1846 = vpop.trf.xlu0
        %v1847 = vpop.trf.xlu0
        %v1848 = vpop.trf.xlu0
        %v1849 = vpop.trf.xlu0
        %v1851 = vlaneseq
        %v1852 = vshrl.u32 %v1851, 7
        %v1853 = vsub.s32 0, %v1852
        %v1854 = vrot.slane %v265, %v1853
        %1856 = vxpose.xlu0.b32.start [1/16] %v330, 128
        %1857 = vxpose.xlu0.b32.cont [2/16] %v331, 128
        %1858 = vxpose.xlu0.b32.cont [3/16] %v362, 128
        %1859 = vxpose.xlu0.b32.cont [4/16] %v363, 128
        %1860 = vxpose.xlu0.b32.cont [5/16] %v394, 128
        %1861 = vxpose.xlu0.b32.cont [6/16] %v395, 128
        %1862 = vxpose.xlu0.b32.cont [7/16] %v426, 128
        %1863 = vxpose.xlu0.b32.cont [8/16] %v427, 128
        %1864 = vxpose.xlu0.b32.cont [9/16] %v458, 128
        %1865 = vxpose.xlu0.b32.cont [10/16] %v459, 128
        %1866 = vxpose.xlu0.b32.cont [11/16] %v490, 128
        %1867 = vxpose.xlu0.b32.cont [12/16] %v491, 128
        %1868 = vxpose.xlu0.b32.cont [13/16] %v522, 128
        %1869 = vxpose.xlu0.b32.cont [14/16] %v523, 128
        %1870 = vxpose.xlu0.b32.cont [15/16] %v554, 128
        %1871 = vxpose.xlu0.b32.end [16/16] %v555, 128
        %v1872 = vpop.trf.xlu0
        %v1873 = vpop.trf.xlu0
        %v1874 = vpop.trf.xlu0
        %v1875 = vpop.trf.xlu0
        %v1876 = vpop.trf.xlu0
        %v1877 = vpop.trf.xlu0
        %v1878 = vpop.trf.xlu0
        %v1879 = vpop.trf.xlu0
        %v1880 = vpop.trf.xlu0
        %v1881 = vpop.trf.xlu0
        %v1882 = vpop.trf.xlu0
        %v1883 = vpop.trf.xlu0
        %v1884 = vpop.trf.xlu0
        %v1885 = vpop.trf.xlu0
        %v1886 = vpop.trf.xlu0
        %v1887 = vpop.trf.xlu0
        %1888 = vxpose.xlu0.b32.start [1/16] %v586, 128
        %1889 = vxpose.xlu0.b32.cont [2/16] %v587, 128
        %1890 = vxpose.xlu0.b32.cont [3/16] %v618, 128
        %1891 = vxpose.xlu0.b32.cont [4/16] %v619, 128
        %1892 = vxpose.xlu0.b32.cont [5/16] %v650, 128
        %1893 = vxpose.xlu0.b32.cont [6/16] %v651, 128
        %1894 = vxpose.xlu0.b32.cont [7/16] %v682, 128
        %1895 = vxpose.xlu0.b32.cont [8/16] %v683, 128
        %1896 = vxpose.xlu0.b32.cont [9/16] %v714, 128
        %1897 = vxpose.xlu0.b32.cont [10/16] %v715, 128
        %1898 = vxpose.xlu0.b32.cont [11/16] %v746, 128
        %1899 = vxpose.xlu0.b32.cont [12/16] %v747, 128
        %1900 = vxpose.xlu0.b32.cont [13/16] %v778, 128
        %1901 = vxpose.xlu0.b32.cont [14/16] %v779, 128
        %1902 = vxpose.xlu0.b32.cont [15/16] %v810, 128
        %1903 = vxpose.xlu0.b32.end [16/16] %v811, 128
        %v1904 = vpop.trf.xlu0
        %v1905 = vpop.trf.xlu0
        %v1906 = vpop.trf.xlu0
        %v1907 = vpop.trf.xlu0
        %v1908 = vpop.trf.xlu0
        %v1909 = vpop.trf.xlu0
        %v1910 = vpop.trf.xlu0
        %v1911 = vpop.trf.xlu0
        %v1912 = vpop.trf.xlu0
        %v1913 = vpop.trf.xlu0
        %v1914 = vpop.trf.xlu0
        %v1915 = vpop.trf.xlu0
        %v1916 = vpop.trf.xlu0
        %v1917 = vpop.trf.xlu0
        %v1918 = vpop.trf.xlu0
        %v1919 = vpop.trf.xlu0
        %1920 = vxpose.xlu0.b32.start [1/16] %v842, 128
        %1921 = vxpose.xlu0.b32.cont [2/16] %v843, 128
        %1922 = vxpose.xlu0.b32.cont [3/16] %v874, 128
        %1923 = vxpose.xlu0.b32.cont [4/16] %v875, 128
        %1924 = vxpose.xlu0.b32.cont [5/16] %v906, 128
        %1925 = vxpose.xlu0.b32.cont [6/16] %v907, 128
        %1926 = vxpose.xlu0.b32.cont [7/16] %v938, 128
        %1927 = vxpose.xlu0.b32.cont [8/16] %v939, 128
        %1928 = vxpose.xlu0.b32.cont [9/16] %v970, 128
        %1929 = vxpose.xlu0.b32.cont [10/16] %v971, 128
        %1930 = vxpose.xlu0.b32.cont [11/16] %v1002, 128
        %1931 = vxpose.xlu0.b32.cont [12/16] %v1003, 128
        %1932 = vxpose.xlu0.b32.cont [13/16] %v1034, 128
        %1933 = vxpose.xlu0.b32.cont [14/16] %v1035, 128
        %1934 = vxpose.xlu0.b32.cont [15/16] %v1066, 128
        %1935 = vxpose.xlu0.b32.end [16/16] %v1067, 128
        %v1936 = vpop.trf.xlu0
        %v1937 = vpop.trf.xlu0
        %v1938 = vpop.trf.xlu0
        %v1939 = vpop.trf.xlu0
        %v1940 = vpop.trf.xlu0
        %v1941 = vpop.trf.xlu0
        %v1942 = vpop.trf.xlu0
        %v1943 = vpop.trf.xlu0
        %v1944 = vpop.trf.xlu0
        %v1945 = vpop.trf.xlu0
        %v1946 = vpop.trf.xlu0
        %v1947 = vpop.trf.xlu0
        %v1948 = vpop.trf.xlu0
        %v1949 = vpop.trf.xlu0
        %v1950 = vpop.trf.xlu0
        %v1951 = vpop.trf.xlu0
        %1952 = vxpose.xlu0.b32.start [1/16] %v1098, 128
        %1953 = vxpose.xlu0.b32.cont [2/16] %v1099, 128
        %1954 = vxpose.xlu0.b32.cont [3/16] %v1130, 128
        %1955 = vxpose.xlu0.b32.cont [4/16] %v1131, 128
        %1956 = vxpose.xlu0.b32.cont [5/16] %v1162, 128
        %1957 = vxpose.xlu0.b32.cont [6/16] %v1163, 128
        %1958 = vxpose.xlu0.b32.cont [7/16] %v1194, 128
        %1959 = vxpose.xlu0.b32.cont [8/16] %v1195, 128
        %1960 = vxpose.xlu0.b32.cont [9/16] %v1226, 128
        %1961 = vxpose.xlu0.b32.cont [10/16] %v1227, 128
        %1962 = vxpose.xlu0.b32.cont [11/16] %v1258, 128
        %1963 = vxpose.xlu0.b32.cont [12/16] %v1259, 128
        %1964 = vxpose.xlu0.b32.cont [13/16] %v1290, 128
        %1965 = vxpose.xlu0.b32.cont [14/16] %v1291, 128
        %1966 = vxpose.xlu0.b32.cont [15/16] %v1322, 128
        %1967 = vxpose.xlu0.b32.end [16/16] %v1323, 128
        %v1968 = vpop.trf.xlu0
        %v1969 = vpop.trf.xlu0
        %v1970 = vpop.trf.xlu0
        %v1971 = vpop.trf.xlu0
        %v1972 = vpop.trf.xlu0
        %v1973 = vpop.trf.xlu0
        %v1974 = vpop.trf.xlu0
        %v1975 = vpop.trf.xlu0
        %v1976 = vpop.trf.xlu0
        %v1977 = vpop.trf.xlu0
        %v1978 = vpop.trf.xlu0
        %v1979 = vpop.trf.xlu0
        %v1980 = vpop.trf.xlu0
        %v1981 = vpop.trf.xlu0
        %v1982 = vpop.trf.xlu0
        %v1983 = vpop.trf.xlu0
        %1984 = vxpose.xlu0.b32.start [1/16] %v1354, 128
        %1985 = vxpose.xlu0.b32.cont [2/16] %v1355, 128
        %1986 = vxpose.xlu0.b32.cont [3/16] %v1386, 128
        %1987 = vxpose.xlu0.b32.cont [4/16] %v1387, 128
        %1988 = vxpose.xlu0.b32.cont [5/16] %v1418, 128
        %1989 = vxpose.xlu0.b32.cont [6/16] %v1419, 128
        %1990 = vxpose.xlu0.b32.cont [7/16] %v1450, 128
        %1991 = vxpose.xlu0.b32.cont [8/16] %v1451, 128
        %1992 = vxpose.xlu0.b32.cont [9/16] %v1482, 128
        %1993 = vxpose.xlu0.b32.cont [10/16] %v1483, 128
        %1994 = vxpose.xlu0.b32.cont [11/16] %v1514, 128
        %1995 = vxpose.xlu0.b32.cont [12/16] %v1515, 128
        %1996 = vxpose.xlu0.b32.cont [13/16] %v1546, 128
        %1997 = vxpose.xlu0.b32.cont [14/16] %v1547, 128
        %1998 = vxpose.xlu0.b32.cont [15/16] %v1578, 128
        %1999 = vxpose.xlu0.b32.end [16/16] %v1579, 128
        %v2000 = vpop.trf.xlu0
        %v2001 = vpop.trf.xlu0
        %v2002 = vpop.trf.xlu0
        %v2003 = vpop.trf.xlu0
        %v2004 = vpop.trf.xlu0
        %v2005 = vpop.trf.xlu0
        %v2006 = vpop.trf.xlu0
        %v2007 = vpop.trf.xlu0
        %v2008 = vpop.trf.xlu0
        %v2009 = vpop.trf.xlu0
        %v2010 = vpop.trf.xlu0
        %v2011 = vpop.trf.xlu0
        %v2012 = vpop.trf.xlu0
        %v2013 = vpop.trf.xlu0
        %v2014 = vpop.trf.xlu0
        %v2015 = vpop.trf.xlu0
        %2016 = vxpose.xlu0.b32.start [1/16] %v1610, 128
        %2017 = vxpose.xlu0.b32.cont [2/16] %v1611, 128
        %2018 = vxpose.xlu0.b32.cont [3/16] %v1642, 128
        %2019 = vxpose.xlu0.b32.cont [4/16] %v1643, 128
        %2020 = vxpose.xlu0.b32.cont [5/16] %v1674, 128
        %2021 = vxpose.xlu0.b32.cont [6/16] %v1675, 128
        %2022 = vxpose.xlu0.b32.cont [7/16] %v1706, 128
        %2023 = vxpose.xlu0.b32.cont [8/16] %v1707, 128
        %2024 = vxpose.xlu0.b32.cont [9/16] %v1738, 128
        %2025 = vxpose.xlu0.b32.cont [10/16] %v1739, 128
        %2026 = vxpose.xlu0.b32.cont [11/16] %v1770, 128
        %2027 = vxpose.xlu0.b32.cont [12/16] %v1771, 128
        %2028 = vxpose.xlu0.b32.cont [13/16] %v1802, 128
        %2029 = vxpose.xlu0.b32.cont [14/16] %v1803, 128
        %2030 = vxpose.xlu0.b32.cont [15/16] %v1834, 128
        %2031 = vxpose.xlu0.b32.end [16/16] %v1835, 128
        %v2032 = vpop.trf.xlu0
        %v2033 = vpop.trf.xlu0
        %v2034 = vpop.trf.xlu0
        %v2035 = vpop.trf.xlu0
        %v2036 = vpop.trf.xlu0
        %v2037 = vpop.trf.xlu0
        %v2038 = vpop.trf.xlu0
        %v2039 = vpop.trf.xlu0
        %v2040 = vpop.trf.xlu0
        %v2041 = vpop.trf.xlu0
        %v2042 = vpop.trf.xlu0
        %v2043 = vpop.trf.xlu0
        %v2044 = vpop.trf.xlu0
        %v2045 = vpop.trf.xlu0
        %v2046 = vpop.trf.xlu0
        %v2047 = vpop.trf.xlu0
        %2048 = vmatprep.subr.mxu0 0.0
        %2049 = vmatpush1.msra.mxu0 %v184
        %2050 = vmatprep.subr.mxu0 0.0
        %2051 = vmatpush1.msra.mxu0 %v183
        %2052 = vmatprep.subr.mxu0 0.0
        %2053 = vmatpush1.msra.mxu0 %v182
        %2054 = vmatprep.subr.mxu0 0.0
        %2055 = vmatpush1.msra.mxu0 %v181
        %2056 = vmatprep.subr.mxu0 0.0
        %2057 = vmatpush1.msra.mxu0 %v180
        %2058 = vmatprep.subr.mxu0 0.0
        %2059 = vmatpush1.msra.mxu0 %v179
        %2060 = vmatprep.subr.mxu0 0.0
        %2061 = vmatpush1.msra.mxu0 %v178
        %2062 = vmatprep.subr.mxu0 0.0
        %2063 = vmatpush1.msra.mxu0 %v177
        %2064 = vmatprep.subr.mxu0 0.0
        %2065 = vmatpush1.msra.mxu0 %v176
        %2066 = vmatprep.subr.mxu0 0.0
        %2067 = vmatpush1.msra.mxu0 %v175
        %2068 = vmatprep.subr.mxu0 0.0
        %2069 = vmatpush1.msra.mxu0 %v174
        %2070 = vmatprep.subr.mxu0 0.0
        %2071 = vmatpush1.msra.mxu0 %v173
        %2072 = vmatprep.subr.mxu0 0.0
        %2073 = vmatpush1.msra.mxu0 %v172
        %2074 = vmatprep.subr.mxu0 0.0
        %2075 = vmatpush1.msra.mxu0 %v171
        %2076 = vmatprep.subr.mxu0 0.0
        %2077 = vmatpush1.msra.mxu0 %v170
        %2078 = vmatprep.subr.mxu0 0.0
        %2079 = vmatpush1.msra.mxu0 %v169
        %2080 = vmatprep.subr.mxu0 0.0
        %2081 = vmatpush2.msra.mxu0 %v200
        %2082 = vmatprep.subr.mxu0 0.0
        %2083 = vmatpush2.msra.mxu0 %v199
        %2084 = vmatprep.subr.mxu0 0.0
        %2085 = vmatpush2.msra.mxu0 %v198
        %2086 = vmatprep.subr.mxu0 0.0
        %2087 = vmatpush2.msra.mxu0 %v197
        %2088 = vmatprep.subr.mxu0 0.0
        %2089 = vmatpush2.msra.mxu0 %v196
        %2090 = vmatprep.subr.mxu0 0.0
        %2091 = vmatpush2.msra.mxu0 %v195
        %2092 = vmatprep.subr.mxu0 0.0
        %2093 = vmatpush2.msra.mxu0 %v194
        %2094 = vmatprep.subr.mxu0 0.0
        %2095 = vmatpush2.msra.mxu0 %v193
        %2096 = vmatprep.subr.mxu0 0.0
        %2097 = vmatpush2.msra.mxu0 %v192
        %2098 = vmatprep.subr.mxu0 0.0
        %2099 = vmatpush2.msra.mxu0 %v191
        %2100 = vmatprep.subr.mxu0 0.0
        %2101 = vmatpush2.msra.mxu0 %v190
        %2102 = vmatprep.subr.mxu0 0.0
        %2103 = vmatpush2.msra.mxu0 %v189
        %2104 = vmatprep.subr.mxu0 0.0
        %2105 = vmatpush2.msra.mxu0 %v188
        %2106 = vmatprep.subr.mxu0 0.0
        %2107 = vmatpush2.msra.mxu0 %v187
        %2108 = vmatprep.subr.mxu0 0.0
        %2109 = vmatpush2.msra.mxu0 %v186
        %2110 = vmatprep.subr.mxu0 0.0
        %2111 = vmatpush2.msra.mxu0 %v185
        %2112 = vmatprep.mubr.f32.mxu0 %v1904
        %2113 = vmatmul.mubr.f32.gmra.mxu0 %v1872
        %v2114 = vpop.f32.mrf.mxu0
        %v2115 = vadd.f32 %v1854, %v2114
        %v2116 = vpop.f32.mrf.mxu0
        %2117 = vdwg.mxu0
        %2118 = vmatprep.subr.mxu0 0.0
        %2119 = vmatpush1.msra.mxu0 %v216
        %2120 = vmatprep.subr.mxu0 0.0
        %2121 = vmatpush1.msra.mxu0 %v215
        %2122 = vmatprep.subr.mxu0 0.0
        %2123 = vmatpush1.msra.mxu0 %v214
        %2124 = vmatprep.subr.mxu0 0.0
        %2125 = vmatpush1.msra.mxu0 %v213
        %2126 = vmatprep.subr.mxu0 0.0
        %2127 = vmatpush1.msra.mxu0 %v212
        %2128 = vmatprep.subr.mxu0 0.0
        %2129 = vmatpush1.msra.mxu0 %v211
        %2130 = vmatprep.subr.mxu0 0.0
        %2131 = vmatpush1.msra.mxu0 %v210
        %2132 = vmatprep.subr.mxu0 0.0
        %2133 = vmatpush1.msra.mxu0 %v209
        %2134 = vmatprep.subr.mxu0 0.0
        %2135 = vmatpush1.msra.mxu0 %v208
        %2136 = vmatprep.subr.mxu0 0.0
        %2137 = vmatpush1.msra.mxu0 %v207
        %2138 = vmatprep.subr.mxu0 0.0
        %2139 = vmatpush1.msra.mxu0 %v206
        %2140 = vmatprep.subr.mxu0 0.0
        %2141 = vmatpush1.msra.mxu0 %v205
        %2142 = vmatprep.subr.mxu0 0.0
        %2143 = vmatpush1.msra.mxu0 %v204
        %2144 = vmatprep.subr.mxu0 0.0
        %2145 = vmatpush1.msra.mxu0 %v203
        %2146 = vmatprep.subr.mxu0 0.0
        %2147 = vmatpush1.msra.mxu0 %v202
        %2148 = vmatprep.subr.mxu0 0.0
        %2149 = vmatpush1.msra.mxu0 %v201
        %2150 = vmatprep.subr.mxu0 0.0
        %2151 = vmatpush2.msra.mxu0 %v232
        %2152 = vmatprep.subr.mxu0 0.0
        %2153 = vmatpush2.msra.mxu0 %v231
        %2154 = vmatprep.subr.mxu0 0.0
        %2155 = vmatpush2.msra.mxu0 %v230
        %2156 = vmatprep.subr.mxu0 0.0
        %2157 = vmatpush2.msra.mxu0 %v229
        %2158 = vmatprep.subr.mxu0 0.0
        %2159 = vmatpush2.msra.mxu0 %v228
        %2160 = vmatprep.subr.mxu0 0.0
        %2161 = vmatpush2.msra.mxu0 %v227
        %2162 = vmatprep.subr.mxu0 0.0
        %2163 = vmatpush2.msra.mxu0 %v226
        %2164 = vmatprep.subr.mxu0 0.0
        %2165 = vmatpush2.msra.mxu0 %v225
        %2166 = vmatprep.subr.mxu0 0.0
        %2167 = vmatpush2.msra.mxu0 %v224
        %2168 = vmatprep.subr.mxu0 0.0
        %2169 = vmatpush2.msra.mxu0 %v223
        %2170 = vmatprep.subr.mxu0 0.0
        %2171 = vmatpush2.msra.mxu0 %v222
        %2172 = vmatprep.subr.mxu0 0.0
        %2173 = vmatpush2.msra.mxu0 %v221
        %2174 = vmatprep.subr.mxu0 0.0
        %2175 = vmatpush2.msra.mxu0 %v220
        %2176 = vmatprep.subr.mxu0 0.0
        %2177 = vmatpush2.msra.mxu0 %v219
        %2178 = vmatprep.subr.mxu0 0.0
        %2179 = vmatpush2.msra.mxu0 %v218
        %2180 = vmatprep.subr.mxu0 0.0
        %2181 = vmatpush2.msra.mxu0 %v217
        %2182 = vmatprep.mubr.f32.mxu0 %v1968
        %2183 = vmatmul.mubr.f32.gmra.mxu0 %v1936
        %v2184 = vpop.f32.mrf.mxu0
        %v2185 = vadd.f32 %v2115, %v2184
        %v2186 = vpop.f32.mrf.mxu0
        %2187 = vdwg.mxu0
        %2188 = vmatprep.subr.mxu0 0.0
        %2189 = vmatpush1.msra.mxu0 %v248
        %2190 = vmatprep.subr.mxu0 0.0
        %2191 = vmatpush1.msra.mxu0 %v247
        %2192 = vmatprep.subr.mxu0 0.0
        %2193 = vmatpush1.msra.mxu0 %v246
        %2194 = vmatprep.subr.mxu0 0.0
        %2195 = vmatpush1.msra.mxu0 %v245
        %2196 = vmatprep.subr.mxu0 0.0
        %2197 = vmatpush1.msra.mxu0 %v244
        %2198 = vmatprep.subr.mxu0 0.0
        %2199 = vmatpush1.msra.mxu0 %v243
        %2200 = vmatprep.subr.mxu0 0.0
        %2201 = vmatpush1.msra.mxu0 %v242
        %2202 = vmatprep.subr.mxu0 0.0
        %2203 = vmatpush1.msra.mxu0 %v241
        %2204 = vmatprep.subr.mxu0 0.0
        %2205 = vmatpush1.msra.mxu0 %v240
        %2206 = vmatprep.subr.mxu0 0.0
        %2207 = vmatpush1.msra.mxu0 %v239
        %2208 = vmatprep.subr.mxu0 0.0
        %2209 = vmatpush1.msra.mxu0 %v238
        %2210 = vmatprep.subr.mxu0 0.0
        %2211 = vmatpush1.msra.mxu0 %v237
        %2212 = vmatprep.subr.mxu0 0.0
        %2213 = vmatpush1.msra.mxu0 %v236
        %2214 = vmatprep.subr.mxu0 0.0
        %2215 = vmatpush1.msra.mxu0 %v235
        %2216 = vmatprep.subr.mxu0 0.0
        %2217 = vmatpush1.msra.mxu0 %v234
        %2218 = vmatprep.subr.mxu0 0.0
        %2219 = vmatpush1.msra.mxu0 %v233
        %2220 = vmatprep.subr.mxu0 0.0
        %2221 = vmatpush2.msra.mxu0 %v264
        %2222 = vmatprep.subr.mxu0 0.0
        %2223 = vmatpush2.msra.mxu0 %v263
        %2224 = vmatprep.subr.mxu0 0.0
        %2225 = vmatpush2.msra.mxu0 %v262
        %2226 = vmatprep.subr.mxu0 0.0
        %2227 = vmatpush2.msra.mxu0 %v261
        %2228 = vmatprep.subr.mxu0 0.0
        %2229 = vmatpush2.msra.mxu0 %v260
        %2230 = vmatprep.subr.mxu0 0.0
        %2231 = vmatpush2.msra.mxu0 %v259
        %2232 = vmatprep.subr.mxu0 0.0
        %2233 = vmatpush2.msra.mxu0 %v258
        %2234 = vmatprep.subr.mxu0 0.0
        %2235 = vmatpush2.msra.mxu0 %v257
        %2236 = vmatprep.subr.mxu0 0.0
        %2237 = vmatpush2.msra.mxu0 %v256
        %2238 = vmatprep.subr.mxu0 0.0
        %2239 = vmatpush2.msra.mxu0 %v255
        %2240 = vmatprep.subr.mxu0 0.0
        %2241 = vmatpush2.msra.mxu0 %v254
        %2242 = vmatprep.subr.mxu0 0.0
        %2243 = vmatpush2.msra.mxu0 %v253
        %2244 = vmatprep.subr.mxu0 0.0
        %2245 = vmatpush2.msra.mxu0 %v252
        %2246 = vmatprep.subr.mxu0 0.0
        %2247 = vmatpush2.msra.mxu0 %v251
        %2248 = vmatprep.subr.mxu0 0.0
        %2249 = vmatpush2.msra.mxu0 %v250
        %2250 = vmatprep.subr.mxu0 0.0
        %2251 = vmatpush2.msra.mxu0 %v249
        %2252 = vmatprep.mubr.f32.mxu0 %v2032
        %2253 = vmatmul.mubr.f32.gmra.mxu0 %v2000
        %v2254 = vpop.f32.mrf.mxu0
        %v2255 = vadd.f32 %v2185, %v2254
        %v2256 = vpop.f32.mrf.mxu0
        %2257 = vdwg.mxu0
        %2258 = vst [vmem:[%s163] sm:$0xff] %v2255
        %s2259 = scalar_lea.vmem %s168, 128
        %v2260 = vld [vmem:[%s2259] sm:$0xff]
        %v2261 = vld [vmem:[%s2259 + $0x8] sm:$0xff]
        %v2262 = vld [vmem:[%s2259 + $0x10] sm:$0xff]
        %v2263 = vld [vmem:[%s2259 + $0x18] sm:$0xff]
        %v2264 = vld [vmem:[%s2259 + $0x20] sm:$0xff]
        %v2265 = vld [vmem:[%s2259 + $0x28] sm:$0xff]
        %v2266 = vld [vmem:[%s2259 + $0x30] sm:$0xff]
        %v2267 = vld [vmem:[%s2259 + $0x38] sm:$0xff]
        %v2268 = vld [vmem:[%s2259 + $0x40] sm:$0xff]
        %v2269 = vld [vmem:[%s2259 + $0x48] sm:$0xff]
        %v2270 = vld [vmem:[%s2259 + $0x50] sm:$0xff]
        %v2271 = vld [vmem:[%s2259 + $0x58] sm:$0xff]
        %v2272 = vld [vmem:[%s2259 + $0x60] sm:$0xff]
        %v2273 = vld [vmem:[%s2259 + $0x68] sm:$0xff]
        %v2274 = vld [vmem:[%s2259 + $0x70] sm:$0xff]
        %v2275 = vld [vmem:[%s2259 + $0x78] sm:$0xff]
        %v2276 = vld [vmem:[%s2259 + $0x100] sm:$0xff]
        %v2277 = vld [vmem:[%s2259 + $0x108] sm:$0xff]
        %v2278 = vld [vmem:[%s2259 + $0x110] sm:$0xff]
        %v2279 = vld [vmem:[%s2259 + $0x118] sm:$0xff]
        %v2280 = vld [vmem:[%s2259 + $0x120] sm:$0xff]
        %v2281 = vld [vmem:[%s2259 + $0x128] sm:$0xff]
        %v2282 = vld [vmem:[%s2259 + $0x130] sm:$0xff]
        %v2283 = vld [vmem:[%s2259 + $0x138] sm:$0xff]
        %v2284 = vld [vmem:[%s2259 + $0x140] sm:$0xff]
        %v2285 = vld [vmem:[%s2259 + $0x148] sm:$0xff]
        %v2286 = vld [vmem:[%s2259 + $0x150] sm:$0xff]
        %v2287 = vld [vmem:[%s2259 + $0x158] sm:$0xff]
        %v2288 = vld [vmem:[%s2259 + $0x160] sm:$0xff]
        %v2289 = vld [vmem:[%s2259 + $0x168] sm:$0xff]
        %v2290 = vld [vmem:[%s2259 + $0x170] sm:$0xff]
        %v2291 = vld [vmem:[%s2259 + $0x178] sm:$0xff]
        %v2292 = vld [vmem:[%s2259 + $0x200] sm:$0xff]
        %v2293 = vld [vmem:[%s2259 + $0x208] sm:$0xff]
        %v2294 = vld [vmem:[%s2259 + $0x210] sm:$0xff]
        %v2295 = vld [vmem:[%s2259 + $0x218] sm:$0xff]
        %v2296 = vld [vmem:[%s2259 + $0x220] sm:$0xff]
        %v2297 = vld [vmem:[%s2259 + $0x228] sm:$0xff]
        %v2298 = vld [vmem:[%s2259 + $0x230] sm:$0xff]
        %v2299 = vld [vmem:[%s2259 + $0x238] sm:$0xff]
        %v2300 = vld [vmem:[%s2259 + $0x240] sm:$0xff]
        %v2301 = vld [vmem:[%s2259 + $0x248] sm:$0xff]
        %v2302 = vld [vmem:[%s2259 + $0x250] sm:$0xff]
        %v2303 = vld [vmem:[%s2259 + $0x258] sm:$0xff]
        %v2304 = vld [vmem:[%s2259 + $0x260] sm:$0xff]
        %v2305 = vld [vmem:[%s2259 + $0x268] sm:$0xff]
        %v2306 = vld [vmem:[%s2259 + $0x270] sm:$0xff]
        %v2307 = vld [vmem:[%s2259 + $0x278] sm:$0xff]
        %2308 = vxpose.xlu0.b32.start [1/16] %v2260, 128
        %2309 = vxpose.xlu0.b32.cont [2/16] 0.0, 128
        %2310 = vxpose.xlu0.b32.cont [3/16] 0.0, 128
        %2311 = vxpose.xlu0.b32.cont [4/16] 0.0, 128
        %2312 = vxpose.xlu0.b32.cont [5/16] 0.0, 128
        %2313 = vxpose.xlu0.b32.cont [6/16] 0.0, 128
        %2314 = vxpose.xlu0.b32.cont [7/16] 0.0, 128
        %2315 = vxpose.xlu0.b32.cont [8/16] 0.0, 128
        %2316 = vxpose.xlu0.b32.cont [9/16] 0.0, 128
        %2317 = vxpose.xlu0.b32.cont [10/16] 0.0, 128
        %2318 = vxpose.xlu0.b32.cont [11/16] 0.0, 128
        %2319 = vxpose.xlu0.b32.cont [12/16] 0.0, 128
        %2320 = vxpose.xlu0.b32.cont [13/16] 0.0, 128
        %2321 = vxpose.xlu0.b32.cont [14/16] 0.0, 128
        %2322 = vxpose.xlu0.b32.cont [15/16] 0.0, 128
        %2323 = vxpose.xlu0.b32.end [16/16] 0.0, 128
        %v2324 = vpop.trf.xlu0
        %v2325 = vpop.trf.xlu0
        %v2326 = vpop.trf.xlu0
        %v2327 = vpop.trf.xlu0
        %v2328 = vpop.trf.xlu0
        %v2329 = vpop.trf.xlu0
        %v2330 = vpop.trf.xlu0
        %v2331 = vpop.trf.xlu0
        %v2332 = vpop.trf.xlu0
        %v2333 = vpop.trf.xlu0
        %v2334 = vpop.trf.xlu0
        %v2335 = vpop.trf.xlu0
        %v2336 = vpop.trf.xlu0
        %v2337 = vpop.trf.xlu0
        %v2338 = vpop.trf.xlu0
        %v2339 = vpop.trf.xlu0
        %2340 = vxpose.xlu0.b32.start [1/16] %v2261, 128
        %2341 = vxpose.xlu0.b32.cont [2/16] 0.0, 128
        %2342 = vxpose.xlu0.b32.cont [3/16] 0.0, 128
        %2343 = vxpose.xlu0.b32.cont [4/16] 0.0, 128
        %2344 = vxpose.xlu0.b32.cont [5/16] 0.0, 128
        %2345 = vxpose.xlu0.b32.cont [6/16] 0.0, 128
        %2346 = vxpose.xlu0.b32.cont [7/16] 0.0, 128
        %2347 = vxpose.xlu0.b32.cont [8/16] 0.0, 128
        %2348 = vxpose.xlu0.b32.cont [9/16] 0.0, 128
        %2349 = vxpose.xlu0.b32.cont [10/16] 0.0, 128
        %2350 = vxpose.xlu0.b32.cont [11/16] 0.0, 128
        %2351 = vxpose.xlu0.b32.cont [12/16] 0.0, 128
        %2352 = vxpose.xlu0.b32.cont [13/16] 0.0, 128
        %2353 = vxpose.xlu0.b32.cont [14/16] 0.0, 128
        %2354 = vxpose.xlu0.b32.cont [15/16] 0.0, 128
        %2355 = vxpose.xlu0.b32.end [16/16] 0.0, 128
        %v2356 = vpop.trf.xlu0
        %v2357 = vpop.trf.xlu0
        %v2358 = vpop.trf.xlu0
        %v2359 = vpop.trf.xlu0
        %v2360 = vpop.trf.xlu0
        %v2361 = vpop.trf.xlu0
        %v2362 = vpop.trf.xlu0
        %v2363 = vpop.trf.xlu0
        %v2364 = vpop.trf.xlu0
        %v2365 = vpop.trf.xlu0
        %v2366 = vpop.trf.xlu0
        %v2367 = vpop.trf.xlu0
        %v2368 = vpop.trf.xlu0
        %v2369 = vpop.trf.xlu0
        %v2370 = vpop.trf.xlu0
        %v2371 = vpop.trf.xlu0
        %2372 = vxpose.xlu0.b32.start [1/16] %v2262, 128
        %2373 = vxpose.xlu0.b32.cont [2/16] 0.0, 128
        %2374 = vxpose.xlu0.b32.cont [3/16] 0.0, 128
        %2375 = vxpose.xlu0.b32.cont [4/16] 0.0, 128
        %2376 = vxpose.xlu0.b32.cont [5/16] 0.0, 128
        %2377 = vxpose.xlu0.b32.cont [6/16] 0.0, 128
        %2378 = vxpose.xlu0.b32.cont [7/16] 0.0, 128
        %2379 = vxpose.xlu0.b32.cont [8/16] 0.0, 128
        %2380 = vxpose.xlu0.b32.cont [9/16] 0.0, 128
        %2381 = vxpose.xlu0.b32.cont [10/16] 0.0, 128
        %2382 = vxpose.xlu0.b32.cont [11/16] 0.0, 128
        %2383 = vxpose.xlu0.b32.cont [12/16] 0.0, 128
        %2384 = vxpose.xlu0.b32.cont [13/16] 0.0, 128
        %2385 = vxpose.xlu0.b32.cont [14/16] 0.0, 128
        %2386 = vxpose.xlu0.b32.cont [15/16] 0.0, 128
        %2387 = vxpose.xlu0.b32.end [16/16] 0.0, 128
        %v2388 = vpop.trf.xlu0
        %v2389 = vpop.trf.xlu0
        %v2390 = vpop.trf.xlu0
        %v2391 = vpop.trf.xlu0
        %v2392 = vpop.trf.xlu0
        %v2393 = vpop.trf.xlu0
        %v2394 = vpop.trf.xlu0
        %v2395 = vpop.trf.xlu0
        %v2396 = vpop.trf.xlu0
        %v2397 = vpop.trf.xlu0
        %v2398 = vpop.trf.xlu0
        %v2399 = vpop.trf.xlu0
        %v2400 = vpop.trf.xlu0
        %v2401 = vpop.trf.xlu0
        %v2402 = vpop.trf.xlu0
        %v2403 = vpop.trf.xlu0
        %2404 = vxpose.xlu0.b32.start [1/16] %v2263, 128
        %2405 = vxpose.xlu0.b32.cont [2/16] 0.0, 128
        %2406 = vxpose.xlu0.b32.cont [3/16] 0.0, 128
        %2407 = vxpose.xlu0.b32.cont [4/16] 0.0, 128
        %2408 = vxpose.xlu0.b32.cont [5/16] 0.0, 128
        %2409 = vxpose.xlu0.b32.cont [6/16] 0.0, 128
        %2410 = vxpose.xlu0.b32.cont [7/16] 0.0, 128
        %2411 = vxpose.xlu0.b32.cont [8/16] 0.0, 128
        %2412 = vxpose.xlu0.b32.cont [9/16] 0.0, 128
        %2413 = vxpose.xlu0.b32.cont [10/16] 0.0, 128
        %2414 = vxpose.xlu0.b32.cont [11/16] 0.0, 128
        %2415 = vxpose.xlu0.b32.cont [12/16] 0.0, 128
        %2416 = vxpose.xlu0.b32.cont [13/16] 0.0, 128
        %2417 = vxpose.xlu0.b32.cont [14/16] 0.0, 128
        %2418 = vxpose.xlu0.b32.cont [15/16] 0.0, 128
        %2419 = vxpose.xlu0.b32.end [16/16] 0.0, 128
        %v2420 = vpop.trf.xlu0
        %v2421 = vpop.trf.xlu0
        %v2422 = vpop.trf.xlu0
        %v2423 = vpop.trf.xlu0
        %v2424 = vpop.trf.xlu0
        %v2425 = vpop.trf.xlu0
        %v2426 = vpop.trf.xlu0
        %v2427 = vpop.trf.xlu0
        %v2428 = vpop.trf.xlu0
        %v2429 = vpop.trf.xlu0
        %v2430 = vpop.trf.xlu0
        %v2431 = vpop.trf.xlu0
        %v2432 = vpop.trf.xlu0
        %v2433 = vpop.trf.xlu0
        %v2434 = vpop.trf.xlu0
        %v2435 = vpop.trf.xlu0
        %2436 = vxpose.xlu0.b32.start [1/16] %v2264, 128
        %2437 = vxpose.xlu0.b32.cont [2/16] 0.0, 128
        %2438 = vxpose.xlu0.b32.cont [3/16] 0.0, 128
        %2439 = vxpose.xlu0.b32.cont [4/16] 0.0, 128
        %2440 = vxpose.xlu0.b32.cont [5/16] 0.0, 128
        %2441 = vxpose.xlu0.b32.cont [6/16] 0.0, 128
        %2442 = vxpose.xlu0.b32.cont [7/16] 0.0, 128
        %2443 = vxpose.xlu0.b32.cont [8/16] 0.0, 128
        %2444 = vxpose.xlu0.b32.cont [9/16] 0.0, 128
        %2445 = vxpose.xlu0.b32.cont [10/16] 0.0, 128
        %2446 = vxpose.xlu0.b32.cont [11/16] 0.0, 128
        %2447 = vxpose.xlu0.b32.cont [12/16] 0.0, 128
        %2448 = vxpose.xlu0.b32.cont [13/16] 0.0, 128
        %2449 = vxpose.xlu0.b32.cont [14/16] 0.0, 128
        %2450 = vxpose.xlu0.b32.cont [15/16] 0.0, 128
        %2451 = vxpose.xlu0.b32.end [16/16] 0.0, 128
        %v2452 = vpop.trf.xlu0
        %v2453 = vpop.trf.xlu0
        %v2454 = vpop.trf.xlu0
        %v2455 = vpop.trf.xlu0
        %v2456 = vpop.trf.xlu0
        %v2457 = vpop.trf.xlu0
        %v2458 = vpop.trf.xlu0
        %v2459 = vpop.trf.xlu0
        %v2460 = vpop.trf.xlu0
        %v2461 = vpop.trf.xlu0
        %v2462 = vpop.trf.xlu0
        %v2463 = vpop.trf.xlu0
        %v2464 = vpop.trf.xlu0
        %v2465 = vpop.trf.xlu0
        %v2466 = vpop.trf.xlu0
        %v2467 = vpop.trf.xlu0
        %2468 = vxpose.xlu0.b32.start [1/16] %v2265, 128
        %2469 = vxpose.xlu0.b32.cont [2/16] 0.0, 128
        %2470 = vxpose.xlu0.b32.cont [3/16] 0.0, 128
        %2471 = vxpose.xlu0.b32.cont [4/16] 0.0, 128
        %2472 = vxpose.xlu0.b32.cont [5/16] 0.0, 128
        %2473 = vxpose.xlu0.b32.cont [6/16] 0.0, 128
        %2474 = vxpose.xlu0.b32.cont [7/16] 0.0, 128
        %2475 = vxpose.xlu0.b32.cont [8/16] 0.0, 128
        %2476 = vxpose.xlu0.b32.cont [9/16] 0.0, 128
        %2477 = vxpose.xlu0.b32.cont [10/16] 0.0, 128
        %2478 = vxpose.xlu0.b32.cont [11/16] 0.0, 128
        %2479 = vxpose.xlu0.b32.cont [12/16] 0.0, 128
        %2480 = vxpose.xlu0.b32.cont [13/16] 0.0, 128
        %2481 = vxpose.xlu0.b32.cont [14/16] 0.0, 128
        %2482 = vxpose.xlu0.b32.cont [15/16] 0.0, 128
        %2483 = vxpose.xlu0.b32.end [16/16] 0.0, 128
        %v2484 = vpop.trf.xlu0
        %v2485 = vpop.trf.xlu0
        %v2486 = vpop.trf.xlu0
        %v2487 = vpop.trf.xlu0
        %v2488 = vpop.trf.xlu0
        %v2489 = vpop.trf.xlu0
        %v2490 = vpop.trf.xlu0
        %v2491 = vpop.trf.xlu0
        %v2492 = vpop.trf.xlu0
        %v2493 = vpop.trf.xlu0
        %v2494 = vpop.trf.xlu0
        %v2495 = vpop.trf.xlu0
        %v2496 = vpop.trf.xlu0
        %v2497 = vpop.trf.xlu0
        %v2498 = vpop.trf.xlu0
        %v2499 = vpop.trf.xlu0
        %2500 = vxpose.xlu0.b32.start [1/16] %v2266, 128
        %2501 = vxpose.xlu0.b32.cont [2/16] 0.0, 128
        %2502 = vxpose.xlu0.b32.cont [3/16] 0.0, 128
        %2503 = vxpose.xlu0.b32.cont [4/16] 0.0, 128
        %2504 = vxpose.xlu0.b32.cont [5/16] 0.0, 128
        %2505 = vxpose.xlu0.b32.cont [6/16] 0.0, 128
        %2506 = vxpose.xlu0.b32.cont [7/16] 0.0, 128
        %2507 = vxpose.xlu0.b32.cont [8/16] 0.0, 128
        %2508 = vxpose.xlu0.b32.cont [9/16] 0.0, 128
        %2509 = vxpose.xlu0.b32.cont [10/16] 0.0, 128
        %2510 = vxpose.xlu0.b32.cont [11/16] 0.0, 128
        %2511 = vxpose.xlu0.b32.cont [12/16] 0.0, 128
        %2512 = vxpose.xlu0.b32.cont [13/16] 0.0, 128
        %2513 = vxpose.xlu0.b32.cont [14/16] 0.0, 128
        %2514 = vxpose.xlu0.b32.cont [15/16] 0.0, 128
        %2515 = vxpose.xlu0.b32.end [16/16] 0.0, 128
        %v2516 = vpop.trf.xlu0
        %v2517 = vpop.trf.xlu0
        %v2518 = vpop.trf.xlu0
        %v2519 = vpop.trf.xlu0
        %v2520 = vpop.trf.xlu0
        %v2521 = vpop.trf.xlu0
        %v2522 = vpop.trf.xlu0
        %v2523 = vpop.trf.xlu0
        %v2524 = vpop.trf.xlu0
        %v2525 = vpop.trf.xlu0
        %v2526 = vpop.trf.xlu0
        %v2527 = vpop.trf.xlu0
        %v2528 = vpop.trf.xlu0
        %v2529 = vpop.trf.xlu0
        %v2530 = vpop.trf.xlu0
        %v2531 = vpop.trf.xlu0
        %2532 = vxpose.xlu0.b32.start [1/16] %v2267, 128
        %2533 = vxpose.xlu0.b32.cont [2/16] 0.0, 128
        %2534 = vxpose.xlu0.b32.cont [3/16] 0.0, 128
        %2535 = vxpose.xlu0.b32.cont [4/16] 0.0, 128
        %2536 = vxpose.xlu0.b32.cont [5/16] 0.0, 128
        %2537 = vxpose.xlu0.b32.cont [6/16] 0.0, 128
        %2538 = vxpose.xlu0.b32.cont [7/16] 0.0, 128
        %2539 = vxpose.xlu0.b32.cont [8/16] 0.0, 128
        %2540 = vxpose.xlu0.b32.cont [9/16] 0.0, 128
        %2541 = vxpose.xlu0.b32.cont [10/16] 0.0, 128
        %2542 = vxpose.xlu0.b32.cont [11/16] 0.0, 128
        %2543 = vxpose.xlu0.b32.cont [12/16] 0.0, 128
        %2544 = vxpose.xlu0.b32.cont [13/16] 0.0, 128
        %2545 = vxpose.xlu0.b32.cont [14/16] 0.0, 128
        %2546 = vxpose.xlu0.b32.cont [15/16] 0.0, 128
        %2547 = vxpose.xlu0.b32.end [16/16] 0.0, 128
        %v2548 = vpop.trf.xlu0
        %v2549 = vpop.trf.xlu0
        %v2550 = vpop.trf.xlu0
        %v2551 = vpop.trf.xlu0
        %v2552 = vpop.trf.xlu0
        %v2553 = vpop.trf.xlu0
        %v2554 = vpop.trf.xlu0
        %v2555 = vpop.trf.xlu0
        %v2556 = vpop.trf.xlu0
        %v2557 = vpop.trf.xlu0
        %v2558 = vpop.trf.xlu0
        %v2559 = vpop.trf.xlu0
        %v2560 = vpop.trf.xlu0
        %v2561 = vpop.trf.xlu0
        %v2562 = vpop.trf.xlu0
        %v2563 = vpop.trf.xlu0
        %2564 = vxpose.xlu0.b32.start [1/16] %v2268, 128
        %2565 = vxpose.xlu0.b32.cont [2/16] 0.0, 128
        %2566 = vxpose.xlu0.b32.cont [3/16] 0.0, 128
        %2567 = vxpose.xlu0.b32.cont [4/16] 0.0, 128
        %2568 = vxpose.xlu0.b32.cont [5/16] 0.0, 128
        %2569 = vxpose.xlu0.b32.cont [6/16] 0.0, 128
        %2570 = vxpose.xlu0.b32.cont [7/16] 0.0, 128
        %2571 = vxpose.xlu0.b32.cont [8/16] 0.0, 128
        %2572 = vxpose.xlu0.b32.cont [9/16] 0.0, 128
        %2573 = vxpose.xlu0.b32.cont [10/16] 0.0, 128
        %2574 = vxpose.xlu0.b32.cont [11/16] 0.0, 128
        %2575 = vxpose.xlu0.b32.cont [12/16] 0.0, 128
        %2576 = vxpose.xlu0.b32.cont [13/16] 0.0, 128
        %2577 = vxpose.xlu0.b32.cont [14/16] 0.0, 128
        %2578 = vxpose.xlu0.b32.cont [15/16] 0.0, 128
        %2579 = vxpose.xlu0.b32.end [16/16] 0.0, 128
        %v2580 = vpop.trf.xlu0
        %v2581 = vpop.trf.xlu0
        %v2582 = vpop.trf.xlu0
        %v2583 = vpop.trf.xlu0
        %v2584 = vpop.trf.xlu0
        %v2585 = vpop.trf.xlu0
        %v2586 = vpop.trf.xlu0
        %v2587 = vpop.trf.xlu0
        %v2588 = vpop.trf.xlu0
        %v2589 = vpop.trf.xlu0
        %v2590 = vpop.trf.xlu0
        %v2591 = vpop.trf.xlu0
        %v2592 = vpop.trf.xlu0
        %v2593 = vpop.trf.xlu0
        %v2594 = vpop.trf.xlu0
        %v2595 = vpop.trf.xlu0
        %2596 = vxpose.xlu0.b32.start [1/16] %v2269, 128
        %2597 = vxpose.xlu0.b32.cont [2/16] 0.0, 128
        %2598 = vxpose.xlu0.b32.cont [3/16] 0.0, 128
        %2599 = vxpose.xlu0.b32.cont [4/16] 0.0, 128
        %2600 = vxpose.xlu0.b32.cont [5/16] 0.0, 128
        %2601 = vxpose.xlu0.b32.cont [6/16] 0.0, 128
        %2602 = vxpose.xlu0.b32.cont [7/16] 0.0, 128
        %2603 = vxpose.xlu0.b32.cont [8/16] 0.0, 128
        %2604 = vxpose.xlu0.b32.cont [9/16] 0.0, 128
        %2605 = vxpose.xlu0.b32.cont [10/16] 0.0, 128
        %2606 = vxpose.xlu0.b32.cont [11/16] 0.0, 128
        %2607 = vxpose.xlu0.b32.cont [12/16] 0.0, 128
        %2608 = vxpose.xlu0.b32.cont [13/16] 0.0, 128
        %2609 = vxpose.xlu0.b32.cont [14/16] 0.0, 128
        %2610 = vxpose.xlu0.b32.cont [15/16] 0.0, 128
        %2611 = vxpose.xlu0.b32.end [16/16] 0.0, 128
        %v2612 = vpop.trf.xlu0
        %v2613 = vpop.trf.xlu0
        %v2614 = vpop.trf.xlu0
        %v2615 = vpop.trf.xlu0
        %v2616 = vpop.trf.xlu0
        %v2617 = vpop.trf.xlu0
        %v2618 = vpop.trf.xlu0
        %v2619 = vpop.trf.xlu0
        %v2620 = vpop.trf.xlu0
        %v2621 = vpop.trf.xlu0
        %v2622 = vpop.trf.xlu0
        %v2623 = vpop.trf.xlu0
        %v2624 = vpop.trf.xlu0
        %v2625 = vpop.trf.xlu0
        %v2626 = vpop.trf.xlu0
        %v2627 = vpop.trf.xlu0
        %2628 = vxpose.xlu0.b32.start [1/16] %v2270, 128
        %2629 = vxpose.xlu0.b32.cont [2/16] 0.0, 128
        %2630 = vxpose.xlu0.b32.cont [3/16] 0.0, 128
        %2631 = vxpose.xlu0.b32.cont [4/16] 0.0, 128
        %2632 = vxpose.xlu0.b32.cont [5/16] 0.0, 128
        %2633 = vxpose.xlu0.b32.cont [6/16] 0.0, 128
        %2634 = vxpose.xlu0.b32.cont [7/16] 0.0, 128
        %2635 = vxpose.xlu0.b32.cont [8/16] 0.0, 128
        %2636 = vxpose.xlu0.b32.cont [9/16] 0.0, 128
        %2637 = vxpose.xlu0.b32.cont [10/16] 0.0, 128
        %2638 = vxpose.xlu0.b32.cont [11/16] 0.0, 128
        %2639 = vxpose.xlu0.b32.cont [12/16] 0.0, 128
        %2640 = vxpose.xlu0.b32.cont [13/16] 0.0, 128
        %2641 = vxpose.xlu0.b32.cont [14/16] 0.0, 128
        %2642 = vxpose.xlu0.b32.cont [15/16] 0.0, 128
        %2643 = vxpose.xlu0.b32.end [16/16] 0.0, 128
        %v2644 = vpop.trf.xlu0
        %v2645 = vpop.trf.xlu0
        %v2646 = vpop.trf.xlu0
        %v2647 = vpop.trf.xlu0
        %v2648 = vpop.trf.xlu0
        %v2649 = vpop.trf.xlu0
        %v2650 = vpop.trf.xlu0
        %v2651 = vpop.trf.xlu0
        %v2652 = vpop.trf.xlu0
        %v2653 = vpop.trf.xlu0
        %v2654 = vpop.trf.xlu0
        %v2655 = vpop.trf.xlu0
        %v2656 = vpop.trf.xlu0
        %v2657 = vpop.trf.xlu0
        %v2658 = vpop.trf.xlu0
        %v2659 = vpop.trf.xlu0
        %2660 = vxpose.xlu0.b32.start [1/16] %v2271, 128
        %2661 = vxpose.xlu0.b32.cont [2/16] 0.0, 128
        %2662 = vxpose.xlu0.b32.cont [3/16] 0.0, 128
        %2663 = vxpose.xlu0.b32.cont [4/16] 0.0, 128
        %2664 = vxpose.xlu0.b32.cont [5/16] 0.0, 128
        %2665 = vxpose.xlu0.b32.cont [6/16] 0.0, 128
        %2666 = vxpose.xlu0.b32.cont [7/16] 0.0, 128
        %2667 = vxpose.xlu0.b32.cont [8/16] 0.0, 128
        %2668 = vxpose.xlu0.b32.cont [9/16] 0.0, 128
        %2669 = vxpose.xlu0.b32.cont [10/16] 0.0, 128
        %2670 = vxpose.xlu0.b32.cont [11/16] 0.0, 128
        %2671 = vxpose.xlu0.b32.cont [12/16] 0.0, 128
        %2672 = vxpose.xlu0.b32.cont [13/16] 0.0, 128
        %2673 = vxpose.xlu0.b32.cont [14/16] 0.0, 128
        %2674 = vxpose.xlu0.b32.cont [15/16] 0.0, 128
        %2675 = vxpose.xlu0.b32.end [16/16] 0.0, 128
        %v2676 = vpop.trf.xlu0
        %v2677 = vpop.trf.xlu0
        %v2678 = vpop.trf.xlu0
        %v2679 = vpop.trf.xlu0
        %v2680 = vpop.trf.xlu0
        %v2681 = vpop.trf.xlu0
        %v2682 = vpop.trf.xlu0
        %v2683 = vpop.trf.xlu0
        %v2684 = vpop.trf.xlu0
        %v2685 = vpop.trf.xlu0
        %v2686 = vpop.trf.xlu0
        %v2687 = vpop.trf.xlu0
        %v2688 = vpop.trf.xlu0
        %v2689 = vpop.trf.xlu0
        %v2690 = vpop.trf.xlu0
        %v2691 = vpop.trf.xlu0
        %2692 = vxpose.xlu0.b32.start [1/16] %v2272, 128
        %2693 = vxpose.xlu0.b32.cont [2/16] 0.0, 128
        %2694 = vxpose.xlu0.b32.cont [3/16] 0.0, 128
        %2695 = vxpose.xlu0.b32.cont [4/16] 0.0, 128
        %2696 = vxpose.xlu0.b32.cont [5/16] 0.0, 128
        %2697 = vxpose.xlu0.b32.cont [6/16] 0.0, 128
        %2698 = vxpose.xlu0.b32.cont [7/16] 0.0, 128
        %2699 = vxpose.xlu0.b32.cont [8/16] 0.0, 128
        %2700 = vxpose.xlu0.b32.cont [9/16] 0.0, 128
        %2701 = vxpose.xlu0.b32.cont [10/16] 0.0, 128
        %2702 = vxpose.xlu0.b32.cont [11/16] 0.0, 128
        %2703 = vxpose.xlu0.b32.cont [12/16] 0.0, 128
        %2704 = vxpose.xlu0.b32.cont [13/16] 0.0, 128
        %2705 = vxpose.xlu0.b32.cont [14/16] 0.0, 128
        %2706 = vxpose.xlu0.b32.cont [15/16] 0.0, 128
        %2707 = vxpose.xlu0.b32.end [16/16] 0.0, 128
        %v2708 = vpop.trf.xlu0
        %v2709 = vpop.trf.xlu0
        %v2710 = vpop.trf.xlu0
        %v2711 = vpop.trf.xlu0
        %v2712 = vpop.trf.xlu0
        %v2713 = vpop.trf.xlu0
        %v2714 = vpop.trf.xlu0
        %v2715 = vpop.trf.xlu0
        %v2716 = vpop.trf.xlu0
        %v2717 = vpop.trf.xlu0
        %v2718 = vpop.trf.xlu0
        %v2719 = vpop.trf.xlu0
        %v2720 = vpop.trf.xlu0
        %v2721 = vpop.trf.xlu0
        %v2722 = vpop.trf.xlu0
        %v2723 = vpop.trf.xlu0
        %2724 = vxpose.xlu0.b32.start [1/16] %v2273, 128
        %2725 = vxpose.xlu0.b32.cont [2/16] 0.0, 128
        %2726 = vxpose.xlu0.b32.cont [3/16] 0.0, 128
        %2727 = vxpose.xlu0.b32.cont [4/16] 0.0, 128
        %2728 = vxpose.xlu0.b32.cont [5/16] 0.0, 128
        %2729 = vxpose.xlu0.b32.cont [6/16] 0.0, 128
        %2730 = vxpose.xlu0.b32.cont [7/16] 0.0, 128
        %2731 = vxpose.xlu0.b32.cont [8/16] 0.0, 128
        %2732 = vxpose.xlu0.b32.cont [9/16] 0.0, 128
        %2733 = vxpose.xlu0.b32.cont [10/16] 0.0, 128
        %2734 = vxpose.xlu0.b32.cont [11/16] 0.0, 128
        %2735 = vxpose.xlu0.b32.cont [12/16] 0.0, 128
        %2736 = vxpose.xlu0.b32.cont [13/16] 0.0, 128
        %2737 = vxpose.xlu0.b32.cont [14/16] 0.0, 128
        %2738 = vxpose.xlu0.b32.cont [15/16] 0.0, 128
        %2739 = vxpose.xlu0.b32.end [16/16] 0.0, 128
        %v2740 = vpop.trf.xlu0
        %v2741 = vpop.trf.xlu0
        %v2742 = vpop.trf.xlu0
        %v2743 = vpop.trf.xlu0
        %v2744 = vpop.trf.xlu0
        %v2745 = vpop.trf.xlu0
        %v2746 = vpop.trf.xlu0
        %v2747 = vpop.trf.xlu0
        %v2748 = vpop.trf.xlu0
        %v2749 = vpop.trf.xlu0
        %v2750 = vpop.trf.xlu0
        %v2751 = vpop.trf.xlu0
        %v2752 = vpop.trf.xlu0
        %v2753 = vpop.trf.xlu0
        %v2754 = vpop.trf.xlu0
        %v2755 = vpop.trf.xlu0
        %2756 = vxpose.xlu0.b32.start [1/16] %v2274, 128
        %2757 = vxpose.xlu0.b32.cont [2/16] 0.0, 128
        %2758 = vxpose.xlu0.b32.cont [3/16] 0.0, 128
        %2759 = vxpose.xlu0.b32.cont [4/16] 0.0, 128
        %2760 = vxpose.xlu0.b32.cont [5/16] 0.0, 128
        %2761 = vxpose.xlu0.b32.cont [6/16] 0.0, 128
        %2762 = vxpose.xlu0.b32.cont [7/16] 0.0, 128
        %2763 = vxpose.xlu0.b32.cont [8/16] 0.0, 128
        %2764 = vxpose.xlu0.b32.cont [9/16] 0.0, 128
        %2765 = vxpose.xlu0.b32.cont [10/16] 0.0, 128
        %2766 = vxpose.xlu0.b32.cont [11/16] 0.0, 128
        %2767 = vxpose.xlu0.b32.cont [12/16] 0.0, 128
        %2768 = vxpose.xlu0.b32.cont [13/16] 0.0, 128
        %2769 = vxpose.xlu0.b32.cont [14/16] 0.0, 128
        %2770 = vxpose.xlu0.b32.cont [15/16] 0.0, 128
        %2771 = vxpose.xlu0.b32.end [16/16] 0.0, 128
        %v2772 = vpop.trf.xlu0
        %v2773 = vpop.trf.xlu0
        %v2774 = vpop.trf.xlu0
        %v2775 = vpop.trf.xlu0
        %v2776 = vpop.trf.xlu0
        %v2777 = vpop.trf.xlu0
        %v2778 = vpop.trf.xlu0
        %v2779 = vpop.trf.xlu0
        %v2780 = vpop.trf.xlu0
        %v2781 = vpop.trf.xlu0
        %v2782 = vpop.trf.xlu0
        %v2783 = vpop.trf.xlu0
        %v2784 = vpop.trf.xlu0
        %v2785 = vpop.trf.xlu0
        %v2786 = vpop.trf.xlu0
        %v2787 = vpop.trf.xlu0
        %2788 = vxpose.xlu0.b32.start [1/16] %v2275, 128
        %2789 = vxpose.xlu0.b32.cont [2/16] 0.0, 128
        %2790 = vxpose.xlu0.b32.cont [3/16] 0.0, 128
        %2791 = vxpose.xlu0.b32.cont [4/16] 0.0, 128
        %2792 = vxpose.xlu0.b32.cont [5/16] 0.0, 128
        %2793 = vxpose.xlu0.b32.cont [6/16] 0.0, 128
        %2794 = vxpose.xlu0.b32.cont [7/16] 0.0, 128
        %2795 = vxpose.xlu0.b32.cont [8/16] 0.0, 128
        %2796 = vxpose.xlu0.b32.cont [9/16] 0.0, 128
        %2797 = vxpose.xlu0.b32.cont [10/16] 0.0, 128
        %2798 = vxpose.xlu0.b32.cont [11/16] 0.0, 128
        %2799 = vxpose.xlu0.b32.cont [12/16] 0.0, 128
        %2800 = vxpose.xlu0.b32.cont [13/16] 0.0, 128
        %2801 = vxpose.xlu0.b32.cont [14/16] 0.0, 128
        %2802 = vxpose.xlu0.b32.cont [15/16] 0.0, 128
        %2803 = vxpose.xlu0.b32.end [16/16] 0.0, 128
        %v2804 = vpop.trf.xlu0
        %v2805 = vpop.trf.xlu0
        %v2806 = vpop.trf.xlu0
        %v2807 = vpop.trf.xlu0
        %v2808 = vpop.trf.xlu0
        %v2809 = vpop.trf.xlu0
        %v2810 = vpop.trf.xlu0
        %v2811 = vpop.trf.xlu0
        %v2812 = vpop.trf.xlu0
        %v2813 = vpop.trf.xlu0
        %v2814 = vpop.trf.xlu0
        %v2815 = vpop.trf.xlu0
        %v2816 = vpop.trf.xlu0
        %v2817 = vpop.trf.xlu0
        %v2818 = vpop.trf.xlu0
        %v2819 = vpop.trf.xlu0
        %2820 = vxpose.xlu0.b32.start [1/16] %v2276, 128
        %2821 = vxpose.xlu0.b32.cont [2/16] 0.0, 128
        %2822 = vxpose.xlu0.b32.cont [3/16] 0.0, 128
        %2823 = vxpose.xlu0.b32.cont [4/16] 0.0, 128
        %2824 = vxpose.xlu0.b32.cont [5/16] 0.0, 128
        %2825 = vxpose.xlu0.b32.cont [6/16] 0.0, 128
        %2826 = vxpose.xlu0.b32.cont [7/16] 0.0, 128
        %2827 = vxpose.xlu0.b32.cont [8/16] 0.0, 128
        %2828 = vxpose.xlu0.b32.cont [9/16] 0.0, 128
        %2829 = vxpose.xlu0.b32.cont [10/16] 0.0, 128
        %2830 = vxpose.xlu0.b32.cont [11/16] 0.0, 128
        %2831 = vxpose.xlu0.b32.cont [12/16] 0.0, 128
        %2832 = vxpose.xlu0.b32.cont [13/16] 0.0, 128
        %2833 = vxpose.xlu0.b32.cont [14/16] 0.0, 128
        %2834 = vxpose.xlu0.b32.cont [15/16] 0.0, 128
        %2835 = vxpose.xlu0.b32.end [16/16] 0.0, 128
        %v2836 = vpop.trf.xlu0
        %v2837 = vpop.trf.xlu0
        %v2838 = vpop.trf.xlu0
        %v2839 = vpop.trf.xlu0
        %v2840 = vpop.trf.xlu0
        %v2841 = vpop.trf.xlu0
        %v2842 = vpop.trf.xlu0
        %v2843 = vpop.trf.xlu0
        %v2844 = vpop.trf.xlu0
        %v2845 = vpop.trf.xlu0
        %v2846 = vpop.trf.xlu0
        %v2847 = vpop.trf.xlu0
        %v2848 = vpop.trf.xlu0
        %v2849 = vpop.trf.xlu0
        %v2850 = vpop.trf.xlu0
        %v2851 = vpop.trf.xlu0
        %2852 = vxpose.xlu0.b32.start [1/16] %v2277, 128
        %2853 = vxpose.xlu0.b32.cont [2/16] 0.0, 128
        %2854 = vxpose.xlu0.b32.cont [3/16] 0.0, 128
        %2855 = vxpose.xlu0.b32.cont [4/16] 0.0, 128
        %2856 = vxpose.xlu0.b32.cont [5/16] 0.0, 128
        %2857 = vxpose.xlu0.b32.cont [6/16] 0.0, 128
        %2858 = vxpose.xlu0.b32.cont [7/16] 0.0, 128
        %2859 = vxpose.xlu0.b32.cont [8/16] 0.0, 128
        %2860 = vxpose.xlu0.b32.cont [9/16] 0.0, 128
        %2861 = vxpose.xlu0.b32.cont [10/16] 0.0, 128
        %2862 = vxpose.xlu0.b32.cont [11/16] 0.0, 128
        %2863 = vxpose.xlu0.b32.cont [12/16] 0.0, 128
        %2864 = vxpose.xlu0.b32.cont [13/16] 0.0, 128
        %2865 = vxpose.xlu0.b32.cont [14/16] 0.0, 128
        %2866 = vxpose.xlu0.b32.cont [15/16] 0.0, 128
        %2867 = vxpose.xlu0.b32.end [16/16] 0.0, 128
        %v2868 = vpop.trf.xlu0
        %v2869 = vpop.trf.xlu0
        %v2870 = vpop.trf.xlu0
        %v2871 = vpop.trf.xlu0
        %v2872 = vpop.trf.xlu0
        %v2873 = vpop.trf.xlu0
        %v2874 = vpop.trf.xlu0
        %v2875 = vpop.trf.xlu0
        %v2876 = vpop.trf.xlu0
        %v2877 = vpop.trf.xlu0
        %v2878 = vpop.trf.xlu0
        %v2879 = vpop.trf.xlu0
        %v2880 = vpop.trf.xlu0
        %v2881 = vpop.trf.xlu0
        %v2882 = vpop.trf.xlu0
        %v2883 = vpop.trf.xlu0
        %2884 = vxpose.xlu0.b32.start [1/16] %v2278, 128
        %2885 = vxpose.xlu0.b32.cont [2/16] 0.0, 128
        %2886 = vxpose.xlu0.b32.cont [3/16] 0.0, 128
        %2887 = vxpose.xlu0.b32.cont [4/16] 0.0, 128
        %2888 = vxpose.xlu0.b32.cont [5/16] 0.0, 128
        %2889 = vxpose.xlu0.b32.cont [6/16] 0.0, 128
        %2890 = vxpose.xlu0.b32.cont [7/16] 0.0, 128
        %2891 = vxpose.xlu0.b32.cont [8/16] 0.0, 128
        %2892 = vxpose.xlu0.b32.cont [9/16] 0.0, 128
        %2893 = vxpose.xlu0.b32.cont [10/16] 0.0, 128
        %2894 = vxpose.xlu0.b32.cont [11/16] 0.0, 128
        %2895 = vxpose.xlu0.b32.cont [12/16] 0.0, 128
        %2896 = vxpose.xlu0.b32.cont [13/16] 0.0, 128
        %2897 = vxpose.xlu0.b32.cont [14/16] 0.0, 128
        %2898 = vxpose.xlu0.b32.cont [15/16] 0.0, 128
        %2899 = vxpose.xlu0.b32.end [16/16] 0.0, 128
        %v2900 = vpop.trf.xlu0
        %v2901 = vpop.trf.xlu0
        %v2902 = vpop.trf.xlu0
        %v2903 = vpop.trf.xlu0
        %v2904 = vpop.trf.xlu0
        %v2905 = vpop.trf.xlu0
        %v2906 = vpop.trf.xlu0
        %v2907 = vpop.trf.xlu0
        %v2908 = vpop.trf.xlu0
        %v2909 = vpop.trf.xlu0
        %v2910 = vpop.trf.xlu0
        %v2911 = vpop.trf.xlu0
        %v2912 = vpop.trf.xlu0
        %v2913 = vpop.trf.xlu0
        %v2914 = vpop.trf.xlu0
        %v2915 = vpop.trf.xlu0
        %2916 = vxpose.xlu0.b32.start [1/16] %v2279, 128
        %2917 = vxpose.xlu0.b32.cont [2/16] 0.0, 128
        %2918 = vxpose.xlu0.b32.cont [3/16] 0.0, 128
        %2919 = vxpose.xlu0.b32.cont [4/16] 0.0, 128
        %2920 = vxpose.xlu0.b32.cont [5/16] 0.0, 128
        %2921 = vxpose.xlu0.b32.cont [6/16] 0.0, 128
        %2922 = vxpose.xlu0.b32.cont [7/16] 0.0, 128
        %2923 = vxpose.xlu0.b32.cont [8/16] 0.0, 128
        %2924 = vxpose.xlu0.b32.cont [9/16] 0.0, 128
        %2925 = vxpose.xlu0.b32.cont [10/16] 0.0, 128
        %2926 = vxpose.xlu0.b32.cont [11/16] 0.0, 128
        %2927 = vxpose.xlu0.b32.cont [12/16] 0.0, 128
        %2928 = vxpose.xlu0.b32.cont [13/16] 0.0, 128
        %2929 = vxpose.xlu0.b32.cont [14/16] 0.0, 128
        %2930 = vxpose.xlu0.b32.cont [15/16] 0.0, 128
        %2931 = vxpose.xlu0.b32.end [16/16] 0.0, 128
        %v2932 = vpop.trf.xlu0
        %v2933 = vpop.trf.xlu0
        %v2934 = vpop.trf.xlu0
        %v2935 = vpop.trf.xlu0
        %v2936 = vpop.trf.xlu0
        %v2937 = vpop.trf.xlu0
        %v2938 = vpop.trf.xlu0
        %v2939 = vpop.trf.xlu0
        %v2940 = vpop.trf.xlu0
        %v2941 = vpop.trf.xlu0
        %v2942 = vpop.trf.xlu0
        %v2943 = vpop.trf.xlu0
        %v2944 = vpop.trf.xlu0
        %v2945 = vpop.trf.xlu0
        %v2946 = vpop.trf.xlu0
        %v2947 = vpop.trf.xlu0
        %2948 = vxpose.xlu0.b32.start [1/16] %v2280, 128
        %2949 = vxpose.xlu0.b32.cont [2/16] 0.0, 128
        %2950 = vxpose.xlu0.b32.cont [3/16] 0.0, 128
        %2951 = vxpose.xlu0.b32.cont [4/16] 0.0, 128
        %2952 = vxpose.xlu0.b32.cont [5/16] 0.0, 128
        %2953 = vxpose.xlu0.b32.cont [6/16] 0.0, 128
        %2954 = vxpose.xlu0.b32.cont [7/16] 0.0, 128
        %2955 = vxpose.xlu0.b32.cont [8/16] 0.0, 128
        %2956 = vxpose.xlu0.b32.cont [9/16] 0.0, 128
        %2957 = vxpose.xlu0.b32.cont [10/16] 0.0, 128
        %2958 = vxpose.xlu0.b32.cont [11/16] 0.0, 128
        %2959 = vxpose.xlu0.b32.cont [12/16] 0.0, 128
        %2960 = vxpose.xlu0.b32.cont [13/16] 0.0, 128
        %2961 = vxpose.xlu0.b32.cont [14/16] 0.0, 128
        %2962 = vxpose.xlu0.b32.cont [15/16] 0.0, 128
        %2963 = vxpose.xlu0.b32.end [16/16] 0.0, 128
        %v2964 = vpop.trf.xlu0
        %v2965 = vpop.trf.xlu0
        %v2966 = vpop.trf.xlu0
        %v2967 = vpop.trf.xlu0
        %v2968 = vpop.trf.xlu0
        %v2969 = vpop.trf.xlu0
        %v2970 = vpop.trf.xlu0
        %v2971 = vpop.trf.xlu0
        %v2972 = vpop.trf.xlu0
        %v2973 = vpop.trf.xlu0
        %v2974 = vpop.trf.xlu0
        %v2975 = vpop.trf.xlu0
        %v2976 = vpop.trf.xlu0
        %v2977 = vpop.trf.xlu0
        %v2978 = vpop.trf.xlu0
        %v2979 = vpop.trf.xlu0
        %2980 = vxpose.xlu0.b32.start [1/16] %v2281, 128
        %2981 = vxpose.xlu0.b32.cont [2/16] 0.0, 128
        %2982 = vxpose.xlu0.b32.cont [3/16] 0.0, 128
        %2983 = vxpose.xlu0.b32.cont [4/16] 0.0, 128
        %2984 = vxpose.xlu0.b32.cont [5/16] 0.0, 128
        %2985 = vxpose.xlu0.b32.cont [6/16] 0.0, 128
        %2986 = vxpose.xlu0.b32.cont [7/16] 0.0, 128
        %2987 = vxpose.xlu0.b32.cont [8/16] 0.0, 128
        %2988 = vxpose.xlu0.b32.cont [9/16] 0.0, 128
        %2989 = vxpose.xlu0.b32.cont [10/16] 0.0, 128
        %2990 = vxpose.xlu0.b32.cont [11/16] 0.0, 128
        %2991 = vxpose.xlu0.b32.cont [12/16] 0.0, 128
        %2992 = vxpose.xlu0.b32.cont [13/16] 0.0, 128
        %2993 = vxpose.xlu0.b32.cont [14/16] 0.0, 128
        %2994 = vxpose.xlu0.b32.cont [15/16] 0.0, 128
        %2995 = vxpose.xlu0.b32.end [16/16] 0.0, 128
        %v2996 = vpop.trf.xlu0
        %v2997 = vpop.trf.xlu0
        %v2998 = vpop.trf.xlu0
        %v2999 = vpop.trf.xlu0
        %v3000 = vpop.trf.xlu0
        %v3001 = vpop.trf.xlu0
        %v3002 = vpop.trf.xlu0
        %v3003 = vpop.trf.xlu0
        %v3004 = vpop.trf.xlu0
        %v3005 = vpop.trf.xlu0
        %v3006 = vpop.trf.xlu0
        %v3007 = vpop.trf.xlu0
        %v3008 = vpop.trf.xlu0
        %v3009 = vpop.trf.xlu0
        %v3010 = vpop.trf.xlu0
        %v3011 = vpop.trf.xlu0
        %3012 = vxpose.xlu0.b32.start [1/16] %v2282, 128
        %3013 = vxpose.xlu0.b32.cont [2/16] 0.0, 128
        %3014 = vxpose.xlu0.b32.cont [3/16] 0.0, 128
        %3015 = vxpose.xlu0.b32.cont [4/16] 0.0, 128
        %3016 = vxpose.xlu0.b32.cont [5/16] 0.0, 128
        %3017 = vxpose.xlu0.b32.cont [6/16] 0.0, 128
        %3018 = vxpose.xlu0.b32.cont [7/16] 0.0, 128
        %3019 = vxpose.xlu0.b32.cont [8/16] 0.0, 128
        %3020 = vxpose.xlu0.b32.cont [9/16] 0.0, 128
        %3021 = vxpose.xlu0.b32.cont [10/16] 0.0, 128
        %3022 = vxpose.xlu0.b32.cont [11/16] 0.0, 128
        %3023 = vxpose.xlu0.b32.cont [12/16] 0.0, 128
        %3024 = vxpose.xlu0.b32.cont [13/16] 0.0, 128
        %3025 = vxpose.xlu0.b32.cont [14/16] 0.0, 128
        %3026 = vxpose.xlu0.b32.cont [15/16] 0.0, 128
        %3027 = vxpose.xlu0.b32.end [16/16] 0.0, 128
        %v3028 = vpop.trf.xlu0
        %v3029 = vpop.trf.xlu0
        %v3030 = vpop.trf.xlu0
        %v3031 = vpop.trf.xlu0
        %v3032 = vpop.trf.xlu0
        %v3033 = vpop.trf.xlu0
        %v3034 = vpop.trf.xlu0
        %v3035 = vpop.trf.xlu0
        %v3036 = vpop.trf.xlu0
        %v3037 = vpop.trf.xlu0
        %v3038 = vpop.trf.xlu0
        %v3039 = vpop.trf.xlu0
        %v3040 = vpop.trf.xlu0
        %v3041 = vpop.trf.xlu0
        %v3042 = vpop.trf.xlu0
        %v3043 = vpop.trf.xlu0
        %3044 = vxpose.xlu0.b32.start [1/16] %v2283, 128
        %3045 = vxpose.xlu0.b32.cont [2/16] 0.0, 128
        %3046 = vxpose.xlu0.b32.cont [3/16] 0.0, 128
        %3047 = vxpose.xlu0.b32.cont [4/16] 0.0, 128
        %3048 = vxpose.xlu0.b32.cont [5/16] 0.0, 128
        %3049 = vxpose.xlu0.b32.cont [6/16] 0.0, 128
        %3050 = vxpose.xlu0.b32.cont [7/16] 0.0, 128
        %3051 = vxpose.xlu0.b32.cont [8/16] 0.0, 128
        %3052 = vxpose.xlu0.b32.cont [9/16] 0.0, 128
        %3053 = vxpose.xlu0.b32.cont [10/16] 0.0, 128
        %3054 = vxpose.xlu0.b32.cont [11/16] 0.0, 128
        %3055 = vxpose.xlu0.b32.cont [12/16] 0.0, 128
        %3056 = vxpose.xlu0.b32.cont [13/16] 0.0, 128
        %3057 = vxpose.xlu0.b32.cont [14/16] 0.0, 128
        %3058 = vxpose.xlu0.b32.cont [15/16] 0.0, 128
        %3059 = vxpose.xlu0.b32.end [16/16] 0.0, 128
        %v3060 = vpop.trf.xlu0
        %v3061 = vpop.trf.xlu0
        %v3062 = vpop.trf.xlu0
        %v3063 = vpop.trf.xlu0
        %v3064 = vpop.trf.xlu0
        %v3065 = vpop.trf.xlu0
        %v3066 = vpop.trf.xlu0
        %v3067 = vpop.trf.xlu0
        %v3068 = vpop.trf.xlu0
        %v3069 = vpop.trf.xlu0
        %v3070 = vpop.trf.xlu0
        %v3071 = vpop.trf.xlu0
        %v3072 = vpop.trf.xlu0
        %v3073 = vpop.trf.xlu0
        %v3074 = vpop.trf.xlu0
        %v3075 = vpop.trf.xlu0
        %3076 = vxpose.xlu0.b32.start [1/16] %v2284, 128
        %3077 = vxpose.xlu0.b32.cont [2/16] 0.0, 128
        %3078 = vxpose.xlu0.b32.cont [3/16] 0.0, 128
        %3079 = vxpose.xlu0.b32.cont [4/16] 0.0, 128
        %3080 = vxpose.xlu0.b32.cont [5/16] 0.0, 128
        %3081 = vxpose.xlu0.b32.cont [6/16] 0.0, 128
        %3082 = vxpose.xlu0.b32.cont [7/16] 0.0, 128
        %3083 = vxpose.xlu0.b32.cont [8/16] 0.0, 128
        %3084 = vxpose.xlu0.b32.cont [9/16] 0.0, 128
        %3085 = vxpose.xlu0.b32.cont [10/16] 0.0, 128
        %3086 = vxpose.xlu0.b32.cont [11/16] 0.0, 128
        %3087 = vxpose.xlu0.b32.cont [12/16] 0.0, 128
        %3088 = vxpose.xlu0.b32.cont [13/16] 0.0, 128
        %3089 = vxpose.xlu0.b32.cont [14/16] 0.0, 128
        %3090 = vxpose.xlu0.b32.cont [15/16] 0.0, 128
        %3091 = vxpose.xlu0.b32.end [16/16] 0.0, 128
        %v3092 = vpop.trf.xlu0
        %v3093 = vpop.trf.xlu0
        %v3094 = vpop.trf.xlu0
        %v3095 = vpop.trf.xlu0
        %v3096 = vpop.trf.xlu0
        %v3097 = vpop.trf.xlu0
        %v3098 = vpop.trf.xlu0
        %v3099 = vpop.trf.xlu0
        %v3100 = vpop.trf.xlu0
        %v3101 = vpop.trf.xlu0
        %v3102 = vpop.trf.xlu0
        %v3103 = vpop.trf.xlu0
        %v3104 = vpop.trf.xlu0
        %v3105 = vpop.trf.xlu0
        %v3106 = vpop.trf.xlu0
        %v3107 = vpop.trf.xlu0
        %3108 = vxpose.xlu0.b32.start [1/16] %v2285, 128
        %3109 = vxpose.xlu0.b32.cont [2/16] 0.0, 128
        %3110 = vxpose.xlu0.b32.cont [3/16] 0.0, 128
        %3111 = vxpose.xlu0.b32.cont [4/16] 0.0, 128
        %3112 = vxpose.xlu0.b32.cont [5/16] 0.0, 128
        %3113 = vxpose.xlu0.b32.cont [6/16] 0.0, 128
        %3114 = vxpose.xlu0.b32.cont [7/16] 0.0, 128
        %3115 = vxpose.xlu0.b32.cont [8/16] 0.0, 128
        %3116 = vxpose.xlu0.b32.cont [9/16] 0.0, 128
        %3117 = vxpose.xlu0.b32.cont [10/16] 0.0, 128
        %3118 = vxpose.xlu0.b32.cont [11/16] 0.0, 128
        %3119 = vxpose.xlu0.b32.cont [12/16] 0.0, 128
        %3120 = vxpose.xlu0.b32.cont [13/16] 0.0, 128
        %3121 = vxpose.xlu0.b32.cont [14/16] 0.0, 128
        %3122 = vxpose.xlu0.b32.cont [15/16] 0.0, 128
        %3123 = vxpose.xlu0.b32.end [16/16] 0.0, 128
        %v3124 = vpop.trf.xlu0
        %v3125 = vpop.trf.xlu0
        %v3126 = vpop.trf.xlu0
        %v3127 = vpop.trf.xlu0
        %v3128 = vpop.trf.xlu0
        %v3129 = vpop.trf.xlu0
        %v3130 = vpop.trf.xlu0
        %v3131 = vpop.trf.xlu0
        %v3132 = vpop.trf.xlu0
        %v3133 = vpop.trf.xlu0
        %v3134 = vpop.trf.xlu0
        %v3135 = vpop.trf.xlu0
        %v3136 = vpop.trf.xlu0
        %v3137 = vpop.trf.xlu0
        %v3138 = vpop.trf.xlu0
        %v3139 = vpop.trf.xlu0
        %3140 = vxpose.xlu0.b32.start [1/16] %v2286, 128
        %3141 = vxpose.xlu0.b32.cont [2/16] 0.0, 128
        %3142 = vxpose.xlu0.b32.cont [3/16] 0.0, 128
        %3143 = vxpose.xlu0.b32.cont [4/16] 0.0, 128
        %3144 = vxpose.xlu0.b32.cont [5/16] 0.0, 128
        %3145 = vxpose.xlu0.b32.cont [6/16] 0.0, 128
        %3146 = vxpose.xlu0.b32.cont [7/16] 0.0, 128
        %3147 = vxpose.xlu0.b32.cont [8/16] 0.0, 128
        %3148 = vxpose.xlu0.b32.cont [9/16] 0.0, 128
        %3149 = vxpose.xlu0.b32.cont [10/16] 0.0, 128
        %3150 = vxpose.xlu0.b32.cont [11/16] 0.0, 128
        %3151 = vxpose.xlu0.b32.cont [12/16] 0.0, 128
        %3152 = vxpose.xlu0.b32.cont [13/16] 0.0, 128
        %3153 = vxpose.xlu0.b32.cont [14/16] 0.0, 128
        %3154 = vxpose.xlu0.b32.cont [15/16] 0.0, 128
        %3155 = vxpose.xlu0.b32.end [16/16] 0.0, 128
        %v3156 = vpop.trf.xlu0
        %v3157 = vpop.trf.xlu0
        %v3158 = vpop.trf.xlu0
        %v3159 = vpop.trf.xlu0
        %v3160 = vpop.trf.xlu0
        %v3161 = vpop.trf.xlu0
        %v3162 = vpop.trf.xlu0
        %v3163 = vpop.trf.xlu0
        %v3164 = vpop.trf.xlu0
        %v3165 = vpop.trf.xlu0
        %v3166 = vpop.trf.xlu0
        %v3167 = vpop.trf.xlu0
        %v3168 = vpop.trf.xlu0
        %v3169 = vpop.trf.xlu0
        %v3170 = vpop.trf.xlu0
        %v3171 = vpop.trf.xlu0
        %3172 = vxpose.xlu0.b32.start [1/16] %v2287, 128
        %3173 = vxpose.xlu0.b32.cont [2/16] 0.0, 128
        %3174 = vxpose.xlu0.b32.cont [3/16] 0.0, 128
        %3175 = vxpose.xlu0.b32.cont [4/16] 0.0, 128
        %3176 = vxpose.xlu0.b32.cont [5/16] 0.0, 128
        %3177 = vxpose.xlu0.b32.cont [6/16] 0.0, 128
        %3178 = vxpose.xlu0.b32.cont [7/16] 0.0, 128
        %3179 = vxpose.xlu0.b32.cont [8/16] 0.0, 128
        %3180 = vxpose.xlu0.b32.cont [9/16] 0.0, 128
        %3181 = vxpose.xlu0.b32.cont [10/16] 0.0, 128
        %3182 = vxpose.xlu0.b32.cont [11/16] 0.0, 128
        %3183 = vxpose.xlu0.b32.cont [12/16] 0.0, 128
        %3184 = vxpose.xlu0.b32.cont [13/16] 0.0, 128
        %3185 = vxpose.xlu0.b32.cont [14/16] 0.0, 128
        %3186 = vxpose.xlu0.b32.cont [15/16] 0.0, 128
        %3187 = vxpose.xlu0.b32.end [16/16] 0.0, 128
        %v3188 = vpop.trf.xlu0
        %v3189 = vpop.trf.xlu0
        %v3190 = vpop.trf.xlu0
        %v3191 = vpop.trf.xlu0
        %v3192 = vpop.trf.xlu0
        %v3193 = vpop.trf.xlu0
        %v3194 = vpop.trf.xlu0
        %v3195 = vpop.trf.xlu0
        %v3196 = vpop.trf.xlu0
        %v3197 = vpop.trf.xlu0
        %v3198 = vpop.trf.xlu0
        %v3199 = vpop.trf.xlu0
        %v3200 = vpop.trf.xlu0
        %v3201 = vpop.trf.xlu0
        %v3202 = vpop.trf.xlu0
        %v3203 = vpop.trf.xlu0
        %3204 = vxpose.xlu0.b32.start [1/16] %v2288, 128
        %3205 = vxpose.xlu0.b32.cont [2/16] 0.0, 128
        %3206 = vxpose.xlu0.b32.cont [3/16] 0.0, 128
        %3207 = vxpose.xlu0.b32.cont [4/16] 0.0, 128
        %3208 = vxpose.xlu0.b32.cont [5/16] 0.0, 128
        %3209 = vxpose.xlu0.b32.cont [6/16] 0.0, 128
        %3210 = vxpose.xlu0.b32.cont [7/16] 0.0, 128
        %3211 = vxpose.xlu0.b32.cont [8/16] 0.0, 128
        %3212 = vxpose.xlu0.b32.cont [9/16] 0.0, 128
        %3213 = vxpose.xlu0.b32.cont [10/16] 0.0, 128
        %3214 = vxpose.xlu0.b32.cont [11/16] 0.0, 128
        %3215 = vxpose.xlu0.b32.cont [12/16] 0.0, 128
        %3216 = vxpose.xlu0.b32.cont [13/16] 0.0, 128
        %3217 = vxpose.xlu0.b32.cont [14/16] 0.0, 128
        %3218 = vxpose.xlu0.b32.cont [15/16] 0.0, 128
        %3219 = vxpose.xlu0.b32.end [16/16] 0.0, 128
        %v3220 = vpop.trf.xlu0
        %v3221 = vpop.trf.xlu0
        %v3222 = vpop.trf.xlu0
        %v3223 = vpop.trf.xlu0
        %v3224 = vpop.trf.xlu0
        %v3225 = vpop.trf.xlu0
        %v3226 = vpop.trf.xlu0
        %v3227 = vpop.trf.xlu0
        %v3228 = vpop.trf.xlu0
        %v3229 = vpop.trf.xlu0
        %v3230 = vpop.trf.xlu0
        %v3231 = vpop.trf.xlu0
        %v3232 = vpop.trf.xlu0
        %v3233 = vpop.trf.xlu0
        %v3234 = vpop.trf.xlu0
        %v3235 = vpop.trf.xlu0
        %3236 = vxpose.xlu0.b32.start [1/16] %v2289, 128
        %3237 = vxpose.xlu0.b32.cont [2/16] 0.0, 128
        %3238 = vxpose.xlu0.b32.cont [3/16] 0.0, 128
        %3239 = vxpose.xlu0.b32.cont [4/16] 0.0, 128
        %3240 = vxpose.xlu0.b32.cont [5/16] 0.0, 128
        %3241 = vxpose.xlu0.b32.cont [6/16] 0.0, 128
        %3242 = vxpose.xlu0.b32.cont [7/16] 0.0, 128
        %3243 = vxpose.xlu0.b32.cont [8/16] 0.0, 128
        %3244 = vxpose.xlu0.b32.cont [9/16] 0.0, 128
        %3245 = vxpose.xlu0.b32.cont [10/16] 0.0, 128
        %3246 = vxpose.xlu0.b32.cont [11/16] 0.0, 128
        %3247 = vxpose.xlu0.b32.cont [12/16] 0.0, 128
        %3248 = vxpose.xlu0.b32.cont [13/16] 0.0, 128
        %3249 = vxpose.xlu0.b32.cont [14/16] 0.0, 128
        %3250 = vxpose.xlu0.b32.cont [15/16] 0.0, 128
        %3251 = vxpose.xlu0.b32.end [16/16] 0.0, 128
        %v3252 = vpop.trf.xlu0
        %v3253 = vpop.trf.xlu0
        %v3254 = vpop.trf.xlu0
        %v3255 = vpop.trf.xlu0
        %v3256 = vpop.trf.xlu0
        %v3257 = vpop.trf.xlu0
        %v3258 = vpop.trf.xlu0
        %v3259 = vpop.trf.xlu0
        %v3260 = vpop.trf.xlu0
        %v3261 = vpop.trf.xlu0
        %v3262 = vpop.trf.xlu0
        %v3263 = vpop.trf.xlu0
        %v3264 = vpop.trf.xlu0
        %v3265 = vpop.trf.xlu0
        %v3266 = vpop.trf.xlu0
        %v3267 = vpop.trf.xlu0
        %3268 = vxpose.xlu0.b32.start [1/16] %v2290, 128
        %3269 = vxpose.xlu0.b32.cont [2/16] 0.0, 128
        %3270 = vxpose.xlu0.b32.cont [3/16] 0.0, 128
        %3271 = vxpose.xlu0.b32.cont [4/16] 0.0, 128
        %3272 = vxpose.xlu0.b32.cont [5/16] 0.0, 128
        %3273 = vxpose.xlu0.b32.cont [6/16] 0.0, 128
        %3274 = vxpose.xlu0.b32.cont [7/16] 0.0, 128
        %3275 = vxpose.xlu0.b32.cont [8/16] 0.0, 128
        %3276 = vxpose.xlu0.b32.cont [9/16] 0.0, 128
        %3277 = vxpose.xlu0.b32.cont [10/16] 0.0, 128
        %3278 = vxpose.xlu0.b32.cont [11/16] 0.0, 128
        %3279 = vxpose.xlu0.b32.cont [12/16] 0.0, 128
        %3280 = vxpose.xlu0.b32.cont [13/16] 0.0, 128
        %3281 = vxpose.xlu0.b32.cont [14/16] 0.0, 128
        %3282 = vxpose.xlu0.b32.cont [15/16] 0.0, 128
        %3283 = vxpose.xlu0.b32.end [16/16] 0.0, 128
        %v3284 = vpop.trf.xlu0
        %v3285 = vpop.trf.xlu0
        %v3286 = vpop.trf.xlu0
        %v3287 = vpop.trf.xlu0
        %v3288 = vpop.trf.xlu0
        %v3289 = vpop.trf.xlu0
        %v3290 = vpop.trf.xlu0
        %v3291 = vpop.trf.xlu0
        %v3292 = vpop.trf.xlu0
        %v3293 = vpop.trf.xlu0
        %v3294 = vpop.trf.xlu0
        %v3295 = vpop.trf.xlu0
        %v3296 = vpop.trf.xlu0
        %v3297 = vpop.trf.xlu0
        %v3298 = vpop.trf.xlu0
        %v3299 = vpop.trf.xlu0
        %3300 = vxpose.xlu0.b32.start [1/16] %v2291, 128
        %3301 = vxpose.xlu0.b32.cont [2/16] 0.0, 128
        %3302 = vxpose.xlu0.b32.cont [3/16] 0.0, 128
        %3303 = vxpose.xlu0.b32.cont [4/16] 0.0, 128
        %3304 = vxpose.xlu0.b32.cont [5/16] 0.0, 128
        %3305 = vxpose.xlu0.b32.cont [6/16] 0.0, 128
        %3306 = vxpose.xlu0.b32.cont [7/16] 0.0, 128
        %3307 = vxpose.xlu0.b32.cont [8/16] 0.0, 128
        %3308 = vxpose.xlu0.b32.cont [9/16] 0.0, 128
        %3309 = vxpose.xlu0.b32.cont [10/16] 0.0, 128
        %3310 = vxpose.xlu0.b32.cont [11/16] 0.0, 128
        %3311 = vxpose.xlu0.b32.cont [12/16] 0.0, 128
        %3312 = vxpose.xlu0.b32.cont [13/16] 0.0, 128
        %3313 = vxpose.xlu0.b32.cont [14/16] 0.0, 128
        %3314 = vxpose.xlu0.b32.cont [15/16] 0.0, 128
        %3315 = vxpose.xlu0.b32.end [16/16] 0.0, 128
        %v3316 = vpop.trf.xlu0
        %v3317 = vpop.trf.xlu0
        %v3318 = vpop.trf.xlu0
        %v3319 = vpop.trf.xlu0
        %v3320 = vpop.trf.xlu0
        %v3321 = vpop.trf.xlu0
        %v3322 = vpop.trf.xlu0
        %v3323 = vpop.trf.xlu0
        %v3324 = vpop.trf.xlu0
        %v3325 = vpop.trf.xlu0
        %v3326 = vpop.trf.xlu0
        %v3327 = vpop.trf.xlu0
        %v3328 = vpop.trf.xlu0
        %v3329 = vpop.trf.xlu0
        %v3330 = vpop.trf.xlu0
        %v3331 = vpop.trf.xlu0
        %3332 = vxpose.xlu0.b32.start [1/16] %v2292, 128
        %3333 = vxpose.xlu0.b32.cont [2/16] 0.0, 128
        %3334 = vxpose.xlu0.b32.cont [3/16] 0.0, 128
        %3335 = vxpose.xlu0.b32.cont [4/16] 0.0, 128
        %3336 = vxpose.xlu0.b32.cont [5/16] 0.0, 128
        %3337 = vxpose.xlu0.b32.cont [6/16] 0.0, 128
        %3338 = vxpose.xlu0.b32.cont [7/16] 0.0, 128
        %3339 = vxpose.xlu0.b32.cont [8/16] 0.0, 128
        %3340 = vxpose.xlu0.b32.cont [9/16] 0.0, 128
        %3341 = vxpose.xlu0.b32.cont [10/16] 0.0, 128
        %3342 = vxpose.xlu0.b32.cont [11/16] 0.0, 128
        %3343 = vxpose.xlu0.b32.cont [12/16] 0.0, 128
        %3344 = vxpose.xlu0.b32.cont [13/16] 0.0, 128
        %3345 = vxpose.xlu0.b32.cont [14/16] 0.0, 128
        %3346 = vxpose.xlu0.b32.cont [15/16] 0.0, 128
        %3347 = vxpose.xlu0.b32.end [16/16] 0.0, 128
        %v3348 = vpop.trf.xlu0
        %v3349 = vpop.trf.xlu0
        %v3350 = vpop.trf.xlu0
        %v3351 = vpop.trf.xlu0
        %v3352 = vpop.trf.xlu0
        %v3353 = vpop.trf.xlu0
        %v3354 = vpop.trf.xlu0
        %v3355 = vpop.trf.xlu0
        %v3356 = vpop.trf.xlu0
        %v3357 = vpop.trf.xlu0
        %v3358 = vpop.trf.xlu0
        %v3359 = vpop.trf.xlu0
        %v3360 = vpop.trf.xlu0
        %v3361 = vpop.trf.xlu0
        %v3362 = vpop.trf.xlu0
        %v3363 = vpop.trf.xlu0
        %3364 = vxpose.xlu0.b32.start [1/16] %v2293, 128
        %3365 = vxpose.xlu0.b32.cont [2/16] 0.0, 128
        %3366 = vxpose.xlu0.b32.cont [3/16] 0.0, 128
        %3367 = vxpose.xlu0.b32.cont [4/16] 0.0, 128
        %3368 = vxpose.xlu0.b32.cont [5/16] 0.0, 128
        %3369 = vxpose.xlu0.b32.cont [6/16] 0.0, 128
        %3370 = vxpose.xlu0.b32.cont [7/16] 0.0, 128
        %3371 = vxpose.xlu0.b32.cont [8/16] 0.0, 128
        %3372 = vxpose.xlu0.b32.cont [9/16] 0.0, 128
        %3373 = vxpose.xlu0.b32.cont [10/16] 0.0, 128
        %3374 = vxpose.xlu0.b32.cont [11/16] 0.0, 128
        %3375 = vxpose.xlu0.b32.cont [12/16] 0.0, 128
        %3376 = vxpose.xlu0.b32.cont [13/16] 0.0, 128
        %3377 = vxpose.xlu0.b32.cont [14/16] 0.0, 128
        %3378 = vxpose.xlu0.b32.cont [15/16] 0.0, 128
        %3379 = vxpose.xlu0.b32.end [16/16] 0.0, 128
        %v3380 = vpop.trf.xlu0
        %v3381 = vpop.trf.xlu0
        %v3382 = vpop.trf.xlu0
        %v3383 = vpop.trf.xlu0
        %v3384 = vpop.trf.xlu0
        %v3385 = vpop.trf.xlu0
        %v3386 = vpop.trf.xlu0
        %v3387 = vpop.trf.xlu0
        %v3388 = vpop.trf.xlu0
        %v3389 = vpop.trf.xlu0
        %v3390 = vpop.trf.xlu0
        %v3391 = vpop.trf.xlu0
        %v3392 = vpop.trf.xlu0
        %v3393 = vpop.trf.xlu0
        %v3394 = vpop.trf.xlu0
        %v3395 = vpop.trf.xlu0
        %3396 = vxpose.xlu0.b32.start [1/16] %v2294, 128
        %3397 = vxpose.xlu0.b32.cont [2/16] 0.0, 128
        %3398 = vxpose.xlu0.b32.cont [3/16] 0.0, 128
        %3399 = vxpose.xlu0.b32.cont [4/16] 0.0, 128
        %3400 = vxpose.xlu0.b32.cont [5/16] 0.0, 128
        %3401 = vxpose.xlu0.b32.cont [6/16] 0.0, 128
        %3402 = vxpose.xlu0.b32.cont [7/16] 0.0, 128
        %3403 = vxpose.xlu0.b32.cont [8/16] 0.0, 128
        %3404 = vxpose.xlu0.b32.cont [9/16] 0.0, 128
        %3405 = vxpose.xlu0.b32.cont [10/16] 0.0, 128
        %3406 = vxpose.xlu0.b32.cont [11/16] 0.0, 128
        %3407 = vxpose.xlu0.b32.cont [12/16] 0.0, 128
        %3408 = vxpose.xlu0.b32.cont [13/16] 0.0, 128
        %3409 = vxpose.xlu0.b32.cont [14/16] 0.0, 128
        %3410 = vxpose.xlu0.b32.cont [15/16] 0.0, 128
        %3411 = vxpose.xlu0.b32.end [16/16] 0.0, 128
        %v3412 = vpop.trf.xlu0
        %v3413 = vpop.trf.xlu0
        %v3414 = vpop.trf.xlu0
        %v3415 = vpop.trf.xlu0
        %v3416 = vpop.trf.xlu0
        %v3417 = vpop.trf.xlu0
        %v3418 = vpop.trf.xlu0
        %v3419 = vpop.trf.xlu0
        %v3420 = vpop.trf.xlu0
        %v3421 = vpop.trf.xlu0
        %v3422 = vpop.trf.xlu0
        %v3423 = vpop.trf.xlu0
        %v3424 = vpop.trf.xlu0
        %v3425 = vpop.trf.xlu0
        %v3426 = vpop.trf.xlu0
        %v3427 = vpop.trf.xlu0
        %3428 = vxpose.xlu0.b32.start [1/16] %v2295, 128
        %3429 = vxpose.xlu0.b32.cont [2/16] 0.0, 128
        %3430 = vxpose.xlu0.b32.cont [3/16] 0.0, 128
        %3431 = vxpose.xlu0.b32.cont [4/16] 0.0, 128
        %3432 = vxpose.xlu0.b32.cont [5/16] 0.0, 128
        %3433 = vxpose.xlu0.b32.cont [6/16] 0.0, 128
        %3434 = vxpose.xlu0.b32.cont [7/16] 0.0, 128
        %3435 = vxpose.xlu0.b32.cont [8/16] 0.0, 128
        %3436 = vxpose.xlu0.b32.cont [9/16] 0.0, 128
        %3437 = vxpose.xlu0.b32.cont [10/16] 0.0, 128
        %3438 = vxpose.xlu0.b32.cont [11/16] 0.0, 128
        %3439 = vxpose.xlu0.b32.cont [12/16] 0.0, 128
        %3440 = vxpose.xlu0.b32.cont [13/16] 0.0, 128
        %3441 = vxpose.xlu0.b32.cont [14/16] 0.0, 128
        %3442 = vxpose.xlu0.b32.cont [15/16] 0.0, 128
        %3443 = vxpose.xlu0.b32.end [16/16] 0.0, 128
        %v3444 = vpop.trf.xlu0
        %v3445 = vpop.trf.xlu0
        %v3446 = vpop.trf.xlu0
        %v3447 = vpop.trf.xlu0
        %v3448 = vpop.trf.xlu0
        %v3449 = vpop.trf.xlu0
        %v3450 = vpop.trf.xlu0
        %v3451 = vpop.trf.xlu0
        %v3452 = vpop.trf.xlu0
        %v3453 = vpop.trf.xlu0
        %v3454 = vpop.trf.xlu0
        %v3455 = vpop.trf.xlu0
        %v3456 = vpop.trf.xlu0
        %v3457 = vpop.trf.xlu0
        %v3458 = vpop.trf.xlu0
        %v3459 = vpop.trf.xlu0
        %3460 = vxpose.xlu0.b32.start [1/16] %v2296, 128
        %3461 = vxpose.xlu0.b32.cont [2/16] 0.0, 128
        %3462 = vxpose.xlu0.b32.cont [3/16] 0.0, 128
        %3463 = vxpose.xlu0.b32.cont [4/16] 0.0, 128
        %3464 = vxpose.xlu0.b32.cont [5/16] 0.0, 128
        %3465 = vxpose.xlu0.b32.cont [6/16] 0.0, 128
        %3466 = vxpose.xlu0.b32.cont [7/16] 0.0, 128
        %3467 = vxpose.xlu0.b32.cont [8/16] 0.0, 128
        %3468 = vxpose.xlu0.b32.cont [9/16] 0.0, 128
        %3469 = vxpose.xlu0.b32.cont [10/16] 0.0, 128
        %3470 = vxpose.xlu0.b32.cont [11/16] 0.0, 128
        %3471 = vxpose.xlu0.b32.cont [12/16] 0.0, 128
        %3472 = vxpose.xlu0.b32.cont [13/16] 0.0, 128
        %3473 = vxpose.xlu0.b32.cont [14/16] 0.0, 128
        %3474 = vxpose.xlu0.b32.cont [15/16] 0.0, 128
        %3475 = vxpose.xlu0.b32.end [16/16] 0.0, 128
        %v3476 = vpop.trf.xlu0
        %v3477 = vpop.trf.xlu0
        %v3478 = vpop.trf.xlu0
        %v3479 = vpop.trf.xlu0
        %v3480 = vpop.trf.xlu0
        %v3481 = vpop.trf.xlu0
        %v3482 = vpop.trf.xlu0
        %v3483 = vpop.trf.xlu0
        %v3484 = vpop.trf.xlu0
        %v3485 = vpop.trf.xlu0
        %v3486 = vpop.trf.xlu0
        %v3487 = vpop.trf.xlu0
        %v3488 = vpop.trf.xlu0
        %v3489 = vpop.trf.xlu0
        %v3490 = vpop.trf.xlu0
        %v3491 = vpop.trf.xlu0
        %3492 = vxpose.xlu0.b32.start [1/16] %v2297, 128
        %3493 = vxpose.xlu0.b32.cont [2/16] 0.0, 128
        %3494 = vxpose.xlu0.b32.cont [3/16] 0.0, 128
        %3495 = vxpose.xlu0.b32.cont [4/16] 0.0, 128
        %3496 = vxpose.xlu0.b32.cont [5/16] 0.0, 128
        %3497 = vxpose.xlu0.b32.cont [6/16] 0.0, 128
        %3498 = vxpose.xlu0.b32.cont [7/16] 0.0, 128
        %3499 = vxpose.xlu0.b32.cont [8/16] 0.0, 128
        %3500 = vxpose.xlu0.b32.cont [9/16] 0.0, 128
        %3501 = vxpose.xlu0.b32.cont [10/16] 0.0, 128
        %3502 = vxpose.xlu0.b32.cont [11/16] 0.0, 128
        %3503 = vxpose.xlu0.b32.cont [12/16] 0.0, 128
        %3504 = vxpose.xlu0.b32.cont [13/16] 0.0, 128
        %3505 = vxpose.xlu0.b32.cont [14/16] 0.0, 128
        %3506 = vxpose.xlu0.b32.cont [15/16] 0.0, 128
        %3507 = vxpose.xlu0.b32.end [16/16] 0.0, 128
        %v3508 = vpop.trf.xlu0
        %v3509 = vpop.trf.xlu0
        %v3510 = vpop.trf.xlu0
        %v3511 = vpop.trf.xlu0
        %v3512 = vpop.trf.xlu0
        %v3513 = vpop.trf.xlu0
        %v3514 = vpop.trf.xlu0
        %v3515 = vpop.trf.xlu0
        %v3516 = vpop.trf.xlu0
        %v3517 = vpop.trf.xlu0
        %v3518 = vpop.trf.xlu0
        %v3519 = vpop.trf.xlu0
        %v3520 = vpop.trf.xlu0
        %v3521 = vpop.trf.xlu0
        %v3522 = vpop.trf.xlu0
        %v3523 = vpop.trf.xlu0
        %3524 = vxpose.xlu0.b32.start [1/16] %v2298, 128
        %3525 = vxpose.xlu0.b32.cont [2/16] 0.0, 128
        %3526 = vxpose.xlu0.b32.cont [3/16] 0.0, 128
        %3527 = vxpose.xlu0.b32.cont [4/16] 0.0, 128
        %3528 = vxpose.xlu0.b32.cont [5/16] 0.0, 128
        %3529 = vxpose.xlu0.b32.cont [6/16] 0.0, 128
        %3530 = vxpose.xlu0.b32.cont [7/16] 0.0, 128
        %3531 = vxpose.xlu0.b32.cont [8/16] 0.0, 128
        %3532 = vxpose.xlu0.b32.cont [9/16] 0.0, 128
        %3533 = vxpose.xlu0.b32.cont [10/16] 0.0, 128
        %3534 = vxpose.xlu0.b32.cont [11/16] 0.0, 128
        %3535 = vxpose.xlu0.b32.cont [12/16] 0.0, 128
        %3536 = vxpose.xlu0.b32.cont [13/16] 0.0, 128
        %3537 = vxpose.xlu0.b32.cont [14/16] 0.0, 128
        %3538 = vxpose.xlu0.b32.cont [15/16] 0.0, 128
        %3539 = vxpose.xlu0.b32.end [16/16] 0.0, 128
        %v3540 = vpop.trf.xlu0
        %v3541 = vpop.trf.xlu0
        %v3542 = vpop.trf.xlu0
        %v3543 = vpop.trf.xlu0
        %v3544 = vpop.trf.xlu0
        %v3545 = vpop.trf.xlu0
        %v3546 = vpop.trf.xlu0
        %v3547 = vpop.trf.xlu0
        %v3548 = vpop.trf.xlu0
        %v3549 = vpop.trf.xlu0
        %v3550 = vpop.trf.xlu0
        %v3551 = vpop.trf.xlu0
        %v3552 = vpop.trf.xlu0
        %v3553 = vpop.trf.xlu0
        %v3554 = vpop.trf.xlu0
        %v3555 = vpop.trf.xlu0
        %3556 = vxpose.xlu0.b32.start [1/16] %v2299, 128
        %3557 = vxpose.xlu0.b32.cont [2/16] 0.0, 128
        %3558 = vxpose.xlu0.b32.cont [3/16] 0.0, 128
        %3559 = vxpose.xlu0.b32.cont [4/16] 0.0, 128
        %3560 = vxpose.xlu0.b32.cont [5/16] 0.0, 128
        %3561 = vxpose.xlu0.b32.cont [6/16] 0.0, 128
        %3562 = vxpose.xlu0.b32.cont [7/16] 0.0, 128
        %3563 = vxpose.xlu0.b32.cont [8/16] 0.0, 128
        %3564 = vxpose.xlu0.b32.cont [9/16] 0.0, 128
        %3565 = vxpose.xlu0.b32.cont [10/16] 0.0, 128
        %3566 = vxpose.xlu0.b32.cont [11/16] 0.0, 128
        %3567 = vxpose.xlu0.b32.cont [12/16] 0.0, 128
        %3568 = vxpose.xlu0.b32.cont [13/16] 0.0, 128
        %3569 = vxpose.xlu0.b32.cont [14/16] 0.0, 128
        %3570 = vxpose.xlu0.b32.cont [15/16] 0.0, 128
        %3571 = vxpose.xlu0.b32.end [16/16] 0.0, 128
        %v3572 = vpop.trf.xlu0
        %v3573 = vpop.trf.xlu0
        %v3574 = vpop.trf.xlu0
        %v3575 = vpop.trf.xlu0
        %v3576 = vpop.trf.xlu0
        %v3577 = vpop.trf.xlu0
        %v3578 = vpop.trf.xlu0
        %v3579 = vpop.trf.xlu0
        %v3580 = vpop.trf.xlu0
        %v3581 = vpop.trf.xlu0
        %v3582 = vpop.trf.xlu0
        %v3583 = vpop.trf.xlu0
        %v3584 = vpop.trf.xlu0
        %v3585 = vpop.trf.xlu0
        %v3586 = vpop.trf.xlu0
        %v3587 = vpop.trf.xlu0
        %3588 = vxpose.xlu0.b32.start [1/16] %v2300, 128
        %3589 = vxpose.xlu0.b32.cont [2/16] 0.0, 128
        %3590 = vxpose.xlu0.b32.cont [3/16] 0.0, 128
        %3591 = vxpose.xlu0.b32.cont [4/16] 0.0, 128
        %3592 = vxpose.xlu0.b32.cont [5/16] 0.0, 128
        %3593 = vxpose.xlu0.b32.cont [6/16] 0.0, 128
        %3594 = vxpose.xlu0.b32.cont [7/16] 0.0, 128
        %3595 = vxpose.xlu0.b32.cont [8/16] 0.0, 128
        %3596 = vxpose.xlu0.b32.cont [9/16] 0.0, 128
        %3597 = vxpose.xlu0.b32.cont [10/16] 0.0, 128
        %3598 = vxpose.xlu0.b32.cont [11/16] 0.0, 128
        %3599 = vxpose.xlu0.b32.cont [12/16] 0.0, 128
        %3600 = vxpose.xlu0.b32.cont [13/16] 0.0, 128
        %3601 = vxpose.xlu0.b32.cont [14/16] 0.0, 128
        %3602 = vxpose.xlu0.b32.cont [15/16] 0.0, 128
        %3603 = vxpose.xlu0.b32.end [16/16] 0.0, 128
        %v3604 = vpop.trf.xlu0
        %v3605 = vpop.trf.xlu0
        %v3606 = vpop.trf.xlu0
        %v3607 = vpop.trf.xlu0
        %v3608 = vpop.trf.xlu0
        %v3609 = vpop.trf.xlu0
        %v3610 = vpop.trf.xlu0
        %v3611 = vpop.trf.xlu0
        %v3612 = vpop.trf.xlu0
        %v3613 = vpop.trf.xlu0
        %v3614 = vpop.trf.xlu0
        %v3615 = vpop.trf.xlu0
        %v3616 = vpop.trf.xlu0
        %v3617 = vpop.trf.xlu0
        %v3618 = vpop.trf.xlu0
        %v3619 = vpop.trf.xlu0
        %3620 = vxpose.xlu0.b32.start [1/16] %v2301, 128
        %3621 = vxpose.xlu0.b32.cont [2/16] 0.0, 128
        %3622 = vxpose.xlu0.b32.cont [3/16] 0.0, 128
        %3623 = vxpose.xlu0.b32.cont [4/16] 0.0, 128
        %3624 = vxpose.xlu0.b32.cont [5/16] 0.0, 128
        %3625 = vxpose.xlu0.b32.cont [6/16] 0.0, 128
        %3626 = vxpose.xlu0.b32.cont [7/16] 0.0, 128
        %3627 = vxpose.xlu0.b32.cont [8/16] 0.0, 128
        %3628 = vxpose.xlu0.b32.cont [9/16] 0.0, 128
        %3629 = vxpose.xlu0.b32.cont [10/16] 0.0, 128
        %3630 = vxpose.xlu0.b32.cont [11/16] 0.0, 128
        %3631 = vxpose.xlu0.b32.cont [12/16] 0.0, 128
        %3632 = vxpose.xlu0.b32.cont [13/16] 0.0, 128
        %3633 = vxpose.xlu0.b32.cont [14/16] 0.0, 128
        %3634 = vxpose.xlu0.b32.cont [15/16] 0.0, 128
        %3635 = vxpose.xlu0.b32.end [16/16] 0.0, 128
        %v3636 = vpop.trf.xlu0
        %v3637 = vpop.trf.xlu0
        %v3638 = vpop.trf.xlu0
        %v3639 = vpop.trf.xlu0
        %v3640 = vpop.trf.xlu0
        %v3641 = vpop.trf.xlu0
        %v3642 = vpop.trf.xlu0
        %v3643 = vpop.trf.xlu0
        %v3644 = vpop.trf.xlu0
        %v3645 = vpop.trf.xlu0
        %v3646 = vpop.trf.xlu0
        %v3647 = vpop.trf.xlu0
        %v3648 = vpop.trf.xlu0
        %v3649 = vpop.trf.xlu0
        %v3650 = vpop.trf.xlu0
        %v3651 = vpop.trf.xlu0
        %3652 = vxpose.xlu0.b32.start [1/16] %v2302, 128
        %3653 = vxpose.xlu0.b32.cont [2/16] 0.0, 128
        %3654 = vxpose.xlu0.b32.cont [3/16] 0.0, 128
        %3655 = vxpose.xlu0.b32.cont [4/16] 0.0, 128
        %3656 = vxpose.xlu0.b32.cont [5/16] 0.0, 128
        %3657 = vxpose.xlu0.b32.cont [6/16] 0.0, 128
        %3658 = vxpose.xlu0.b32.cont [7/16] 0.0, 128
        %3659 = vxpose.xlu0.b32.cont [8/16] 0.0, 128
        %3660 = vxpose.xlu0.b32.cont [9/16] 0.0, 128
        %3661 = vxpose.xlu0.b32.cont [10/16] 0.0, 128
        %3662 = vxpose.xlu0.b32.cont [11/16] 0.0, 128
        %3663 = vxpose.xlu0.b32.cont [12/16] 0.0, 128
        %3664 = vxpose.xlu0.b32.cont [13/16] 0.0, 128
        %3665 = vxpose.xlu0.b32.cont [14/16] 0.0, 128
        %3666 = vxpose.xlu0.b32.cont [15/16] 0.0, 128
        %3667 = vxpose.xlu0.b32.end [16/16] 0.0, 128
        %v3668 = vpop.trf.xlu0
        %v3669 = vpop.trf.xlu0
        %v3670 = vpop.trf.xlu0
        %v3671 = vpop.trf.xlu0
        %v3672 = vpop.trf.xlu0
        %v3673 = vpop.trf.xlu0
        %v3674 = vpop.trf.xlu0
        %v3675 = vpop.trf.xlu0
        %v3676 = vpop.trf.xlu0
        %v3677 = vpop.trf.xlu0
        %v3678 = vpop.trf.xlu0
        %v3679 = vpop.trf.xlu0
        %v3680 = vpop.trf.xlu0
        %v3681 = vpop.trf.xlu0
        %v3682 = vpop.trf.xlu0
        %v3683 = vpop.trf.xlu0
        %3684 = vxpose.xlu0.b32.start [1/16] %v2303, 128
        %3685 = vxpose.xlu0.b32.cont [2/16] 0.0, 128
        %3686 = vxpose.xlu0.b32.cont [3/16] 0.0, 128
        %3687 = vxpose.xlu0.b32.cont [4/16] 0.0, 128
        %3688 = vxpose.xlu0.b32.cont [5/16] 0.0, 128
        %3689 = vxpose.xlu0.b32.cont [6/16] 0.0, 128
        %3690 = vxpose.xlu0.b32.cont [7/16] 0.0, 128
        %3691 = vxpose.xlu0.b32.cont [8/16] 0.0, 128
        %3692 = vxpose.xlu0.b32.cont [9/16] 0.0, 128
        %3693 = vxpose.xlu0.b32.cont [10/16] 0.0, 128
        %3694 = vxpose.xlu0.b32.cont [11/16] 0.0, 128
        %3695 = vxpose.xlu0.b32.cont [12/16] 0.0, 128
        %3696 = vxpose.xlu0.b32.cont [13/16] 0.0, 128
        %3697 = vxpose.xlu0.b32.cont [14/16] 0.0, 128
        %3698 = vxpose.xlu0.b32.cont [15/16] 0.0, 128
        %3699 = vxpose.xlu0.b32.end [16/16] 0.0, 128
        %v3700 = vpop.trf.xlu0
        %v3701 = vpop.trf.xlu0
        %v3702 = vpop.trf.xlu0
        %v3703 = vpop.trf.xlu0
        %v3704 = vpop.trf.xlu0
        %v3705 = vpop.trf.xlu0
        %v3706 = vpop.trf.xlu0
        %v3707 = vpop.trf.xlu0
        %v3708 = vpop.trf.xlu0
        %v3709 = vpop.trf.xlu0
        %v3710 = vpop.trf.xlu0
        %v3711 = vpop.trf.xlu0
        %v3712 = vpop.trf.xlu0
        %v3713 = vpop.trf.xlu0
        %v3714 = vpop.trf.xlu0
        %v3715 = vpop.trf.xlu0
        %3716 = vxpose.xlu0.b32.start [1/16] %v2304, 128
        %3717 = vxpose.xlu0.b32.cont [2/16] 0.0, 128
        %3718 = vxpose.xlu0.b32.cont [3/16] 0.0, 128
        %3719 = vxpose.xlu0.b32.cont [4/16] 0.0, 128
        %3720 = vxpose.xlu0.b32.cont [5/16] 0.0, 128
        %3721 = vxpose.xlu0.b32.cont [6/16] 0.0, 128
        %3722 = vxpose.xlu0.b32.cont [7/16] 0.0, 128
        %3723 = vxpose.xlu0.b32.cont [8/16] 0.0, 128
        %3724 = vxpose.xlu0.b32.cont [9/16] 0.0, 128
        %3725 = vxpose.xlu0.b32.cont [10/16] 0.0, 128
        %3726 = vxpose.xlu0.b32.cont [11/16] 0.0, 128
        %3727 = vxpose.xlu0.b32.cont [12/16] 0.0, 128
        %3728 = vxpose.xlu0.b32.cont [13/16] 0.0, 128
        %3729 = vxpose.xlu0.b32.cont [14/16] 0.0, 128
        %3730 = vxpose.xlu0.b32.cont [15/16] 0.0, 128
        %3731 = vxpose.xlu0.b32.end [16/16] 0.0, 128
        %v3732 = vpop.trf.xlu0
        %v3733 = vpop.trf.xlu0
        %v3734 = vpop.trf.xlu0
        %v3735 = vpop.trf.xlu0
        %v3736 = vpop.trf.xlu0
        %v3737 = vpop.trf.xlu0
        %v3738 = vpop.trf.xlu0
        %v3739 = vpop.trf.xlu0
        %v3740 = vpop.trf.xlu0
        %v3741 = vpop.trf.xlu0
        %v3742 = vpop.trf.xlu0
        %v3743 = vpop.trf.xlu0
        %v3744 = vpop.trf.xlu0
        %v3745 = vpop.trf.xlu0
        %v3746 = vpop.trf.xlu0
        %v3747 = vpop.trf.xlu0
        %3748 = vxpose.xlu0.b32.start [1/16] %v2305, 128
        %3749 = vxpose.xlu0.b32.cont [2/16] 0.0, 128
        %3750 = vxpose.xlu0.b32.cont [3/16] 0.0, 128
        %3751 = vxpose.xlu0.b32.cont [4/16] 0.0, 128
        %3752 = vxpose.xlu0.b32.cont [5/16] 0.0, 128
        %3753 = vxpose.xlu0.b32.cont [6/16] 0.0, 128
        %3754 = vxpose.xlu0.b32.cont [7/16] 0.0, 128
        %3755 = vxpose.xlu0.b32.cont [8/16] 0.0, 128
        %3756 = vxpose.xlu0.b32.cont [9/16] 0.0, 128
        %3757 = vxpose.xlu0.b32.cont [10/16] 0.0, 128
        %3758 = vxpose.xlu0.b32.cont [11/16] 0.0, 128
        %3759 = vxpose.xlu0.b32.cont [12/16] 0.0, 128
        %3760 = vxpose.xlu0.b32.cont [13/16] 0.0, 128
        %3761 = vxpose.xlu0.b32.cont [14/16] 0.0, 128
        %3762 = vxpose.xlu0.b32.cont [15/16] 0.0, 128
        %3763 = vxpose.xlu0.b32.end [16/16] 0.0, 128
        %v3764 = vpop.trf.xlu0
        %v3765 = vpop.trf.xlu0
        %v3766 = vpop.trf.xlu0
        %v3767 = vpop.trf.xlu0
        %v3768 = vpop.trf.xlu0
        %v3769 = vpop.trf.xlu0
        %v3770 = vpop.trf.xlu0
        %v3771 = vpop.trf.xlu0
        %v3772 = vpop.trf.xlu0
        %v3773 = vpop.trf.xlu0
        %v3774 = vpop.trf.xlu0
        %v3775 = vpop.trf.xlu0
        %v3776 = vpop.trf.xlu0
        %v3777 = vpop.trf.xlu0
        %v3778 = vpop.trf.xlu0
        %v3779 = vpop.trf.xlu0
        %3780 = vxpose.xlu0.b32.start [1/16] %v2306, 128
        %3781 = vxpose.xlu0.b32.cont [2/16] 0.0, 128
        %3782 = vxpose.xlu0.b32.cont [3/16] 0.0, 128
        %3783 = vxpose.xlu0.b32.cont [4/16] 0.0, 128
        %3784 = vxpose.xlu0.b32.cont [5/16] 0.0, 128
        %3785 = vxpose.xlu0.b32.cont [6/16] 0.0, 128
        %3786 = vxpose.xlu0.b32.cont [7/16] 0.0, 128
        %3787 = vxpose.xlu0.b32.cont [8/16] 0.0, 128
        %3788 = vxpose.xlu0.b32.cont [9/16] 0.0, 128
        %3789 = vxpose.xlu0.b32.cont [10/16] 0.0, 128
        %3790 = vxpose.xlu0.b32.cont [11/16] 0.0, 128
        %3791 = vxpose.xlu0.b32.cont [12/16] 0.0, 128
        %3792 = vxpose.xlu0.b32.cont [13/16] 0.0, 128
        %3793 = vxpose.xlu0.b32.cont [14/16] 0.0, 128
        %3794 = vxpose.xlu0.b32.cont [15/16] 0.0, 128
        %3795 = vxpose.xlu0.b32.end [16/16] 0.0, 128
        %v3796 = vpop.trf.xlu0
        %v3797 = vpop.trf.xlu0
        %v3798 = vpop.trf.xlu0
        %v3799 = vpop.trf.xlu0
        %v3800 = vpop.trf.xlu0
        %v3801 = vpop.trf.xlu0
        %v3802 = vpop.trf.xlu0
        %v3803 = vpop.trf.xlu0
        %v3804 = vpop.trf.xlu0
        %v3805 = vpop.trf.xlu0
        %v3806 = vpop.trf.xlu0
        %v3807 = vpop.trf.xlu0
        %v3808 = vpop.trf.xlu0
        %v3809 = vpop.trf.xlu0
        %v3810 = vpop.trf.xlu0
        %v3811 = vpop.trf.xlu0
        %3812 = vxpose.xlu0.b32.start [1/16] %v2307, 128
        %3813 = vxpose.xlu0.b32.cont [2/16] 0.0, 128
        %3814 = vxpose.xlu0.b32.cont [3/16] 0.0, 128
        %3815 = vxpose.xlu0.b32.cont [4/16] 0.0, 128
        %3816 = vxpose.xlu0.b32.cont [5/16] 0.0, 128
        %3817 = vxpose.xlu0.b32.cont [6/16] 0.0, 128
        %3818 = vxpose.xlu0.b32.cont [7/16] 0.0, 128
        %3819 = vxpose.xlu0.b32.cont [8/16] 0.0, 128
        %3820 = vxpose.xlu0.b32.cont [9/16] 0.0, 128
        %3821 = vxpose.xlu0.b32.cont [10/16] 0.0, 128
        %3822 = vxpose.xlu0.b32.cont [11/16] 0.0, 128
        %3823 = vxpose.xlu0.b32.cont [12/16] 0.0, 128
        %3824 = vxpose.xlu0.b32.cont [13/16] 0.0, 128
        %3825 = vxpose.xlu0.b32.cont [14/16] 0.0, 128
        %3826 = vxpose.xlu0.b32.cont [15/16] 0.0, 128
        %3827 = vxpose.xlu0.b32.end [16/16] 0.0, 128
        %v3828 = vpop.trf.xlu0
        %v3829 = vpop.trf.xlu0
        %v3830 = vpop.trf.xlu0
        %v3831 = vpop.trf.xlu0
        %v3832 = vpop.trf.xlu0
        %v3833 = vpop.trf.xlu0
        %v3834 = vpop.trf.xlu0
        %v3835 = vpop.trf.xlu0
        %v3836 = vpop.trf.xlu0
        %v3837 = vpop.trf.xlu0
        %v3838 = vpop.trf.xlu0
        %v3839 = vpop.trf.xlu0
        %v3840 = vpop.trf.xlu0
        %v3841 = vpop.trf.xlu0
        %v3842 = vpop.trf.xlu0
        %v3843 = vpop.trf.xlu0
        %3844 = vxpose.xlu0.b32.start [1/16] %v2324, 128
        %3845 = vxpose.xlu0.b32.cont [2/16] %v2325, 128
        %3846 = vxpose.xlu0.b32.cont [3/16] %v2356, 128
        %3847 = vxpose.xlu0.b32.cont [4/16] %v2357, 128
        %3848 = vxpose.xlu0.b32.cont [5/16] %v2388, 128
        %3849 = vxpose.xlu0.b32.cont [6/16] %v2389, 128
        %3850 = vxpose.xlu0.b32.cont [7/16] %v2420, 128
        %3851 = vxpose.xlu0.b32.cont [8/16] %v2421, 128
        %3852 = vxpose.xlu0.b32.cont [9/16] %v2452, 128
        %3853 = vxpose.xlu0.b32.cont [10/16] %v2453, 128
        %3854 = vxpose.xlu0.b32.cont [11/16] %v2484, 128
        %3855 = vxpose.xlu0.b32.cont [12/16] %v2485, 128
        %3856 = vxpose.xlu0.b32.cont [13/16] %v2516, 128
        %3857 = vxpose.xlu0.b32.cont [14/16] %v2517, 128
        %3858 = vxpose.xlu0.b32.cont [15/16] %v2548, 128
        %3859 = vxpose.xlu0.b32.end [16/16] %v2549, 128
        %v3860 = vpop.trf.xlu0
        %v3861 = vpop.trf.xlu0
        %v3862 = vpop.trf.xlu0
        %v3863 = vpop.trf.xlu0
        %v3864 = vpop.trf.xlu0
        %v3865 = vpop.trf.xlu0
        %v3866 = vpop.trf.xlu0
        %v3867 = vpop.trf.xlu0
        %v3868 = vpop.trf.xlu0
        %v3869 = vpop.trf.xlu0
        %v3870 = vpop.trf.xlu0
        %v3871 = vpop.trf.xlu0
        %v3872 = vpop.trf.xlu0
        %v3873 = vpop.trf.xlu0
        %v3874 = vpop.trf.xlu0
        %v3875 = vpop.trf.xlu0
        %3876 = vxpose.xlu0.b32.start [1/16] %v2580, 128
        %3877 = vxpose.xlu0.b32.cont [2/16] %v2581, 128
        %3878 = vxpose.xlu0.b32.cont [3/16] %v2612, 128
        %3879 = vxpose.xlu0.b32.cont [4/16] %v2613, 128
        %3880 = vxpose.xlu0.b32.cont [5/16] %v2644, 128
        %3881 = vxpose.xlu0.b32.cont [6/16] %v2645, 128
        %3882 = vxpose.xlu0.b32.cont [7/16] %v2676, 128
        %3883 = vxpose.xlu0.b32.cont [8/16] %v2677, 128
        %3884 = vxpose.xlu0.b32.cont [9/16] %v2708, 128
        %3885 = vxpose.xlu0.b32.cont [10/16] %v2709, 128
        %3886 = vxpose.xlu0.b32.cont [11/16] %v2740, 128
        %3887 = vxpose.xlu0.b32.cont [12/16] %v2741, 128
        %3888 = vxpose.xlu0.b32.cont [13/16] %v2772, 128
        %3889 = vxpose.xlu0.b32.cont [14/16] %v2773, 128
        %3890 = vxpose.xlu0.b32.cont [15/16] %v2804, 128
        %3891 = vxpose.xlu0.b32.end [16/16] %v2805, 128
        %v3892 = vpop.trf.xlu0
        %v3893 = vpop.trf.xlu0
        %v3894 = vpop.trf.xlu0
        %v3895 = vpop.trf.xlu0
        %v3896 = vpop.trf.xlu0
        %v3897 = vpop.trf.xlu0
        %v3898 = vpop.trf.xlu0
        %v3899 = vpop.trf.xlu0
        %v3900 = vpop.trf.xlu0
        %v3901 = vpop.trf.xlu0
        %v3902 = vpop.trf.xlu0
        %v3903 = vpop.trf.xlu0
        %v3904 = vpop.trf.xlu0
        %v3905 = vpop.trf.xlu0
        %v3906 = vpop.trf.xlu0
        %v3907 = vpop.trf.xlu0
        %3908 = vxpose.xlu0.b32.start [1/16] %v2836, 128
        %3909 = vxpose.xlu0.b32.cont [2/16] %v2837, 128
        %3910 = vxpose.xlu0.b32.cont [3/16] %v2868, 128
        %3911 = vxpose.xlu0.b32.cont [4/16] %v2869, 128
        %3912 = vxpose.xlu0.b32.cont [5/16] %v2900, 128
        %3913 = vxpose.xlu0.b32.cont [6/16] %v2901, 128
        %3914 = vxpose.xlu0.b32.cont [7/16] %v2932, 128
        %3915 = vxpose.xlu0.b32.cont [8/16] %v2933, 128
        %3916 = vxpose.xlu0.b32.cont [9/16] %v2964, 128
        %3917 = vxpose.xlu0.b32.cont [10/16] %v2965, 128
        %3918 = vxpose.xlu0.b32.cont [11/16] %v2996, 128
        %3919 = vxpose.xlu0.b32.cont [12/16] %v2997, 128
        %3920 = vxpose.xlu0.b32.cont [13/16] %v3028, 128
        %3921 = vxpose.xlu0.b32.cont [14/16] %v3029, 128
        %3922 = vxpose.xlu0.b32.cont [15/16] %v3060, 128
        %3923 = vxpose.xlu0.b32.end [16/16] %v3061, 128
        %v3924 = vpop.trf.xlu0
        %v3925 = vpop.trf.xlu0
        %v3926 = vpop.trf.xlu0
        %v3927 = vpop.trf.xlu0
        %v3928 = vpop.trf.xlu0
        %v3929 = vpop.trf.xlu0
        %v3930 = vpop.trf.xlu0
        %v3931 = vpop.trf.xlu0
        %v3932 = vpop.trf.xlu0
        %v3933 = vpop.trf.xlu0
        %v3934 = vpop.trf.xlu0
        %v3935 = vpop.trf.xlu0
        %v3936 = vpop.trf.xlu0
        %v3937 = vpop.trf.xlu0
        %v3938 = vpop.trf.xlu0
        %v3939 = vpop.trf.xlu0
        %3940 = vxpose.xlu0.b32.start [1/16] %v3092, 128
        %3941 = vxpose.xlu0.b32.cont [2/16] %v3093, 128
        %3942 = vxpose.xlu0.b32.cont [3/16] %v3124, 128
        %3943 = vxpose.xlu0.b32.cont [4/16] %v3125, 128
        %3944 = vxpose.xlu0.b32.cont [5/16] %v3156, 128
        %3945 = vxpose.xlu0.b32.cont [6/16] %v3157, 128
        %3946 = vxpose.xlu0.b32.cont [7/16] %v3188, 128
        %3947 = vxpose.xlu0.b32.cont [8/16] %v3189, 128
        %3948 = vxpose.xlu0.b32.cont [9/16] %v3220, 128
        %3949 = vxpose.xlu0.b32.cont [10/16] %v3221, 128
        %3950 = vxpose.xlu0.b32.cont [11/16] %v3252, 128
        %3951 = vxpose.xlu0.b32.cont [12/16] %v3253, 128
        %3952 = vxpose.xlu0.b32.cont [13/16] %v3284, 128
        %3953 = vxpose.xlu0.b32.cont [14/16] %v3285, 128
        %3954 = vxpose.xlu0.b32.cont [15/16] %v3316, 128
        %3955 = vxpose.xlu0.b32.end [16/16] %v3317, 128
        %v3956 = vpop.trf.xlu0
        %v3957 = vpop.trf.xlu0
        %v3958 = vpop.trf.xlu0
        %v3959 = vpop.trf.xlu0
        %v3960 = vpop.trf.xlu0
        %v3961 = vpop.trf.xlu0
        %v3962 = vpop.trf.xlu0
        %v3963 = vpop.trf.xlu0
        %v3964 = vpop.trf.xlu0
        %v3965 = vpop.trf.xlu0
        %v3966 = vpop.trf.xlu0
        %v3967 = vpop.trf.xlu0
        %v3968 = vpop.trf.xlu0
        %v3969 = vpop.trf.xlu0
        %v3970 = vpop.trf.xlu0
        %v3971 = vpop.trf.xlu0
        %3972 = vxpose.xlu0.b32.start [1/16] %v3348, 128
        %3973 = vxpose.xlu0.b32.cont [2/16] %v3349, 128
        %3974 = vxpose.xlu0.b32.cont [3/16] %v3380, 128
        %3975 = vxpose.xlu0.b32.cont [4/16] %v3381, 128
        %3976 = vxpose.xlu0.b32.cont [5/16] %v3412, 128
        %3977 = vxpose.xlu0.b32.cont [6/16] %v3413, 128
        %3978 = vxpose.xlu0.b32.cont [7/16] %v3444, 128
        %3979 = vxpose.xlu0.b32.cont [8/16] %v3445, 128
        %3980 = vxpose.xlu0.b32.cont [9/16] %v3476, 128
        %3981 = vxpose.xlu0.b32.cont [10/16] %v3477, 128
        %3982 = vxpose.xlu0.b32.cont [11/16] %v3508, 128
        %3983 = vxpose.xlu0.b32.cont [12/16] %v3509, 128
        %3984 = vxpose.xlu0.b32.cont [13/16] %v3540, 128
        %3985 = vxpose.xlu0.b32.cont [14/16] %v3541, 128
        %3986 = vxpose.xlu0.b32.cont [15/16] %v3572, 128
        %3987 = vxpose.xlu0.b32.end [16/16] %v3573, 128
        %v3988 = vpop.trf.xlu0
        %v3989 = vpop.trf.xlu0
        %v3990 = vpop.trf.xlu0
        %v3991 = vpop.trf.xlu0
        %v3992 = vpop.trf.xlu0
        %v3993 = vpop.trf.xlu0
        %v3994 = vpop.trf.xlu0
        %v3995 = vpop.trf.xlu0
        %v3996 = vpop.trf.xlu0
        %v3997 = vpop.trf.xlu0
        %v3998 = vpop.trf.xlu0
        %v3999 = vpop.trf.xlu0
        %v4000 = vpop.trf.xlu0
        %v4001 = vpop.trf.xlu0
        %v4002 = vpop.trf.xlu0
        %v4003 = vpop.trf.xlu0
        %4004 = vxpose.xlu0.b32.start [1/16] %v3604, 128
        %4005 = vxpose.xlu0.b32.cont [2/16] %v3605, 128
        %4006 = vxpose.xlu0.b32.cont [3/16] %v3636, 128
        %4007 = vxpose.xlu0.b32.cont [4/16] %v3637, 128
        %4008 = vxpose.xlu0.b32.cont [5/16] %v3668, 128
        %4009 = vxpose.xlu0.b32.cont [6/16] %v3669, 128
        %4010 = vxpose.xlu0.b32.cont [7/16] %v3700, 128
        %4011 = vxpose.xlu0.b32.cont [8/16] %v3701, 128
        %4012 = vxpose.xlu0.b32.cont [9/16] %v3732, 128
        %4013 = vxpose.xlu0.b32.cont [10/16] %v3733, 128
        %4014 = vxpose.xlu0.b32.cont [11/16] %v3764, 128
        %4015 = vxpose.xlu0.b32.cont [12/16] %v3765, 128
        %4016 = vxpose.xlu0.b32.cont [13/16] %v3796, 128
        %4017 = vxpose.xlu0.b32.cont [14/16] %v3797, 128
        %4018 = vxpose.xlu0.b32.cont [15/16] %v3828, 128
        %4019 = vxpose.xlu0.b32.end [16/16] %v3829, 128
        %v4020 = vpop.trf.xlu0
        %v4021 = vpop.trf.xlu0
        %v4022 = vpop.trf.xlu0
        %v4023 = vpop.trf.xlu0
        %v4024 = vpop.trf.xlu0
        %v4025 = vpop.trf.xlu0
        %v4026 = vpop.trf.xlu0
        %v4027 = vpop.trf.xlu0
        %v4028 = vpop.trf.xlu0
        %v4029 = vpop.trf.xlu0
        %v4030 = vpop.trf.xlu0
        %v4031 = vpop.trf.xlu0
        %v4032 = vpop.trf.xlu0
        %v4033 = vpop.trf.xlu0
        %v4034 = vpop.trf.xlu0
        %v4035 = vpop.trf.xlu0
        %4036 = vmatprep.subr.mxu0 0.0
        %4037 = vmatpush1.msra.mxu0 %v184
        %4038 = vmatprep.subr.mxu0 0.0
        %4039 = vmatpush1.msra.mxu0 %v183
        %4040 = vmatprep.subr.mxu0 0.0
        %4041 = vmatpush1.msra.mxu0 %v182
        %4042 = vmatprep.subr.mxu0 0.0
        %4043 = vmatpush1.msra.mxu0 %v181
        %4044 = vmatprep.subr.mxu0 0.0
        %4045 = vmatpush1.msra.mxu0 %v180
        %4046 = vmatprep.subr.mxu0 0.0
        %4047 = vmatpush1.msra.mxu0 %v179
        %4048 = vmatprep.subr.mxu0 0.0
        %4049 = vmatpush1.msra.mxu0 %v178
        %4050 = vmatprep.subr.mxu0 0.0
        %4051 = vmatpush1.msra.mxu0 %v177
        %4052 = vmatprep.subr.mxu0 0.0
        %4053 = vmatpush1.msra.mxu0 %v176
        %4054 = vmatprep.subr.mxu0 0.0
        %4055 = vmatpush1.msra.mxu0 %v175
        %4056 = vmatprep.subr.mxu0 0.0
        %4057 = vmatpush1.msra.mxu0 %v174
        %4058 = vmatprep.subr.mxu0 0.0
        %4059 = vmatpush1.msra.mxu0 %v173
        %4060 = vmatprep.subr.mxu0 0.0
        %4061 = vmatpush1.msra.mxu0 %v172
        %4062 = vmatprep.subr.mxu0 0.0
        %4063 = vmatpush1.msra.mxu0 %v171
        %4064 = vmatprep.subr.mxu0 0.0
        %4065 = vmatpush1.msra.mxu0 %v170
        %4066 = vmatprep.subr.mxu0 0.0
        %4067 = vmatpush1.msra.mxu0 %v169
        %4068 = vmatprep.subr.mxu0 0.0
        %4069 = vmatpush2.msra.mxu0 %v200
        %4070 = vmatprep.subr.mxu0 0.0
        %4071 = vmatpush2.msra.mxu0 %v199
        %4072 = vmatprep.subr.mxu0 0.0
        %4073 = vmatpush2.msra.mxu0 %v198
        %4074 = vmatprep.subr.mxu0 0.0
        %4075 = vmatpush2.msra.mxu0 %v197
        %4076 = vmatprep.subr.mxu0 0.0
        %4077 = vmatpush2.msra.mxu0 %v196
        %4078 = vmatprep.subr.mxu0 0.0
        %4079 = vmatpush2.msra.mxu0 %v195
        %4080 = vmatprep.subr.mxu0 0.0
        %4081 = vmatpush2.msra.mxu0 %v194
        %4082 = vmatprep.subr.mxu0 0.0
        %4083 = vmatpush2.msra.mxu0 %v193
        %4084 = vmatprep.subr.mxu0 0.0
        %4085 = vmatpush2.msra.mxu0 %v192
        %4086 = vmatprep.subr.mxu0 0.0
        %4087 = vmatpush2.msra.mxu0 %v191
        %4088 = vmatprep.subr.mxu0 0.0
        %4089 = vmatpush2.msra.mxu0 %v190
        %4090 = vmatprep.subr.mxu0 0.0
        %4091 = vmatpush2.msra.mxu0 %v189
        %4092 = vmatprep.subr.mxu0 0.0
        %4093 = vmatpush2.msra.mxu0 %v188
        %4094 = vmatprep.subr.mxu0 0.0
        %4095 = vmatpush2.msra.mxu0 %v187
        %4096 = vmatprep.subr.mxu0 0.0
        %4097 = vmatpush2.msra.mxu0 %v186
        %4098 = vmatprep.subr.mxu0 0.0
        %4099 = vmatpush2.msra.mxu0 %v185
        %4100 = vmatprep.mubr.f32.mxu0 %v3892
        %4101 = vmatmul.mubr.f32.gmra.mxu0 %v3860
        %v4102 = vpop.f32.mrf.mxu0
        %v4103 = vadd.f32 %v1854, %v4102
        %v4104 = vpop.f32.mrf.mxu0
        %4105 = vdwg.mxu0
        %4106 = vmatprep.subr.mxu0 0.0
        %4107 = vmatpush1.msra.mxu0 %v216
        %4108 = vmatprep.subr.mxu0 0.0
        %4109 = vmatpush1.msra.mxu0 %v215
        %4110 = vmatprep.subr.mxu0 0.0
        %4111 = vmatpush1.msra.mxu0 %v214
        %4112 = vmatprep.subr.mxu0 0.0
        %4113 = vmatpush1.msra.mxu0 %v213
        %4114 = vmatprep.subr.mxu0 0.0
        %4115 = vmatpush1.msra.mxu0 %v212
        %4116 = vmatprep.subr.mxu0 0.0
        %4117 = vmatpush1.msra.mxu0 %v211
        %4118 = vmatprep.subr.mxu0 0.0
        %4119 = vmatpush1.msra.mxu0 %v210
        %4120 = vmatprep.subr.mxu0 0.0
        %4121 = vmatpush1.msra.mxu0 %v209
        %4122 = vmatprep.subr.mxu0 0.0
        %4123 = vmatpush1.msra.mxu0 %v208
        %4124 = vmatprep.subr.mxu0 0.0
        %4125 = vmatpush1.msra.mxu0 %v207
        %4126 = vmatprep.subr.mxu0 0.0
        %4127 = vmatpush1.msra.mxu0 %v206
        %4128 = vmatprep.subr.mxu0 0.0
        %4129 = vmatpush1.msra.mxu0 %v205
        %4130 = vmatprep.subr.mxu0 0.0
        %4131 = vmatpush1.msra.mxu0 %v204
        %4132 = vmatprep.subr.mxu0 0.0
        %4133 = vmatpush1.msra.mxu0 %v203
        %4134 = vmatprep.subr.mxu0 0.0
        %4135 = vmatpush1.msra.mxu0 %v202
        %4136 = vmatprep.subr.mxu0 0.0
        %4137 = vmatpush1.msra.mxu0 %v201
        %4138 = vmatprep.subr.mxu0 0.0
        %4139 = vmatpush2.msra.mxu0 %v232
        %4140 = vmatprep.subr.mxu0 0.0
        %4141 = vmatpush2.msra.mxu0 %v231
        %4142 = vmatprep.subr.mxu0 0.0
        %4143 = vmatpush2.msra.mxu0 %v230
        %4144 = vmatprep.subr.mxu0 0.0
        %4145 = vmatpush2.msra.mxu0 %v229
        %4146 = vmatprep.subr.mxu0 0.0
        %4147 = vmatpush2.msra.mxu0 %v228
        %4148 = vmatprep.subr.mxu0 0.0
        %4149 = vmatpush2.msra.mxu0 %v227
        %4150 = vmatprep.subr.mxu0 0.0
        %4151 = vmatpush2.msra.mxu0 %v226
        %4152 = vmatprep.subr.mxu0 0.0
        %4153 = vmatpush2.msra.mxu0 %v225
        %4154 = vmatprep.subr.mxu0 0.0
        %4155 = vmatpush2.msra.mxu0 %v224
        %4156 = vmatprep.subr.mxu0 0.0
        %4157 = vmatpush2.msra.mxu0 %v223
        %4158 = vmatprep.subr.mxu0 0.0
        %4159 = vmatpush2.msra.mxu0 %v222
        %4160 = vmatprep.subr.mxu0 0.0
        %4161 = vmatpush2.msra.mxu0 %v221
        %4162 = vmatprep.subr.mxu0 0.0
        %4163 = vmatpush2.msra.mxu0 %v220
        %4164 = vmatprep.subr.mxu0 0.0
        %4165 = vmatpush2.msra.mxu0 %v219
        %4166 = vmatprep.subr.mxu0 0.0
        %4167 = vmatpush2.msra.mxu0 %v218
        %4168 = vmatprep.subr.mxu0 0.0
        %4169 = vmatpush2.msra.mxu0 %v217
        %4170 = vmatprep.mubr.f32.mxu0 %v3956
        %4171 = vmatmul.mubr.f32.gmra.mxu0 %v3924
        %v4172 = vpop.f32.mrf.mxu0
        %v4173 = vadd.f32 %v4103, %v4172
        %v4174 = vpop.f32.mrf.mxu0
        %4175 = vdwg.mxu0
        %4176 = vmatprep.subr.mxu0 0.0
        %4177 = vmatpush1.msra.mxu0 %v248
        %4178 = vmatprep.subr.mxu0 0.0
        %4179 = vmatpush1.msra.mxu0 %v247
        %4180 = vmatprep.subr.mxu0 0.0
        %4181 = vmatpush1.msra.mxu0 %v246
        %4182 = vmatprep.subr.mxu0 0.0
        %4183 = vmatpush1.msra.mxu0 %v245
        %4184 = vmatprep.subr.mxu0 0.0
        %4185 = vmatpush1.msra.mxu0 %v244
        %4186 = vmatprep.subr.mxu0 0.0
        %4187 = vmatpush1.msra.mxu0 %v243
        %4188 = vmatprep.subr.mxu0 0.0
        %4189 = vmatpush1.msra.mxu0 %v242
        %4190 = vmatprep.subr.mxu0 0.0
        %4191 = vmatpush1.msra.mxu0 %v241
        %4192 = vmatprep.subr.mxu0 0.0
        %4193 = vmatpush1.msra.mxu0 %v240
        %4194 = vmatprep.subr.mxu0 0.0
        %4195 = vmatpush1.msra.mxu0 %v239
        %4196 = vmatprep.subr.mxu0 0.0
        %4197 = vmatpush1.msra.mxu0 %v238
        %4198 = vmatprep.subr.mxu0 0.0
        %4199 = vmatpush1.msra.mxu0 %v237
        %4200 = vmatprep.subr.mxu0 0.0
        %4201 = vmatpush1.msra.mxu0 %v236
        %4202 = vmatprep.subr.mxu0 0.0
        %4203 = vmatpush1.msra.mxu0 %v235
        %4204 = vmatprep.subr.mxu0 0.0
        %4205 = vmatpush1.msra.mxu0 %v234
        %4206 = vmatprep.subr.mxu0 0.0
        %4207 = vmatpush1.msra.mxu0 %v233
        %4208 = vmatprep.subr.mxu0 0.0
        %4209 = vmatpush2.msra.mxu0 %v264
        %4210 = vmatprep.subr.mxu0 0.0
        %4211 = vmatpush2.msra.mxu0 %v263
        %4212 = vmatprep.subr.mxu0 0.0
        %4213 = vmatpush2.msra.mxu0 %v262
        %4214 = vmatprep.subr.mxu0 0.0
        %4215 = vmatpush2.msra.mxu0 %v261
        %4216 = vmatprep.subr.mxu0 0.0
        %4217 = vmatpush2.msra.mxu0 %v260
        %4218 = vmatprep.subr.mxu0 0.0
        %4219 = vmatpush2.msra.mxu0 %v259
        %4220 = vmatprep.subr.mxu0 0.0
        %4221 = vmatpush2.msra.mxu0 %v258
        %4222 = vmatprep.subr.mxu0 0.0
        %4223 = vmatpush2.msra.mxu0 %v257
        %4224 = vmatprep.subr.mxu0 0.0
        %4225 = vmatpush2.msra.mxu0 %v256
        %4226 = vmatprep.subr.mxu0 0.0
        %4227 = vmatpush2.msra.mxu0 %v255
        %4228 = vmatprep.subr.mxu0 0.0
        %4229 = vmatpush2.msra.mxu0 %v254
        %4230 = vmatprep.subr.mxu0 0.0
        %4231 = vmatpush2.msra.mxu0 %v253
        %4232 = vmatprep.subr.mxu0 0.0
        %4233 = vmatpush2.msra.mxu0 %v252
        %4234 = vmatprep.subr.mxu0 0.0
        %4235 = vmatpush2.msra.mxu0 %v251
        %4236 = vmatprep.subr.mxu0 0.0
        %4237 = vmatpush2.msra.mxu0 %v250
        %4238 = vmatprep.subr.mxu0 0.0
        %4239 = vmatpush2.msra.mxu0 %v249
        %4240 = vmatprep.mubr.f32.mxu0 %v4020
        %4241 = vmatmul.mubr.f32.gmra.mxu0 %v3988
        %v4242 = vpop.f32.mrf.mxu0
        %v4243 = vadd.f32 %v4173, %v4242
        %v4244 = vpop.f32.mrf.mxu0
        %4245 = vdwg.mxu0
        %4246 = vst [vmem:[%s163 + $0x8] sm:$0xff] %v4243
        %s4247 = sand.u32 %s93, 1
        %s4248 = scalar_lea.sflag [#allocation3], %s4247
        %s4249 = sand.u32 %s93, 1
        %s4250 = smul.addr %s4249, 16
        %s4251 = scalar_lea.vmem [#allocation2], %s4250
        // Predicated region
        $region33: #{_patch_embed_fused.1} parent=31 // pred_check
          %p4252 = pneg %p103
        $region34: #{_patch_embed_fused.1} parent=31 // pred_check_branch
          %4254 = sbr.rel (%p4252) target = $region36
        $region35: #{_patch_embed_fused.1} parent=31 // pred_region
          %s4256 = ssub.s32 256, 256
          %4257 = vsyncadd %s4248, %s4256
          %s4258 = smul.addr %s17, 2
          %s4259 = smul.addr %s4258, 128
          %s4260 = scalar_lea.hbm %s3, %s4259
          %s4261 = sshll.u32 %s4251, 4
          %s4262 = int_to_ptr.vmem [resolvable:$true] %s4261
          %4267 = dma.vmem_to_hbm [thread:$0]  %s4262, 256, %s4260, %s4248, 128, 128, 8
        $region36: #{_patch_embed_fused.1} parent=31 // pred_fallthru
          _
      $region32: #{_patch_embed_fused.1} parent=5 // pred_fallthru
        _
      %p4268 = scmp.le.s32.totalorder 2, %s12
      // Predicated region
      $region37: #{_patch_embed_fused.1} parent=5 // pred_check
        %p4269 = pneg %p4268
      $region38: #{_patch_embed_fused.1} parent=5 // pred_check_branch
        %4271 = sbr.rel (%p4269) target = $region40
      $region39: #{_patch_embed_fused.1} parent=5 // pred_region
        %s4272 = ssub.s32 %s12, 2
        // Predicated region
        $region41: #{_patch_embed_fused.1} parent=39 // pred_check
          %p4273 = pneg %p109
        $region42: #{_patch_embed_fused.1} parent=39 // pred_check_branch
          %4275 = sbr.rel (%p4273) target = $region44
        $region43: #{_patch_embed_fused.1} parent=39 // pred_region
          %s4276 = sand.u32 %s94, 1
          %s4277 = scalar_lea.sflag [#allocation3], %s4276
          %s4278 = sand.u32 %s94, 1
          %s4279 = smul.addr %s4278, 16
          %s4280 = scalar_lea.vmem [#allocation2], %s4279
          %4281 = dma.done %s4277, 256
        $region44: #{_patch_embed_fused.1} parent=39 // pred_fallthru
          _
      $region40: #{_patch_embed_fused.1} parent=5 // pred_fallthru
        _
    $region6: #{_patch_embed_fused.1} parent=1 // loop_footer
      %s16 = sadd.s32 1, %s12
    $region7: #{_patch_embed_fused.1} parent=1 // loop_footer_branch
      %11 = sbr.rel target = $region3
    $region8: #{_patch_embed_fused.1} parent=1 // loop_exit
      _
    %4282 = vsyncpa [#allocation3], 1
    %s4283 = scalar_lea.sflag [#allocation3], 1
    %4284 = vsyncpa %s4283, 1

// kernel: _patch_embed_unfused.1
$region0: #{_patch_embed_unfused.1}
  #allocation0 [shape = 'u32[]', space=smem, size = 0x4, offset = 0x4, fixed_abs, tag = 'smem constant byte address 0x4 - core index']
  #allocation1 [shape = 'u32[144,128]{1,0:T(1,128)}', space=vmem, size = 0x12000, scoped, tag = 'internal scratch']
  %s0 = inlined_call_operand.vmem [shape: f32[32,768], index: 0, kind: input, shape index: {}]
  %s1 = inlined_call_operand.vmem [shape: f32[768,128], index: 1, kind: input, shape index: {}]
  %s2 = inlined_call_operand.vmem [shape: f32[1,128], index: 2, kind: input, shape index: {}]
  %s3 = inlined_call_operand.hbm [shape: f32[32,128], index: 3, kind: output, shape index: {}]
  %s4 = sld [smem:[#allocation0]]
  $region22: #{_patch_embed_unfused.1} parent=0
    _
  %s6 = ssub.s32 1, %s4
  %s7 = scalar_select 0, %s6, %s4
  $region1: #{_patch_embed_unfused.1} parent=0
    #allocation2 [shape = 'u8[16384]{0}', space=vmem, size = 0x4000, scoped, tag = 'output window, operand 0, single buffered']
    #allocation3 [shape = 's32[1]{0}', space=sflag, size = 0x4, scoped, tag = 'scoped memory for _patch_embed_unfused.1']
    %8 = vsyncpa [#allocation3], 0
    // Predicated region
    $region2: #{_patch_embed_unfused.1} parent=1 // pred_check
      _
    $region3: #{_patch_embed_unfused.1} parent=1 // pred_check_branch
      %10 = sbr.rel (0) target = $region5
    $region4: #{_patch_embed_unfused.1} parent=1 // pred_region
      _
    $region5: #{_patch_embed_unfused.1} parent=1 // pred_fallthru
      _
    // Predicated region
    $region6: #{_patch_embed_unfused.1} parent=1 // pred_check
      _
    $region7: #{_patch_embed_unfused.1} parent=1 // pred_check_branch
      %12 = sbr.rel (0) target = $region9
    $region8: #{_patch_embed_unfused.1} parent=1 // pred_region
      _
    $region9: #{_patch_embed_unfused.1} parent=1 // pred_fallthru
      _
    // Predicated region
    $region10: #{_patch_embed_unfused.1} parent=1 // pred_check
      _
    $region11: #{_patch_embed_unfused.1} parent=1 // pred_check_branch
      %14 = sbr.rel (0) target = $region13
    $region12: #{_patch_embed_unfused.1} parent=1 // pred_region
      _
    $region13: #{_patch_embed_unfused.1} parent=1 // pred_fallthru
      _
    %v15 = vld [vmem:[%s0] sm:$0xff]
    %v16 = vld [vmem:[%s0 + $0x8] sm:$0xff]
    %v17 = vld [vmem:[%s0 + $0x10] sm:$0xff]
    %v18 = vld [vmem:[%s0 + $0x18] sm:$0xff]
    %v19 = vld [vmem:[%s0 + $0x20] sm:$0xff]
    %v20 = vld [vmem:[%s0 + $0x28] sm:$0xff]
    %v21 = vld [vmem:[%s0 + $0x30] sm:$0xff]
    %v22 = vld [vmem:[%s0 + $0x38] sm:$0xff]
    %v23 = vld [vmem:[%s0 + $0x40] sm:$0xff]
    %v24 = vld [vmem:[%s0 + $0x48] sm:$0xff]
    %v25 = vld [vmem:[%s0 + $0x50] sm:$0xff]
    %v26 = vld [vmem:[%s0 + $0x58] sm:$0xff]
    %v27 = vld [vmem:[%s0 + $0x60] sm:$0xff]
    %v28 = vld [vmem:[%s0 + $0x68] sm:$0xff]
    %v29 = vld [vmem:[%s0 + $0x70] sm:$0xff]
    %v30 = vld [vmem:[%s0 + $0x78] sm:$0xff]
    %v31 = vld [vmem:[%s0 + $0x80] sm:$0xff]
    %v32 = vld [vmem:[%s0 + $0x88] sm:$0xff]
    %v33 = vld [vmem:[%s0 + $0x90] sm:$0xff]
    %v34 = vld [vmem:[%s0 + $0x98] sm:$0xff]
    %v35 = vld [vmem:[%s0 + $0xa0] sm:$0xff]
    %v36 = vld [vmem:[%s0 + $0xa8] sm:$0xff]
    %v37 = vld [vmem:[%s0 + $0xb0] sm:$0xff]
    %v38 = vld [vmem:[%s0 + $0xb8] sm:$0xff]
    %v39 = vld [vmem:[%s1] sm:$0xff]
    %v40 = vld [vmem:[%s1 + $0x8] sm:$0xff]
    %v41 = vld [vmem:[%s1 + $0x10] sm:$0xff]
    %v42 = vld [vmem:[%s1 + $0x18] sm:$0xff]
    %v43 = vld [vmem:[%s1 + $0x20] sm:$0xff]
    %v44 = vld [vmem:[%s1 + $0x28] sm:$0xff]
    %v45 = vld [vmem:[%s1 + $0x30] sm:$0xff]
    %v46 = vld [vmem:[%s1 + $0x38] sm:$0xff]
    %v47 = vld [vmem:[%s1 + $0x40] sm:$0xff]
    %v48 = vld [vmem:[%s1 + $0x48] sm:$0xff]
    %v49 = vld [vmem:[%s1 + $0x50] sm:$0xff]
    %v50 = vld [vmem:[%s1 + $0x58] sm:$0xff]
    %v51 = vld [vmem:[%s1 + $0x60] sm:$0xff]
    %v52 = vld [vmem:[%s1 + $0x68] sm:$0xff]
    %v53 = vld [vmem:[%s1 + $0x70] sm:$0xff]
    %v54 = vld [vmem:[%s1 + $0x78] sm:$0xff]
    %v55 = vld [vmem:[%s1 + $0x80] sm:$0xff]
    %v56 = vld [vmem:[%s1 + $0x88] sm:$0xff]
    %v57 = vld [vmem:[%s1 + $0x90] sm:$0xff]
    %v58 = vld [vmem:[%s1 + $0x98] sm:$0xff]
    %v59 = vld [vmem:[%s1 + $0xa0] sm:$0xff]
    %v60 = vld [vmem:[%s1 + $0xa8] sm:$0xff]
    %v61 = vld [vmem:[%s1 + $0xb0] sm:$0xff]
    %v62 = vld [vmem:[%s1 + $0xb8] sm:$0xff]
    %v63 = vld [vmem:[%s1 + $0xc0] sm:$0xff]
    %v64 = vld [vmem:[%s1 + $0xc8] sm:$0xff]
    %v65 = vld [vmem:[%s1 + $0xd0] sm:$0xff]
    %v66 = vld [vmem:[%s1 + $0xd8] sm:$0xff]
    %v67 = vld [vmem:[%s1 + $0xe0] sm:$0xff]
    %v68 = vld [vmem:[%s1 + $0xe8] sm:$0xff]
    %v69 = vld [vmem:[%s1 + $0xf0] sm:$0xff]
    %v70 = vld [vmem:[%s1 + $0xf8] sm:$0xff]
    %v71 = vld [vmem:[%s1 + $0x100] sm:$0xff]
    %v72 = vld [vmem:[%s1 + $0x108] sm:$0xff]
    %v73 = vld [vmem:[%s1 + $0x110] sm:$0xff]
    %v74 = vld [vmem:[%s1 + $0x118] sm:$0xff]
    %v75 = vld [vmem:[%s1 + $0x120] sm:$0xff]
    %v76 = vld [vmem:[%s1 + $0x128] sm:$0xff]
    %v77 = vld [vmem:[%s1 + $0x130] sm:$0xff]
    %v78 = vld [vmem:[%s1 + $0x138] sm:$0xff]
    %v79 = vld [vmem:[%s1 + $0x140] sm:$0xff]
    %v80 = vld [vmem:[%s1 + $0x148] sm:$0xff]
    %v81 = vld [vmem:[%s1 + $0x150] sm:$0xff]
    %v82 = vld [vmem:[%s1 + $0x158] sm:$0xff]
    %v83 = vld [vmem:[%s1 + $0x160] sm:$0xff]
    %v84 = vld [vmem:[%s1 + $0x168] sm:$0xff]
    %v85 = vld [vmem:[%s1 + $0x170] sm:$0xff]
    %v86 = vld [vmem:[%s1 + $0x178] sm:$0xff]
    %v87 = vld [vmem:[%s1 + $0x180] sm:$0xff]
    %v88 = vld [vmem:[%s1 + $0x188] sm:$0xff]
    %v89 = vld [vmem:[%s1 + $0x190] sm:$0xff]
    %v90 = vld [vmem:[%s1 + $0x198] sm:$0xff]
    %v91 = vld [vmem:[%s1 + $0x1a0] sm:$0xff]
    %v92 = vld [vmem:[%s1 + $0x1a8] sm:$0xff]
    %v93 = vld [vmem:[%s1 + $0x1b0] sm:$0xff]
    %v94 = vld [vmem:[%s1 + $0x1b8] sm:$0xff]
    %v95 = vld [vmem:[%s1 + $0x1c0] sm:$0xff]
    %v96 = vld [vmem:[%s1 + $0x1c8] sm:$0xff]
    %v97 = vld [vmem:[%s1 + $0x1d0] sm:$0xff]
    %v98 = vld [vmem:[%s1 + $0x1d8] sm:$0xff]
    %v99 = vld [vmem:[%s1 + $0x1e0] sm:$0xff]
    %v100 = vld [vmem:[%s1 + $0x1e8] sm:$0xff]
    %v101 = vld [vmem:[%s1 + $0x1f0] sm:$0xff]
    %v102 = vld [vmem:[%s1 + $0x1f8] sm:$0xff]
    %v103 = vld [vmem:[%s1 + $0x200] sm:$0xff]
    %v104 = vld [vmem:[%s1 + $0x208] sm:$0xff]
    %v105 = vld [vmem:[%s1 + $0x210] sm:$0xff]
    %v106 = vld [vmem:[%s1 + $0x218] sm:$0xff]
    %v107 = vld [vmem:[%s1 + $0x220] sm:$0xff]
    %v108 = vld [vmem:[%s1 + $0x228] sm:$0xff]
    %v109 = vld [vmem:[%s1 + $0x230] sm:$0xff]
    %v110 = vld [vmem:[%s1 + $0x238] sm:$0xff]
    %v111 = vld [vmem:[%s1 + $0x240] sm:$0xff]
    %v112 = vld [vmem:[%s1 + $0x248] sm:$0xff]
    %v113 = vld [vmem:[%s1 + $0x250] sm:$0xff]
    %v114 = vld [vmem:[%s1 + $0x258] sm:$0xff]
    %v115 = vld [vmem:[%s1 + $0x260] sm:$0xff]
    %v116 = vld [vmem:[%s1 + $0x268] sm:$0xff]
    %v117 = vld [vmem:[%s1 + $0x270] sm:$0xff]
    %v118 = vld [vmem:[%s1 + $0x278] sm:$0xff]
    %v119 = vld [vmem:[%s1 + $0x280] sm:$0xff]
    %v120 = vld [vmem:[%s1 + $0x288] sm:$0xff]
    %v121 = vld [vmem:[%s1 + $0x290] sm:$0xff]
    %v122 = vld [vmem:[%s1 + $0x298] sm:$0xff]
    %v123 = vld [vmem:[%s1 + $0x2a0] sm:$0xff]
    %v124 = vld [vmem:[%s1 + $0x2a8] sm:$0xff]
    %v125 = vld [vmem:[%s1 + $0x2b0] sm:$0xff]
    %v126 = vld [vmem:[%s1 + $0x2b8] sm:$0xff]
    %v127 = vld [vmem:[%s1 + $0x2c0] sm:$0xff]
    %v128 = vld [vmem:[%s1 + $0x2c8] sm:$0xff]
    %v129 = vld [vmem:[%s1 + $0x2d0] sm:$0xff]
    %v130 = vld [vmem:[%s1 + $0x2d8] sm:$0xff]
    %v131 = vld [vmem:[%s1 + $0x2e0] sm:$0xff]
    %v132 = vld [vmem:[%s1 + $0x2e8] sm:$0xff]
    %v133 = vld [vmem:[%s1 + $0x2f0] sm:$0xff]
    %v134 = vld [vmem:[%s1 + $0x2f8] sm:$0xff]
    %v135 = vld [vmem:[%s2] sm:$0x1]
    %v137 = vlaneseq
    %v138 = vshrl.u32 %v137, 7
    %v139 = vsub.s32 0, %v138
    %v140 = vrot.slane %v135, %v139
    %142 = vmatprep.subr.mxu0 0.0
    %143 = vmatpush1.msra.mxu0 %v54
    %144 = vmatprep.subr.mxu0 0.0
    %145 = vmatpush1.msra.mxu0 %v53
    %146 = vmatprep.subr.mxu0 0.0
    %147 = vmatpush1.msra.mxu0 %v52
    %148 = vmatprep.subr.mxu0 0.0
    %149 = vmatpush1.msra.mxu0 %v51
    %150 = vmatprep.subr.mxu0 0.0
    %151 = vmatpush1.msra.mxu0 %v50
    %152 = vmatprep.subr.mxu0 0.0
    %153 = vmatpush1.msra.mxu0 %v49
    %154 = vmatprep.subr.mxu0 0.0
    %155 = vmatpush1.msra.mxu0 %v48
    %156 = vmatprep.subr.mxu0 0.0
    %157 = vmatpush1.msra.mxu0 %v47
    %158 = vmatprep.subr.mxu0 0.0
    %159 = vmatpush1.msra.mxu0 %v46
    %160 = vmatprep.subr.mxu0 0.0
    %161 = vmatpush1.msra.mxu0 %v45
    %162 = vmatprep.subr.mxu0 0.0
    %163 = vmatpush1.msra.mxu0 %v44
    %164 = vmatprep.subr.mxu0 0.0
    %165 = vmatpush1.msra.mxu0 %v43
    %166 = vmatprep.subr.mxu0 0.0
    %167 = vmatpush1.msra.mxu0 %v42
    %168 = vmatprep.subr.mxu0 0.0
    %169 = vmatpush1.msra.mxu0 %v41
    %170 = vmatprep.subr.mxu0 0.0
    %171 = vmatpush1.msra.mxu0 %v40
    %172 = vmatprep.subr.mxu0 0.0
    %173 = vmatpush1.msra.mxu0 %v39
    %174 = vmatprep.subr.mxu0 0.0
    %175 = vmatpush2.msra.mxu0 %v70
    %176 = vmatprep.subr.mxu0 0.0
    %177 = vmatpush2.msra.mxu0 %v69
    %178 = vmatprep.subr.mxu0 0.0
    %179 = vmatpush2.msra.mxu0 %v68
    %180 = vmatprep.subr.mxu0 0.0
    %181 = vmatpush2.msra.mxu0 %v67
    %182 = vmatprep.subr.mxu0 0.0
    %183 = vmatpush2.msra.mxu0 %v66
    %184 = vmatprep.subr.mxu0 0.0
    %185 = vmatpush2.msra.mxu0 %v65
    %186 = vmatprep.subr.mxu0 0.0
    %187 = vmatpush2.msra.mxu0 %v64
    %188 = vmatprep.subr.mxu0 0.0
    %189 = vmatpush2.msra.mxu0 %v63
    %190 = vmatprep.subr.mxu0 0.0
    %191 = vmatpush2.msra.mxu0 %v62
    %192 = vmatprep.subr.mxu0 0.0
    %193 = vmatpush2.msra.mxu0 %v61
    %194 = vmatprep.subr.mxu0 0.0
    %195 = vmatpush2.msra.mxu0 %v60
    %196 = vmatprep.subr.mxu0 0.0
    %197 = vmatpush2.msra.mxu0 %v59
    %198 = vmatprep.subr.mxu0 0.0
    %199 = vmatpush2.msra.mxu0 %v58
    %200 = vmatprep.subr.mxu0 0.0
    %201 = vmatpush2.msra.mxu0 %v57
    %202 = vmatprep.subr.mxu0 0.0
    %203 = vmatpush2.msra.mxu0 %v56
    %204 = vmatprep.subr.mxu0 0.0
    %205 = vmatpush2.msra.mxu0 %v55
    %206 = vmatprep.mubr.f32.mxu0 %v16
    %207 = vmatmul.mubr.f32.gmra.mxu0 %v15
    %v208 = vpop.f32.mrf.mxu0
    %v209 = vadd.f32 %v140, %v208
    %v210 = vpop.f32.mrf.mxu0
    %211 = vmatprep.mubr.f32.mxu0 %v22
    %212 = vmatmul.mubr.f32.gmra.mxu0 %v21
    %v213 = vpop.f32.mrf.mxu0
    %v214 = vadd.f32 %v140, %v213
    %v215 = vpop.f32.mrf.mxu0
    %216 = vmatprep.mubr.f32.mxu0 %v28
    %217 = vmatmul.mubr.f32.gmra.mxu0 %v27
    %v218 = vpop.f32.mrf.mxu0
    %v219 = vadd.f32 %v140, %v218
    %v220 = vpop.f32.mrf.mxu0
    %221 = vmatprep.mubr.f32.mxu0 %v34
    %222 = vmatmul.mubr.f32.gmra.mxu0 %v33
    %v223 = vpop.f32.mrf.mxu0
    %v224 = vadd.f32 %v140, %v223
    %v225 = vpop.f32.mrf.mxu0
    %226 = vdwg.mxu0
    %227 = vmatprep.subr.mxu0 0.0
    %228 = vmatpush1.msra.mxu0 %v86
    %229 = vmatprep.subr.mxu0 0.0
    %230 = vmatpush1.msra.mxu0 %v85
    %231 = vmatprep.subr.mxu0 0.0
    %232 = vmatpush1.msra.mxu0 %v84
    %233 = vmatprep.subr.mxu0 0.0
    %234 = vmatpush1.msra.mxu0 %v83
    %235 = vmatprep.subr.mxu0 0.0
    %236 = vmatpush1.msra.mxu0 %v82
    %237 = vmatprep.subr.mxu0 0.0
    %238 = vmatpush1.msra.mxu0 %v81
    %239 = vmatprep.subr.mxu0 0.0
    %240 = vmatpush1.msra.mxu0 %v80
    %241 = vmatprep.subr.mxu0 0.0
    %242 = vmatpush1.msra.mxu0 %v79
    %243 = vmatprep.subr.mxu0 0.0
    %244 = vmatpush1.msra.mxu0 %v78
    %245 = vmatprep.subr.mxu0 0.0
    %246 = vmatpush1.msra.mxu0 %v77
    %247 = vmatprep.subr.mxu0 0.0
    %248 = vmatpush1.msra.mxu0 %v76
    %249 = vmatprep.subr.mxu0 0.0
    %250 = vmatpush1.msra.mxu0 %v75
    %251 = vmatprep.subr.mxu0 0.0
    %252 = vmatpush1.msra.mxu0 %v74
    %253 = vmatprep.subr.mxu0 0.0
    %254 = vmatpush1.msra.mxu0 %v73
    %255 = vmatprep.subr.mxu0 0.0
    %256 = vmatpush1.msra.mxu0 %v72
    %257 = vmatprep.subr.mxu0 0.0
    %258 = vmatpush1.msra.mxu0 %v71
    %259 = vmatprep.subr.mxu0 0.0
    %260 = vmatpush2.msra.mxu0 %v102
    %261 = vmatprep.subr.mxu0 0.0
    %262 = vmatpush2.msra.mxu0 %v101
    %263 = vmatprep.subr.mxu0 0.0
    %264 = vmatpush2.msra.mxu0 %v100
    %265 = vmatprep.subr.mxu0 0.0
    %266 = vmatpush2.msra.mxu0 %v99
    %267 = vmatprep.subr.mxu0 0.0
    %268 = vmatpush2.msra.mxu0 %v98
    %269 = vmatprep.subr.mxu0 0.0
    %270 = vmatpush2.msra.mxu0 %v97
    %271 = vmatprep.subr.mxu0 0.0
    %272 = vmatpush2.msra.mxu0 %v96
    %273 = vmatprep.subr.mxu0 0.0
    %274 = vmatpush2.msra.mxu0 %v95
    %275 = vmatprep.subr.mxu0 0.0
    %276 = vmatpush2.msra.mxu0 %v94
    %277 = vmatprep.subr.mxu0 0.0
    %278 = vmatpush2.msra.mxu0 %v93
    %279 = vmatprep.subr.mxu0 0.0
    %280 = vmatpush2.msra.mxu0 %v92
    %281 = vmatprep.subr.mxu0 0.0
    %282 = vmatpush2.msra.mxu0 %v91
    %283 = vmatprep.subr.mxu0 0.0
    %284 = vmatpush2.msra.mxu0 %v90
    %285 = vmatprep.subr.mxu0 0.0
    %286 = vmatpush2.msra.mxu0 %v89
    %287 = vmatprep.subr.mxu0 0.0
    %288 = vmatpush2.msra.mxu0 %v88
    %289 = vmatprep.subr.mxu0 0.0
    %290 = vmatpush2.msra.mxu0 %v87
    %291 = vmatprep.mubr.f32.mxu0 %v18
    %292 = vmatmul.mubr.f32.gmra.mxu0 %v17
    %v293 = vpop.f32.mrf.mxu0
    %v294 = vadd.f32 %v209, %v293
    %v295 = vpop.f32.mrf.mxu0
    %296 = vmatprep.mubr.f32.mxu0 %v24
    %297 = vmatmul.mubr.f32.gmra.mxu0 %v23
    %v298 = vpop.f32.mrf.mxu0
    %v299 = vadd.f32 %v214, %v298
    %v300 = vpop.f32.mrf.mxu0
    %301 = vmatprep.mubr.f32.mxu0 %v30
    %302 = vmatmul.mubr.f32.gmra.mxu0 %v29
    %v303 = vpop.f32.mrf.mxu0
    %v304 = vadd.f32 %v219, %v303
    %v305 = vpop.f32.mrf.mxu0
    %306 = vmatprep.mubr.f32.mxu0 %v36
    %307 = vmatmul.mubr.f32.gmra.mxu0 %v35
    %v308 = vpop.f32.mrf.mxu0
    %v309 = vadd.f32 %v224, %v308
    %v310 = vpop.f32.mrf.mxu0
    %311 = vdwg.mxu0
    %312 = vmatprep.subr.mxu0 0.0
    %313 = vmatpush1.msra.mxu0 %v118
    %314 = vmatprep.subr.mxu0 0.0
    %315 = vmatpush1.msra.mxu0 %v117
    %316 = vmatprep.subr.mxu0 0.0
    %317 = vmatpush1.msra.mxu0 %v116
    %318 = vmatprep.subr.mxu0 0.0
    %319 = vmatpush1.msra.mxu0 %v115
    %320 = vmatprep.subr.mxu0 0.0
    %321 = vmatpush1.msra.mxu0 %v114
    %322 = vmatprep.subr.mxu0 0.0
    %323 = vmatpush1.msra.mxu0 %v113
    %324 = vmatprep.subr.mxu0 0.0
    %325 = vmatpush1.msra.mxu0 %v112
    %326 = vmatprep.subr.mxu0 0.0
    %327 = vmatpush1.msra.mxu0 %v111
    %328 = vmatprep.subr.mxu0 0.0
    %329 = vmatpush1.msra.mxu0 %v110
    %330 = vmatprep.subr.mxu0 0.0
    %331 = vmatpush1.msra.mxu0 %v109
    %332 = vmatprep.subr.mxu0 0.0
    %333 = vmatpush1.msra.mxu0 %v108
    %334 = vmatprep.subr.mxu0 0.0
    %335 = vmatpush1.msra.mxu0 %v107
    %336 = vmatprep.subr.mxu0 0.0
    %337 = vmatpush1.msra.mxu0 %v106
    %338 = vmatprep.subr.mxu0 0.0
    %339 = vmatpush1.msra.mxu0 %v105
    %340 = vmatprep.subr.mxu0 0.0
    %341 = vmatpush1.msra.mxu0 %v104
    %342 = vmatprep.subr.mxu0 0.0
    %343 = vmatpush1.msra.mxu0 %v103
    %344 = vmatprep.subr.mxu0 0.0
    %345 = vmatpush2.msra.mxu0 %v134
    %346 = vmatprep.subr.mxu0 0.0
    %347 = vmatpush2.msra.mxu0 %v133
    %348 = vmatprep.subr.mxu0 0.0
    %349 = vmatpush2.msra.mxu0 %v132
    %350 = vmatprep.subr.mxu0 0.0
    %351 = vmatpush2.msra.mxu0 %v131
    %352 = vmatprep.subr.mxu0 0.0
    %353 = vmatpush2.msra.mxu0 %v130
    %354 = vmatprep.subr.mxu0 0.0
    %355 = vmatpush2.msra.mxu0 %v129
    %356 = vmatprep.subr.mxu0 0.0
    %357 = vmatpush2.msra.mxu0 %v128
    %358 = vmatprep.subr.mxu0 0.0
    %359 = vmatpush2.msra.mxu0 %v127
    %360 = vmatprep.subr.mxu0 0.0
    %361 = vmatpush2.msra.mxu0 %v126
    %362 = vmatprep.subr.mxu0 0.0
    %363 = vmatpush2.msra.mxu0 %v125
    %364 = vmatprep.subr.mxu0 0.0
    %365 = vmatpush2.msra.mxu0 %v124
    %366 = vmatprep.subr.mxu0 0.0
    %367 = vmatpush2.msra.mxu0 %v123
    %368 = vmatprep.subr.mxu0 0.0
    %369 = vmatpush2.msra.mxu0 %v122
    %370 = vmatprep.subr.mxu0 0.0
    %371 = vmatpush2.msra.mxu0 %v121
    %372 = vmatprep.subr.mxu0 0.0
    %373 = vmatpush2.msra.mxu0 %v120
    %374 = vmatprep.subr.mxu0 0.0
    %375 = vmatpush2.msra.mxu0 %v119
    %376 = vmatprep.mubr.f32.mxu0 %v20
    %377 = vmatmul.mubr.f32.gmra.mxu0 %v19
    %v378 = vpop.f32.mrf.mxu0
    %v379 = vadd.f32 %v294, %v378
    %v380 = vpop.f32.mrf.mxu0
    %381 = vmatprep.mubr.f32.mxu0 %v26
    %382 = vmatmul.mubr.f32.gmra.mxu0 %v25
    %v383 = vpop.f32.mrf.mxu0
    %v384 = vadd.f32 %v299, %v383
    %v385 = vpop.f32.mrf.mxu0
    %386 = vmatprep.mubr.f32.mxu0 %v32
    %387 = vmatmul.mubr.f32.gmra.mxu0 %v31
    %v388 = vpop.f32.mrf.mxu0
    %v389 = vadd.f32 %v304, %v388
    %v390 = vpop.f32.mrf.mxu0
    %391 = vmatprep.mubr.f32.mxu0 %v38
    %392 = vmatmul.mubr.f32.gmra.mxu0 %v37
    %v393 = vpop.f32.mrf.mxu0
    %v394 = vadd.f32 %v309, %v393
    %v395 = vpop.f32.mrf.mxu0
    %396 = vdwg.mxu0
    %397 = vst [vmem:[#allocation2] sm:$0xff] %v379
    %398 = vst [vmem:[#allocation2 + $0x8] sm:$0xff] %v384
    %399 = vst [vmem:[#allocation2 + $0x10] sm:$0xff] %v389
    %400 = vst [vmem:[#allocation2 + $0x18] sm:$0xff] %v394
    // Predicated region
    $region14: #{_patch_embed_unfused.1} parent=1 // pred_check
      _
    $region15: #{_patch_embed_unfused.1} parent=1 // pred_check_branch
      %402 = sbr.rel (0) target = $region17
    $region16: #{_patch_embed_unfused.1} parent=1 // pred_region
      %s404 = ssub.s32 512, 512
      %405 = vsyncadd [#allocation3], %s404
      %s406 = sshll.u32 [#allocation2], 4
      %s407 = int_to_ptr.vmem [resolvable:$true] %s406
      %412 = dma.vmem_to_hbm [thread:$0]  %s407, 512, %s3, [#allocation3], 128, 128, 8
    $region17: #{_patch_embed_unfused.1} parent=1 // pred_fallthru
      _
    // Predicated region
    $region18: #{_patch_embed_unfused.1} parent=1 // pred_check
      _
    $region19: #{_patch_embed_unfused.1} parent=1 // pred_check_branch
      %414 = sbr.rel (0) target = $region21
    $region20: #{_patch_embed_unfused.1} parent=1 // pred_region
      %415 = dma.done [#allocation3], 512
    $region21: #{_patch_embed_unfused.1} parent=1 // pred_fallthru
      _
    %416 = vsyncpa [#allocation3], 1

</llo_original>
